<compile_context>
chip_gen: v5e
topology: v5e:2x2
jax: 0.10.0
libtpu: 0.0.40
codegen_flags: <defaults>
</compile_context>

<pallas_src>
import functools
import math

import jax
import jax.numpy as jnp
from jax.experimental import pallas as pl
from jax.experimental.pallas import tpu as pltpu

# ------------------------- small ViT configuration -------------------------
PATCH = 4
IMG = 16
IN_CH = 3
EMBED = 32
DEPTH = 2
HEADS = 4
HEAD_DIM = EMBED // HEADS
MLP_HIDDEN = 4 * EMBED
NUM_CLASSES = 10
NUM_PATCHES = (IMG // PATCH) ** 2
NUM_TOKENS = NUM_PATCHES + 1          # +1 class token
PATCH_DIM = IN_CH * PATCH * PATCH
LN_EPS = 1e-6
DROP_P = 0.5

VMEM = pltpu.MemorySpace.VMEM


# ------------------------------ in-kernel math ------------------------------
def _mm(a, b):
    """MXU matmul: bf16 operands, f32 accumulation."""
    return jnp.dot(a.astype(jnp.bfloat16), b.astype(jnp.bfloat16),
                   preferred_element_type=jnp.float32)


def _mm_t(a, b):
    """a @ b.T with bf16 operands, f32 accumulation."""
    return jax.lax.dot_general(
        a.astype(jnp.bfloat16), b.astype(jnp.bfloat16),
        (((1,), (1,)), ((), ())),
        preferred_element_type=jnp.float32)


def _layernorm(x, g, b):
    mu = jnp.mean(x, axis=-1, keepdims=True)
    xc = x - mu
    var = jnp.mean(xc * xc, axis=-1, keepdims=True)
    return xc * jax.lax.rsqrt(var + LN_EPS) * g + b


def _erf(x):
    # Abramowitz & Stegun 7.1.26, |err| < 1.5e-7 — effectively exact erf-GELU.
    a1, a2, a3, a4, a5 = (0.254829592, -0.284496736, 1.421413741,
                          -1.453152027, 1.061405429)
    p = 0.3275911
    sgn = jnp.where(x >= 0.0, 1.0, -1.0)
    ax = jnp.abs(x)
    t = 1.0 / (1.0 + p * ax)
    poly = ((((a5 * t + a4) * t + a3) * t + a2) * t + a1) * t
    return sgn * (1.0 - poly * jnp.exp(-ax * ax))


def _gelu(x):
    return 0.5 * x * (1.0 + _erf(x * (1.0 / math.sqrt(2.0))))


# -------------------------------- the kernel --------------------------------
def _vit_kernel(xp_ref, mask_ref, *refs):
    """Fully fused ViT forward for one batch element (grid axis = batch)."""
    o_ref = refs[-1]
    w = refs[:-1]

    patch_w = w[0][...]
    patch_b = w[1][...]
    cls_tok = w[2][...]
    pos = w[3][...]
    i = 4

    # patch embedding (Conv2d(k=P, s=P) expressed as a matmul on unfolded patches)
    xp = xp_ref[0].astype(jnp.float32)                       # (NUM_PATCHES, PATCH_DIM)
    tok = _mm(xp, patch_w) + patch_b                         # (NUM_PATCHES, EMBED)
    x = jnp.concatenate([cls_tok, tok], axis=0) + pos        # (NUM_TOKENS, EMBED)

    scale = 1.0 / math.sqrt(HEAD_DIM)
    for _ in range(DEPTH):
        (ln1_g, ln1_b, qkv_w, qkv_b, proj_w, proj_b,
         ln2_g, ln2_b, fc1_w, fc1_b, fc2_w, fc2_b) = (r[...] for r in w[i:i + 12])
        i += 12

        # --- multi-head self-attention ---
        h = _layernorm(x, ln1_g, ln1_b)
        qkv = _mm(h, qkv_w) + qkv_b                          # (N, 3*EMBED)

        attn_proj = jnp.zeros((NUM_TOKENS, EMBED), jnp.float32)
        for hd in range(HEADS):                              # unrolled — no grid steps
            lo = hd * HEAD_DIM
            qh = qkv[:, lo:lo + HEAD_DIM]
            kh = qkv[:, EMBED + lo:EMBED + lo + HEAD_DIM]
            vh = qkv[:, 2 * EMBED + lo:2 * EMBED + lo + HEAD_DIM]
            s = _mm_t(qh, kh) * scale                        # (N, N)
            s = s - jnp.max(s, axis=-1, keepdims=True)
            p = jnp.exp(s)
            p = p / jnp.sum(p, axis=-1, keepdims=True)
            oh = _mm(p, vh)                                  # (N, HEAD_DIM)
            # concat(heads) @ proj_w  ==  sum_h  oh @ proj_w[rows_of_head_h]
            attn_proj = attn_proj + _mm(oh, proj_w[lo:lo + HEAD_DIM, :])
        x = x + attn_proj + proj_b                           # residual

        # --- MLP ---
        h = _layernorm(x, ln2_g, ln2_b)
        h1 = _gelu(_mm(h, fc1_w) + fc1_b)                    # (N, MLP_HIDDEN)
        x = x + _mm(h1, fc2_w) + fc2_b                       # residual

    ln_f_g = w[i][...]
    ln_f_b = w[i + 1][...]
    head_w = w[i + 2][...]
    head_b = w[i + 3][...]

    xf = _layernorm(x, ln_f_g, ln_f_b)
    cls_feat = xf[0:1, :]                                    # (1, EMBED)
    logits = _mm(cls_feat, head_w) + head_b                  # (1, NUM_CLASSES)

    # fused Dropout(0.5): mask_ref holds 0.0 or 1/(1-p), drawn host-side.
    o_ref[0] = (logits * mask_ref[0]).astype(o_ref.dtype)


# ----------------------------- parameters -----------------------------------
def init_params(key):
    ks = iter(jax.random.split(key, 8 + 12 * DEPTH))

    def nrm(shape, std=0.02):
        return jax.random.normal(next(ks), shape, jnp.float32) * std

    params = {
        "patch_w": nrm((PATCH_DIM, EMBED)),   # Conv2d(k=P, s=P) as linear
        "patch_b": jnp.zeros((EMBED,), jnp.float32),
        "cls": nrm((1, EMBED)),
        "pos": nrm((NUM_TOKENS, EMBED)),
        "ln_f_g": jnp.ones((EMBED,), jnp.float32),
        "ln_f_b": jnp.zeros((EMBED,), jnp.float32),
        "head_w": nrm((EMBED, NUM_CLASSES)),
        "head_b": jnp.zeros((NUM_CLASSES,), jnp.float32),
        "blocks": [],
    }
    for _ in range(DEPTH):
        params["blocks"].append({
            "ln1_g": jnp.ones((EMBED,), jnp.float32),
            "ln1_b": jnp.zeros((EMBED,), jnp.float32),
            "qkv_w": nrm((EMBED, 3 * EMBED)),
            "qkv_b": jnp.zeros((3 * EMBED,), jnp.float32),
            "proj_w": nrm((EMBED, EMBED)),
            "proj_b": jnp.zeros((EMBED,), jnp.float32),
            "ln2_g": jnp.ones((EMBED,), jnp.float32),
            "ln2_b": jnp.zeros((EMBED,), jnp.float32),
            "fc1_w": nrm((EMBED, MLP_HIDDEN)),
            "fc1_b": jnp.zeros((MLP_HIDDEN,), jnp.float32),
            "fc2_w": nrm((MLP_HIDDEN, EMBED)),
            "fc2_b": jnp.zeros((EMBED,), jnp.float32),
        })
    return params


def _flatten_params(params):
    r1 = lambda a, n: a.reshape(1, n)
    flat = [params["patch_w"], r1(params["patch_b"], EMBED),
            params["cls"].reshape(1, EMBED), params["pos"].reshape(NUM_TOKENS, EMBED)]
    for blk in params["blocks"]:
        flat += [r1(blk["ln1_g"], EMBED), r1(blk["ln1_b"], EMBED),
                 blk["qkv_w"], r1(blk["qkv_b"], 3 * EMBED),
                 blk["proj_w"], r1(blk["proj_b"], EMBED),
                 r1(blk["ln2_g"], EMBED), r1(blk["ln2_b"], EMBED),
                 blk["fc1_w"], r1(blk["fc1_b"], MLP_HIDDEN),
                 blk["fc2_w"], r1(blk["fc2_b"], EMBED)]
    flat += [r1(params["ln_f_g"], EMBED), r1(params["ln_f_b"], EMBED),
             params["head_w"], r1(params["head_b"], NUM_CLASSES)]
    return flat


# ------------------------------- forward ------------------------------------
def forward(params, x_nchw, rng_key):
    """Training-mode forward: ViT -> logits -> Dropout(0.5)."""
    B, C, H, W = x_nchw.shape
    gh, gw = H // PATCH, W // PATCH

    # patch unfold: NCHW -> (B, nP, C*P*P); flatten order (c, ph, pw) matches
    # PyTorch Conv2d weight layout (D, C, P, P).
    xp = x_nchw.reshape(B, C, gh, PATCH, gw, PATCH)
    xp = xp.transpose(0, 2, 4, 1, 3, 5).reshape(B, gh * gw, C * PATCH * PATCH)

    # Dropout keep-mask generated with jax.random (TPU PRNG primitives have no
    # CPU-interpret lowering); applied inside the fused kernel.
    keep = jax.random.bernoulli(rng_key, 1.0 - DROP_P, (B, 1, NUM_CLASSES))
    mask = keep.astype(jnp.float32) * jnp.float32(1.0 / (1.0 - DROP_P))

    flat = _flatten_params(params)

    in_specs = [
        pl.BlockSpec((1, NUM_PATCHES, PATCH_DIM), lambda b: (b, 0, 0)),
        pl.BlockSpec((1, 1, NUM_CLASSES), lambda b: (b, 0, 0)),
    ] + [pl.BlockSpec(memory_space=VMEM)] * len(flat)   # weights fully VMEM-resident

    out = pl.pallas_call(
        _vit_kernel,
        out_shape=jax.ShapeDtypeStruct((B, 1, NUM_CLASSES), jnp.float32),
        grid=(B,),
        in_specs=in_specs,
        out_specs=pl.BlockSpec((1, 1, NUM_CLASSES), lambda b: (b, 0, 0)),
        compiler_params=pltpu.CompilerParams(
            dimension_semantics=("parallel",)),          # 2 TCs on v7x, no-op elsewhere
    )(xp, mask, *flat)
    return out.reshape(B, NUM_CLASSES)


if __name__ == "__main__":
    key = jax.random.PRNGKey(0)
    pkey, xkey, dkey = jax.random.split(key, 3)
    params = init_params(pkey)
    x = jax.random.normal(xkey, (2, IN_CH, IMG, IMG), jnp.float32)

    out = forward(params, x, dkey)
    jax.block_until_ready(out)
    assert out.shape == (2, NUM_CLASSES) and out.dtype == jnp.float32
    print("KERNEL_OK")
</pallas_src>

<mosaic_0001>
module attributes {stable_mosaic.version = 11 : i64} {
  func.func @_vit_kernel(%arg0: i32, %arg1: memref<1x16x48xf32, #tpu.memory_space<vmem>>, %arg2: memref<1x1x10xf32, #tpu.memory_space<vmem>>, %arg3: memref<48x32xf32, #tpu.memory_space<vmem>>, %arg4: memref<1x32xf32, #tpu.memory_space<vmem>>, %arg5: memref<1x32xf32, #tpu.memory_space<vmem>>, %arg6: memref<17x32xf32, #tpu.memory_space<vmem>>, %arg7: memref<1x32xf32, #tpu.memory_space<vmem>>, %arg8: memref<1x32xf32, #tpu.memory_space<vmem>>, %arg9: memref<32x96xf32, #tpu.memory_space<vmem>>, %arg10: memref<1x96xf32, #tpu.memory_space<vmem>>, %arg11: memref<32x32xf32, #tpu.memory_space<vmem>>, %arg12: memref<1x32xf32, #tpu.memory_space<vmem>>, %arg13: memref<1x32xf32, #tpu.memory_space<vmem>>, %arg14: memref<1x32xf32, #tpu.memory_space<vmem>>, %arg15: memref<32x128xf32, #tpu.memory_space<vmem>>, %arg16: memref<1x128xf32, #tpu.memory_space<vmem>>, %arg17: memref<128x32xf32, #tpu.memory_space<vmem>>, %arg18: memref<1x32xf32, #tpu.memory_space<vmem>>, %arg19: memref<1x32xf32, #tpu.memory_space<vmem>>, %arg20: memref<1x32xf32, #tpu.memory_space<vmem>>, %arg21: memref<32x96xf32, #tpu.memory_space<vmem>>, %arg22: memref<1x96xf32, #tpu.memory_space<vmem>>, %arg23: memref<32x32xf32, #tpu.memory_space<vmem>>, %arg24: memref<1x32xf32, #tpu.memory_space<vmem>>, %arg25: memref<1x32xf32, #tpu.memory_space<vmem>>, %arg26: memref<1x32xf32, #tpu.memory_space<vmem>>, %arg27: memref<32x128xf32, #tpu.memory_space<vmem>>, %arg28: memref<1x128xf32, #tpu.memory_space<vmem>>, %arg29: memref<128x32xf32, #tpu.memory_space<vmem>>, %arg30: memref<1x32xf32, #tpu.memory_space<vmem>>, %arg31: memref<1x32xf32, #tpu.memory_space<vmem>>, %arg32: memref<1x32xf32, #tpu.memory_space<vmem>>, %arg33: memref<32x10xf32, #tpu.memory_space<vmem>>, %arg34: memref<1x10xf32, #tpu.memory_space<vmem>>, %arg35: memref<1x1x10xf32, #tpu.memory_space<vmem>>) attributes {dimension_semantics = [#tpu.dimension_semantics<parallel>], iteration_bounds = array<i64: 2>, scalar_prefetch = 0 : i64, scratch_operands = 0 : i64, tpu.core_type = #tpu.core_type<tc>, window_params = [{transform_indices = @transform_0, window_bounds = array<i64: 1, 16, 48>}, {transform_indices = @transform_1, window_bounds = array<i64: 1, 1, 10>}, {pipeline_mode = #tpu.pipeline_mode<synchronous>, transform_indices = @transform_2, window_bounds = array<i64: 48, 32>}, {pipeline_mode = #tpu.pipeline_mode<synchronous>, transform_indices = @transform_3, window_bounds = array<i64: 1, 32>}, {pipeline_mode = #tpu.pipeline_mode<synchronous>, transform_indices = @transform_4, window_bounds = array<i64: 1, 32>}, {pipeline_mode = #tpu.pipeline_mode<synchronous>, transform_indices = @transform_5, window_bounds = array<i64: 17, 32>}, {pipeline_mode = #tpu.pipeline_mode<synchronous>, transform_indices = @transform_6, window_bounds = array<i64: 1, 32>}, {pipeline_mode = #tpu.pipeline_mode<synchronous>, transform_indices = @transform_7, window_bounds = array<i64: 1, 32>}, {pipeline_mode = #tpu.pipeline_mode<synchronous>, transform_indices = @transform_8, window_bounds = array<i64: 32, 96>}, {pipeline_mode = #tpu.pipeline_mode<synchronous>, transform_indices = @transform_9, window_bounds = array<i64: 1, 96>}, {pipeline_mode = #tpu.pipeline_mode<synchronous>, transform_indices = @transform_10, window_bounds = array<i64: 32, 32>}, {pipeline_mode = #tpu.pipeline_mode<synchronous>, transform_indices = @transform_11, window_bounds = array<i64: 1, 32>}, {pipeline_mode = #tpu.pipeline_mode<synchronous>, transform_indices = @transform_12, window_bounds = array<i64: 1, 32>}, {pipeline_mode = #tpu.pipeline_mode<synchronous>, transform_indices = @transform_13, window_bounds = array<i64: 1, 32>}, {pipeline_mode = #tpu.pipeline_mode<synchronous>, transform_indices = @transform_14, window_bounds = array<i64: 32, 128>}, {pipeline_mode = #tpu.pipeline_mode<synchronous>, transform_indices = @transform_15, window_bounds = array<i64: 1, 128>}, {pipeline_mode = #tpu.pipeline_mode<synchronous>, transform_indices = @transform_16, window_bounds = array<i64: 128, 32>}, {pipeline_mode = #tpu.pipeline_mode<synchronous>, transform_indices = @transform_17, window_bounds = array<i64: 1, 32>}, {pipeline_mode = #tpu.pipeline_mode<synchronous>, transform_indices = @transform_18, window_bounds = array<i64: 1, 32>}, {pipeline_mode = #tpu.pipeline_mode<synchronous>, transform_indices = @transform_19, window_bounds = array<i64: 1, 32>}, {pipeline_mode = #tpu.pipeline_mode<synchronous>, transform_indices = @transform_20, window_bounds = array<i64: 32, 96>}, {pipeline_mode = #tpu.pipeline_mode<synchronous>, transform_indices = @transform_21, window_bounds = array<i64: 1, 96>}, {pipeline_mode = #tpu.pipeline_mode<synchronous>, transform_indices = @transform_22, window_bounds = array<i64: 32, 32>}, {pipeline_mode = #tpu.pipeline_mode<synchronous>, transform_indices = @transform_23, window_bounds = array<i64: 1, 32>}, {pipeline_mode = #tpu.pipeline_mode<synchronous>, transform_indices = @transform_24, window_bounds = array<i64: 1, 32>}, {pipeline_mode = #tpu.pipeline_mode<synchronous>, transform_indices = @transform_25, window_bounds = array<i64: 1, 32>}, {pipeline_mode = #tpu.pipeline_mode<synchronous>, transform_indices = @transform_26, window_bounds = array<i64: 32, 128>}, {pipeline_mode = #tpu.pipeline_mode<synchronous>, transform_indices = @transform_27, window_bounds = array<i64: 1, 128>}, {pipeline_mode = #tpu.pipeline_mode<synchronous>, transform_indices = @transform_28, window_bounds = array<i64: 128, 32>}, {pipeline_mode = #tpu.pipeline_mode<synchronous>, transform_indices = @transform_29, window_bounds = array<i64: 1, 32>}, {pipeline_mode = #tpu.pipeline_mode<synchronous>, transform_indices = @transform_30, window_bounds = array<i64: 1, 32>}, {pipeline_mode = #tpu.pipeline_mode<synchronous>, transform_indices = @transform_31, window_bounds = array<i64: 1, 32>}, {pipeline_mode = #tpu.pipeline_mode<synchronous>, transform_indices = @transform_32, window_bounds = array<i64: 32, 10>}, {pipeline_mode = #tpu.pipeline_mode<synchronous>, transform_indices = @transform_33, window_bounds = array<i64: 1, 10>}, {transform_indices = @transform_34, window_bounds = array<i64: 1, 1, 10>}]} {
    %c0 = arith.constant 0 : index
    %c0_0 = arith.constant 0 : index
    %0 = vector.load %arg3[%c0, %c0_0] : memref<48x32xf32, #tpu.memory_space<vmem>>, vector<48x32xf32>
    %c0_1 = arith.constant 0 : index
    %c0_2 = arith.constant 0 : index
    %1 = vector.load %arg4[%c0_1, %c0_2] : memref<1x32xf32, #tpu.memory_space<vmem>>, vector<1x32xf32>
    %c0_3 = arith.constant 0 : index
    %c0_4 = arith.constant 0 : index
    %2 = vector.load %arg5[%c0_3, %c0_4] : memref<1x32xf32, #tpu.memory_space<vmem>>, vector<1x32xf32>
    %c0_5 = arith.constant 0 : index
    %c0_6 = arith.constant 0 : index
    %3 = vector.load %arg6[%c0_5, %c0_6] : memref<17x32xf32, #tpu.memory_space<vmem>>, vector<17x32xf32>
    %c0_7 = arith.constant 0 : index
    %c0_8 = arith.constant 0 : index
    %c0_9 = arith.constant 0 : index
    %4 = vector.load %arg1[%c0_7, %c0_8, %c0_9] : memref<1x16x48xf32, #tpu.memory_space<vmem>>, vector<1x16x48xf32>
    %5 = vector.shape_cast %4 : vector<1x16x48xf32> to vector<16x48xf32>
    %6 = arith.truncf %5 : vector<16x48xf32> to vector<16x48xbf16>
    %7 = arith.truncf %0 : vector<48x32xf32> to vector<48x32xbf16>
    %cst = arith.constant dense<0.000000e+00> : vector<16x32xf32>
    %8 = tpu.matmul %6, %7, %cst {dimension_numbers = #tpu.dot_dimension_numbers<[1], [0], [0], [1], [0, 0, 1, 1], [], []>} : vector<16x48xbf16>, vector<48x32xbf16>, vector<16x32xf32> -> vector<16x32xf32>
    %9 = vector.broadcast %1 : vector<1x32xf32> to vector<16x32xf32>
    %10 = arith.addf %8, %9 : vector<16x32xf32>
    %11 = tpu.concatenate %2, %10 in 0 : vector<1x32xf32>, vector<16x32xf32> -> vector<17x32xf32>
    %12 = arith.addf %11, %3 : vector<17x32xf32>
    %c0_10 = arith.constant 0 : index
    %c0_11 = arith.constant 0 : index
    %13 = vector.load %arg7[%c0_10, %c0_11] : memref<1x32xf32, #tpu.memory_space<vmem>>, vector<1x32xf32>
    %c0_12 = arith.constant 0 : index
    %c0_13 = arith.constant 0 : index
    %14 = vector.load %arg8[%c0_12, %c0_13] : memref<1x32xf32, #tpu.memory_space<vmem>>, vector<1x32xf32>
    %c0_14 = arith.constant 0 : index
    %c0_15 = arith.constant 0 : index
    %15 = vector.load %arg9[%c0_14, %c0_15] : memref<32x96xf32, #tpu.memory_space<vmem>>, vector<32x96xf32>
    %c0_16 = arith.constant 0 : index
    %c0_17 = arith.constant 0 : index
    %16 = vector.load %arg10[%c0_16, %c0_17] : memref<1x96xf32, #tpu.memory_space<vmem>>, vector<1x96xf32>
    %c0_18 = arith.constant 0 : index
    %c0_19 = arith.constant 0 : index
    %17 = vector.load %arg11[%c0_18, %c0_19] : memref<32x32xf32, #tpu.memory_space<vmem>>, vector<32x32xf32>
    %c0_20 = arith.constant 0 : index
    %c0_21 = arith.constant 0 : index
    %18 = vector.load %arg12[%c0_20, %c0_21] : memref<1x32xf32, #tpu.memory_space<vmem>>, vector<1x32xf32>
    %c0_22 = arith.constant 0 : index
    %c0_23 = arith.constant 0 : index
    %19 = vector.load %arg13[%c0_22, %c0_23] : memref<1x32xf32, #tpu.memory_space<vmem>>, vector<1x32xf32>
    %c0_24 = arith.constant 0 : index
    %c0_25 = arith.constant 0 : index
    %20 = vector.load %arg14[%c0_24, %c0_25] : memref<1x32xf32, #tpu.memory_space<vmem>>, vector<1x32xf32>
    %c0_26 = arith.constant 0 : index
    %c0_27 = arith.constant 0 : index
    %21 = vector.load %arg15[%c0_26, %c0_27] : memref<32x128xf32, #tpu.memory_space<vmem>>, vector<32x128xf32>
    %c0_28 = arith.constant 0 : index
    %c0_29 = arith.constant 0 : index
    %22 = vector.load %arg16[%c0_28, %c0_29] : memref<1x128xf32, #tpu.memory_space<vmem>>, vector<1x128xf32>
    %c0_30 = arith.constant 0 : index
    %c0_31 = arith.constant 0 : index
    %23 = vector.load %arg17[%c0_30, %c0_31] : memref<128x32xf32, #tpu.memory_space<vmem>>, vector<128x32xf32>
    %c0_32 = arith.constant 0 : index
    %c0_33 = arith.constant 0 : index
    %24 = vector.load %arg18[%c0_32, %c0_33] : memref<1x32xf32, #tpu.memory_space<vmem>>, vector<1x32xf32>
    %cst_34 = arith.constant dense<0.000000e+00> : vector<17xf32>
    %25 = vector.multi_reduction <add>, %12, %cst_34 [1] : vector<17x32xf32> to vector<17xf32>
    %26 = vector.shape_cast %25 : vector<17xf32> to vector<17x1xf32>
    %cst_35 = arith.constant 3.200000e+01 : f32
    %27 = vector.broadcast %cst_35 : f32 to vector<17x1xf32>
    %28 = arith.divf %26, %27 : vector<17x1xf32>
    %29 = vector.broadcast %28 : vector<17x1xf32> to vector<17x32xf32>
    %30 = arith.subf %12, %29 : vector<17x32xf32>
    %31 = arith.mulf %30, %30 : vector<17x32xf32>
    %cst_36 = arith.constant dense<0.000000e+00> : vector<17xf32>
    %32 = vector.multi_reduction <add>, %31, %cst_36 [1] : vector<17x32xf32> to vector<17xf32>
    %33 = vector.shape_cast %32 : vector<17xf32> to vector<17x1xf32>
    %cst_37 = arith.constant 3.200000e+01 : f32
    %34 = vector.broadcast %cst_37 : f32 to vector<17x1xf32>
    %35 = arith.divf %33, %34 : vector<17x1xf32>
    %cst_38 = arith.constant 9.99999997E-7 : f32
    %36 = vector.broadcast %cst_38 : f32 to vector<17x1xf32>
    %37 = arith.addf %35, %36 : vector<17x1xf32>
    %38 = math.rsqrt %37 : vector<17x1xf32>
    %39 = vector.broadcast %38 : vector<17x1xf32> to vector<17x32xf32>
    %40 = arith.mulf %30, %39 : vector<17x32xf32>
    %41 = vector.broadcast %13 : vector<1x32xf32> to vector<17x32xf32>
    %42 = arith.mulf %40, %41 : vector<17x32xf32>
    %43 = vector.broadcast %14 : vector<1x32xf32> to vector<17x32xf32>
    %44 = arith.addf %42, %43 : vector<17x32xf32>
    %45 = arith.truncf %44 : vector<17x32xf32> to vector<17x32xbf16>
    %46 = arith.truncf %15 : vector<32x96xf32> to vector<32x96xbf16>
    %cst_39 = arith.constant dense<0.000000e+00> : vector<17x96xf32>
    %47 = tpu.matmul %45, %46, %cst_39 {dimension_numbers = #tpu.dot_dimension_numbers<[1], [0], [0], [1], [0, 0, 1, 1], [], []>} : vector<17x32xbf16>, vector<32x96xbf16>, vector<17x96xf32> -> vector<17x96xf32>
    %48 = vector.broadcast %16 : vector<1x96xf32> to vector<17x96xf32>
    %49 = arith.addf %47, %48 : vector<17x96xf32>
    %cst_40 = arith.constant 0.000000e+00 : f32
    %50 = vector.broadcast %cst_40 : f32 to vector<17x32xf32>
    %51 = vector.extract_strided_slice %49 {offsets = [0, 0], sizes = [17, 8], strides = [1, 1]} : vector<17x96xf32> to vector<17x8xf32>
    %52 = vector.extract_strided_slice %49 {offsets = [0, 32], sizes = [17, 8], strides = [1, 1]} : vector<17x96xf32> to vector<17x8xf32>
    %53 = vector.extract_strided_slice %49 {offsets = [0, 64], sizes = [17, 8], strides = [1, 1]} : vector<17x96xf32> to vector<17x8xf32>
    %54 = arith.truncf %51 : vector<17x8xf32> to vector<17x8xbf16>
    %55 = arith.truncf %52 : vector<17x8xf32> to vector<17x8xbf16>
    %cst_41 = arith.constant dense<0.000000e+00> : vector<17x17xf32>
    %56 = tpu.matmul %54, %55, %cst_41 {dimension_numbers = #tpu.dot_dimension_numbers<[1], [1], [0], [0], [0, 0, 1, 0], [], []>} : vector<17x8xbf16>, vector<17x8xbf16>, vector<17x17xf32> -> vector<17x17xf32>
    %cst_42 = arith.constant 0.353553385 : f32
    %57 = vector.broadcast %cst_42 : f32 to vector<17x17xf32>
    %58 = arith.mulf %56, %57 : vector<17x17xf32>
    %cst_43 = arith.constant dense<0xFF800000> : vector<17xf32>
    %59 = vector.multi_reduction <maximumf>, %58, %cst_43 [1] : vector<17x17xf32> to vector<17xf32>
    %60 = vector.shape_cast %59 : vector<17xf32> to vector<17x1xf32>
    %61 = vector.broadcast %60 : vector<17x1xf32> to vector<17x17xf32>
    %62 = arith.subf %58, %61 : vector<17x17xf32>
    %63 = math.exp %62 : vector<17x17xf32>
    %cst_44 = arith.constant dense<0.000000e+00> : vector<17xf32>
    %64 = vector.multi_reduction <add>, %63, %cst_44 [1] : vector<17x17xf32> to vector<17xf32>
    %65 = vector.shape_cast %64 : vector<17xf32> to vector<17x1xf32>
    %66 = vector.broadcast %65 : vector<17x1xf32> to vector<17x17xf32>
    %67 = arith.divf %63, %66 : vector<17x17xf32>
    %68 = arith.truncf %67 : vector<17x17xf32> to vector<17x17xbf16>
    %69 = arith.truncf %53 : vector<17x8xf32> to vector<17x8xbf16>
    %cst_45 = arith.constant dense<0.000000e+00> : vector<17x8xf32>
    %70 = tpu.matmul %68, %69, %cst_45 {dimension_numbers = #tpu.dot_dimension_numbers<[1], [0], [0], [1], [0, 0, 1, 1], [], []>} : vector<17x17xbf16>, vector<17x8xbf16>, vector<17x8xf32> -> vector<17x8xf32>
    %71 = vector.extract_strided_slice %17 {offsets = [0, 0], sizes = [8, 32], strides = [1, 1]} : vector<32x32xf32> to vector<8x32xf32>
    %72 = arith.truncf %70 : vector<17x8xf32> to vector<17x8xbf16>
    %73 = arith.truncf %71 : vector<8x32xf32> to vector<8x32xbf16>
    %cst_46 = arith.constant dense<0.000000e+00> : vector<17x32xf32>
    %74 = tpu.matmul %72, %73, %cst_46 {dimension_numbers = #tpu.dot_dimension_numbers<[1], [0], [0], [1], [0, 0, 1, 1], [], []>} : vector<17x8xbf16>, vector<8x32xbf16>, vector<17x32xf32> -> vector<17x32xf32>
    %75 = arith.addf %50, %74 : vector<17x32xf32>
    %76 = vector.extract_strided_slice %49 {offsets = [0, 8], sizes = [17, 8], strides = [1, 1]} : vector<17x96xf32> to vector<17x8xf32>
    %77 = vector.extract_strided_slice %49 {offsets = [0, 40], sizes = [17, 8], strides = [1, 1]} : vector<17x96xf32> to vector<17x8xf32>
    %78 = vector.extract_strided_slice %49 {offsets = [0, 72], sizes = [17, 8], strides = [1, 1]} : vector<17x96xf32> to vector<17x8xf32>
    %79 = arith.truncf %76 : vector<17x8xf32> to vector<17x8xbf16>
    %80 = arith.truncf %77 : vector<17x8xf32> to vector<17x8xbf16>
    %cst_47 = arith.constant dense<0.000000e+00> : vector<17x17xf32>
    %81 = tpu.matmul %79, %80, %cst_47 {dimension_numbers = #tpu.dot_dimension_numbers<[1], [1], [0], [0], [0, 0, 1, 0], [], []>} : vector<17x8xbf16>, vector<17x8xbf16>, vector<17x17xf32> -> vector<17x17xf32>
    %cst_48 = arith.constant 0.353553385 : f32
    %82 = vector.broadcast %cst_48 : f32 to vector<17x17xf32>
    %83 = arith.mulf %81, %82 : vector<17x17xf32>
    %cst_49 = arith.constant dense<0xFF800000> : vector<17xf32>
    %84 = vector.multi_reduction <maximumf>, %83, %cst_49 [1] : vector<17x17xf32> to vector<17xf32>
    %85 = vector.shape_cast %84 : vector<17xf32> to vector<17x1xf32>
    %86 = vector.broadcast %85 : vector<17x1xf32> to vector<17x17xf32>
    %87 = arith.subf %83, %86 : vector<17x17xf32>
    %88 = math.exp %87 : vector<17x17xf32>
    %cst_50 = arith.constant dense<0.000000e+00> : vector<17xf32>
    %89 = vector.multi_reduction <add>, %88, %cst_50 [1] : vector<17x17xf32> to vector<17xf32>
    %90 = vector.shape_cast %89 : vector<17xf32> to vector<17x1xf32>
    %91 = vector.broadcast %90 : vector<17x1xf32> to vector<17x17xf32>
    %92 = arith.divf %88, %91 : vector<17x17xf32>
    %93 = arith.truncf %92 : vector<17x17xf32> to vector<17x17xbf16>
    %94 = arith.truncf %78 : vector<17x8xf32> to vector<17x8xbf16>
    %cst_51 = arith.constant dense<0.000000e+00> : vector<17x8xf32>
    %95 = tpu.matmul %93, %94, %cst_51 {dimension_numbers = #tpu.dot_dimension_numbers<[1], [0], [0], [1], [0, 0, 1, 1], [], []>} : vector<17x17xbf16>, vector<17x8xbf16>, vector<17x8xf32> -> vector<17x8xf32>
    %96 = vector.extract_strided_slice %17 {offsets = [8, 0], sizes = [8, 32], strides = [1, 1]} : vector<32x32xf32> to vector<8x32xf32>
    %97 = arith.truncf %95 : vector<17x8xf32> to vector<17x8xbf16>
    %98 = arith.truncf %96 : vector<8x32xf32> to vector<8x32xbf16>
    %cst_52 = arith.constant dense<0.000000e+00> : vector<17x32xf32>
    %99 = tpu.matmul %97, %98, %cst_52 {dimension_numbers = #tpu.dot_dimension_numbers<[1], [0], [0], [1], [0, 0, 1, 1], [], []>} : vector<17x8xbf16>, vector<8x32xbf16>, vector<17x32xf32> -> vector<17x32xf32>
    %100 = arith.addf %75, %99 : vector<17x32xf32>
    %101 = vector.extract_strided_slice %49 {offsets = [0, 16], sizes = [17, 8], strides = [1, 1]} : vector<17x96xf32> to vector<17x8xf32>
    %102 = vector.extract_strided_slice %49 {offsets = [0, 48], sizes = [17, 8], strides = [1, 1]} : vector<17x96xf32> to vector<17x8xf32>
    %103 = vector.extract_strided_slice %49 {offsets = [0, 80], sizes = [17, 8], strides = [1, 1]} : vector<17x96xf32> to vector<17x8xf32>
    %104 = arith.truncf %101 : vector<17x8xf32> to vector<17x8xbf16>
    %105 = arith.truncf %102 : vector<17x8xf32> to vector<17x8xbf16>
    %cst_53 = arith.constant dense<0.000000e+00> : vector<17x17xf32>
    %106 = tpu.matmul %104, %105, %cst_53 {dimension_numbers = #tpu.dot_dimension_numbers<[1], [1], [0], [0], [0, 0, 1, 0], [], []>} : vector<17x8xbf16>, vector<17x8xbf16>, vector<17x17xf32> -> vector<17x17xf32>
    %cst_54 = arith.constant 0.353553385 : f32
    %107 = vector.broadcast %cst_54 : f32 to vector<17x17xf32>
    %108 = arith.mulf %106, %107 : vector<17x17xf32>
    %cst_55 = arith.constant dense<0xFF800000> : vector<17xf32>
    %109 = vector.multi_reduction <maximumf>, %108, %cst_55 [1] : vector<17x17xf32> to vector<17xf32>
    %110 = vector.shape_cast %109 : vector<17xf32> to vector<17x1xf32>
    %111 = vector.broadcast %110 : vector<17x1xf32> to vector<17x17xf32>
    %112 = arith.subf %108, %111 : vector<17x17xf32>
    %113 = math.exp %112 : vector<17x17xf32>
    %cst_56 = arith.constant dense<0.000000e+00> : vector<17xf32>
    %114 = vector.multi_reduction <add>, %113, %cst_56 [1] : vector<17x17xf32> to vector<17xf32>
    %115 = vector.shape_cast %114 : vector<17xf32> to vector<17x1xf32>
    %116 = vector.broadcast %115 : vector<17x1xf32> to vector<17x17xf32>
    %117 = arith.divf %113, %116 : vector<17x17xf32>
    %118 = arith.truncf %117 : vector<17x17xf32> to vector<17x17xbf16>
    %119 = arith.truncf %103 : vector<17x8xf32> to vector<17x8xbf16>
    %cst_57 = arith.constant dense<0.000000e+00> : vector<17x8xf32>
    %120 = tpu.matmul %118, %119, %cst_57 {dimension_numbers = #tpu.dot_dimension_numbers<[1], [0], [0], [1], [0, 0, 1, 1], [], []>} : vector<17x17xbf16>, vector<17x8xbf16>, vector<17x8xf32> -> vector<17x8xf32>
    %121 = vector.extract_strided_slice %17 {offsets = [16, 0], sizes = [8, 32], strides = [1, 1]} : vector<32x32xf32> to vector<8x32xf32>
    %122 = arith.truncf %120 : vector<17x8xf32> to vector<17x8xbf16>
    %123 = arith.truncf %121 : vector<8x32xf32> to vector<8x32xbf16>
    %cst_58 = arith.constant dense<0.000000e+00> : vector<17x32xf32>
    %124 = tpu.matmul %122, %123, %cst_58 {dimension_numbers = #tpu.dot_dimension_numbers<[1], [0], [0], [1], [0, 0, 1, 1], [], []>} : vector<17x8xbf16>, vector<8x32xbf16>, vector<17x32xf32> -> vector<17x32xf32>
    %125 = arith.addf %100, %124 : vector<17x32xf32>
    %126 = vector.extract_strided_slice %49 {offsets = [0, 24], sizes = [17, 8], strides = [1, 1]} : vector<17x96xf32> to vector<17x8xf32>
    %127 = vector.extract_strided_slice %49 {offsets = [0, 56], sizes = [17, 8], strides = [1, 1]} : vector<17x96xf32> to vector<17x8xf32>
    %128 = vector.extract_strided_slice %49 {offsets = [0, 88], sizes = [17, 8], strides = [1, 1]} : vector<17x96xf32> to vector<17x8xf32>
    %129 = arith.truncf %126 : vector<17x8xf32> to vector<17x8xbf16>
    %130 = arith.truncf %127 : vector<17x8xf32> to vector<17x8xbf16>
    %cst_59 = arith.constant dense<0.000000e+00> : vector<17x17xf32>
    %131 = tpu.matmul %129, %130, %cst_59 {dimension_numbers = #tpu.dot_dimension_numbers<[1], [1], [0], [0], [0, 0, 1, 0], [], []>} : vector<17x8xbf16>, vector<17x8xbf16>, vector<17x17xf32> -> vector<17x17xf32>
    %cst_60 = arith.constant 0.353553385 : f32
    %132 = vector.broadcast %cst_60 : f32 to vector<17x17xf32>
    %133 = arith.mulf %131, %132 : vector<17x17xf32>
    %cst_61 = arith.constant dense<0xFF800000> : vector<17xf32>
    %134 = vector.multi_reduction <maximumf>, %133, %cst_61 [1] : vector<17x17xf32> to vector<17xf32>
    %135 = vector.shape_cast %134 : vector<17xf32> to vector<17x1xf32>
    %136 = vector.broadcast %135 : vector<17x1xf32> to vector<17x17xf32>
    %137 = arith.subf %133, %136 : vector<17x17xf32>
    %138 = math.exp %137 : vector<17x17xf32>
    %cst_62 = arith.constant dense<0.000000e+00> : vector<17xf32>
    %139 = vector.multi_reduction <add>, %138, %cst_62 [1] : vector<17x17xf32> to vector<17xf32>
    %140 = vector.shape_cast %139 : vector<17xf32> to vector<17x1xf32>
    %141 = vector.broadcast %140 : vector<17x1xf32> to vector<17x17xf32>
    %142 = arith.divf %138, %141 : vector<17x17xf32>
    %143 = arith.truncf %142 : vector<17x17xf32> to vector<17x17xbf16>
    %144 = arith.truncf %128 : vector<17x8xf32> to vector<17x8xbf16>
    %cst_63 = arith.constant dense<0.000000e+00> : vector<17x8xf32>
    %145 = tpu.matmul %143, %144, %cst_63 {dimension_numbers = #tpu.dot_dimension_numbers<[1], [0], [0], [1], [0, 0, 1, 1], [], []>} : vector<17x17xbf16>, vector<17x8xbf16>, vector<17x8xf32> -> vector<17x8xf32>
    %146 = vector.extract_strided_slice %17 {offsets = [24, 0], sizes = [8, 32], strides = [1, 1]} : vector<32x32xf32> to vector<8x32xf32>
    %147 = arith.truncf %145 : vector<17x8xf32> to vector<17x8xbf16>
    %148 = arith.truncf %146 : vector<8x32xf32> to vector<8x32xbf16>
    %cst_64 = arith.constant dense<0.000000e+00> : vector<17x32xf32>
    %149 = tpu.matmul %147, %148, %cst_64 {dimension_numbers = #tpu.dot_dimension_numbers<[1], [0], [0], [1], [0, 0, 1, 1], [], []>} : vector<17x8xbf16>, vector<8x32xbf16>, vector<17x32xf32> -> vector<17x32xf32>
    %150 = arith.addf %125, %149 : vector<17x32xf32>
    %151 = arith.addf %12, %150 : vector<17x32xf32>
    %152 = vector.broadcast %18 : vector<1x32xf32> to vector<17x32xf32>
    %153 = arith.addf %151, %152 : vector<17x32xf32>
    %cst_65 = arith.constant dense<0.000000e+00> : vector<17xf32>
    %154 = vector.multi_reduction <add>, %153, %cst_65 [1] : vector<17x32xf32> to vector<17xf32>
    %155 = vector.shape_cast %154 : vector<17xf32> to vector<17x1xf32>
    %cst_66 = arith.constant 3.200000e+01 : f32
    %156 = vector.broadcast %cst_66 : f32 to vector<17x1xf32>
    %157 = arith.divf %155, %156 : vector<17x1xf32>
    %158 = vector.broadcast %157 : vector<17x1xf32> to vector<17x32xf32>
    %159 = arith.subf %153, %158 : vector<17x32xf32>
    %160 = arith.mulf %159, %159 : vector<17x32xf32>
    %cst_67 = arith.constant dense<0.000000e+00> : vector<17xf32>
    %161 = vector.multi_reduction <add>, %160, %cst_67 [1] : vector<17x32xf32> to vector<17xf32>
    %162 = vector.shape_cast %161 : vector<17xf32> to vector<17x1xf32>
    %cst_68 = arith.constant 3.200000e+01 : f32
    %163 = vector.broadcast %cst_68 : f32 to vector<17x1xf32>
    %164 = arith.divf %162, %163 : vector<17x1xf32>
    %cst_69 = arith.constant 9.99999997E-7 : f32
    %165 = vector.broadcast %cst_69 : f32 to vector<17x1xf32>
    %166 = arith.addf %164, %165 : vector<17x1xf32>
    %167 = math.rsqrt %166 : vector<17x1xf32>
    %168 = vector.broadcast %167 : vector<17x1xf32> to vector<17x32xf32>
    %169 = arith.mulf %159, %168 : vector<17x32xf32>
    %170 = vector.broadcast %19 : vector<1x32xf32> to vector<17x32xf32>
    %171 = arith.mulf %169, %170 : vector<17x32xf32>
    %172 = vector.broadcast %20 : vector<1x32xf32> to vector<17x32xf32>
    %173 = arith.addf %171, %172 : vector<17x32xf32>
    %174 = arith.truncf %173 : vector<17x32xf32> to vector<17x32xbf16>
    %175 = arith.truncf %21 : vector<32x128xf32> to vector<32x128xbf16>
    %cst_70 = arith.constant dense<0.000000e+00> : vector<17x128xf32>
    %176 = tpu.matmul %174, %175, %cst_70 {dimension_numbers = #tpu.dot_dimension_numbers<[1], [0], [0], [1], [0, 0, 1, 1], [], []>} : vector<17x32xbf16>, vector<32x128xbf16>, vector<17x128xf32> -> vector<17x128xf32>
    %177 = vector.broadcast %22 : vector<1x128xf32> to vector<17x128xf32>
    %178 = arith.addf %176, %177 : vector<17x128xf32>
    %cst_71 = arith.constant 5.000000e-01 : f32
    %179 = vector.broadcast %cst_71 : f32 to vector<17x128xf32>
    %180 = arith.mulf %179, %178 : vector<17x128xf32>
    %cst_72 = arith.constant 0.707106769 : f32
    %181 = vector.broadcast %cst_72 : f32 to vector<17x128xf32>
    %182 = arith.mulf %178, %181 : vector<17x128xf32>
    %cst_73 = arith.constant 0.000000e+00 : f32
    %183 = vector.broadcast %cst_73 : f32 to vector<17x128xf32>
    %184 = arith.cmpf oge, %182, %183 : vector<17x128xf32>
    %cst_74 = arith.constant 1.000000e+00 : f32
    %cst_75 = arith.constant -1.000000e+00 : f32
    %185 = vector.broadcast %cst_74 : f32 to vector<17x128xf32>
    %186 = vector.broadcast %cst_75 : f32 to vector<17x128xf32>
    %187 = arith.select %184, %185, %186 : vector<17x128xi1>, vector<17x128xf32>
    %188 = math.absf %182 : vector<17x128xf32>
    %cst_76 = arith.constant 0.327591091 : f32
    %189 = vector.broadcast %cst_76 : f32 to vector<17x128xf32>
    %190 = arith.mulf %189, %188 : vector<17x128xf32>
    %cst_77 = arith.constant 1.000000e+00 : f32
    %191 = vector.broadcast %cst_77 : f32 to vector<17x128xf32>
    %192 = arith.addf %191, %190 : vector<17x128xf32>
    %cst_78 = arith.constant 1.000000e+00 : f32
    %193 = vector.broadcast %cst_78 : f32 to vector<17x128xf32>
    %194 = arith.divf %193, %192 : vector<17x128xf32>
    %cst_79 = arith.constant 1.06140542 : f32
    %195 = vector.broadcast %cst_79 : f32 to vector<17x128xf32>
    %196 = arith.mulf %195, %194 : vector<17x128xf32>
    %cst_80 = arith.constant -1.45315206 : f32
    %197 = vector.broadcast %cst_80 : f32 to vector<17x128xf32>
    %198 = arith.addf %196, %197 : vector<17x128xf32>
    %199 = arith.mulf %198, %194 : vector<17x128xf32>
    %cst_81 = arith.constant 1.42141378 : f32
    %200 = vector.broadcast %cst_81 : f32 to vector<17x128xf32>
    %201 = arith.addf %199, %200 : vector<17x128xf32>
    %202 = arith.mulf %201, %194 : vector<17x128xf32>
    %cst_82 = arith.constant -0.284496725 : f32
    %203 = vector.broadcast %cst_82 : f32 to vector<17x128xf32>
    %204 = arith.addf %202, %203 : vector<17x128xf32>
    %205 = arith.mulf %204, %194 : vector<17x128xf32>
    %cst_83 = arith.constant 0.254829586 : f32
    %206 = vector.broadcast %cst_83 : f32 to vector<17x128xf32>
    %207 = arith.addf %205, %206 : vector<17x128xf32>
    %208 = arith.mulf %207, %194 : vector<17x128xf32>
    %cst_84 = arith.constant 0.000000e+00 : f32
    %209 = vector.broadcast %cst_84 : f32 to vector<17x128xf32>
    %210 = arith.subf %209, %188 : vector<17x128xf32>
    %211 = arith.mulf %210, %188 : vector<17x128xf32>
    %212 = math.exp %211 : vector<17x128xf32>
    %213 = arith.mulf %208, %212 : vector<17x128xf32>
    %cst_85 = arith.constant 1.000000e+00 : f32
    %214 = vector.broadcast %cst_85 : f32 to vector<17x128xf32>
    %215 = arith.subf %214, %213 : vector<17x128xf32>
    %216 = arith.mulf %187, %215 : vector<17x128xf32>
    %cst_86 = arith.constant 1.000000e+00 : f32
    %217 = vector.broadcast %cst_86 : f32 to vector<17x128xf32>
    %218 = arith.addf %217, %216 : vector<17x128xf32>
    %219 = arith.mulf %180, %218 : vector<17x128xf32>
    %220 = arith.truncf %219 : vector<17x128xf32> to vector<17x128xbf16>
    %221 = arith.truncf %23 : vector<128x32xf32> to vector<128x32xbf16>
    %cst_87 = arith.constant dense<0.000000e+00> : vector<17x32xf32>
    %222 = tpu.matmul %220, %221, %cst_87 {dimension_numbers = #tpu.dot_dimension_numbers<[1], [0], [0], [1], [0, 0, 1, 1], [], []>} : vector<17x128xbf16>, vector<128x32xbf16>, vector<17x32xf32> -> vector<17x32xf32>
    %223 = arith.addf %153, %222 : vector<17x32xf32>
    %224 = vector.broadcast %24 : vector<1x32xf32> to vector<17x32xf32>
    %225 = arith.addf %223, %224 : vector<17x32xf32>
    %c0_88 = arith.constant 0 : index
    %c0_89 = arith.constant 0 : index
    %226 = vector.load %arg19[%c0_88, %c0_89] : memref<1x32xf32, #tpu.memory_space<vmem>>, vector<1x32xf32>
    %c0_90 = arith.constant 0 : index
    %c0_91 = arith.constant 0 : index
    %227 = vector.load %arg20[%c0_90, %c0_91] : memref<1x32xf32, #tpu.memory_space<vmem>>, vector<1x32xf32>
    %c0_92 = arith.constant 0 : index
    %c0_93 = arith.constant 0 : index
    %228 = vector.load %arg21[%c0_92, %c0_93] : memref<32x96xf32, #tpu.memory_space<vmem>>, vector<32x96xf32>
    %c0_94 = arith.constant 0 : index
    %c0_95 = arith.constant 0 : index
    %229 = vector.load %arg22[%c0_94, %c0_95] : memref<1x96xf32, #tpu.memory_space<vmem>>, vector<1x96xf32>
    %c0_96 = arith.constant 0 : index
    %c0_97 = arith.constant 0 : index
    %230 = vector.load %arg23[%c0_96, %c0_97] : memref<32x32xf32, #tpu.memory_space<vmem>>, vector<32x32xf32>
    %c0_98 = arith.constant 0 : index
    %c0_99 = arith.constant 0 : index
    %231 = vector.load %arg24[%c0_98, %c0_99] : memref<1x32xf32, #tpu.memory_space<vmem>>, vector<1x32xf32>
    %c0_100 = arith.constant 0 : index
    %c0_101 = arith.constant 0 : index
    %232 = vector.load %arg25[%c0_100, %c0_101] : memref<1x32xf32, #tpu.memory_space<vmem>>, vector<1x32xf32>
    %c0_102 = arith.constant 0 : index
    %c0_103 = arith.constant 0 : index
    %233 = vector.load %arg26[%c0_102, %c0_103] : memref<1x32xf32, #tpu.memory_space<vmem>>, vector<1x32xf32>
    %c0_104 = arith.constant 0 : index
    %c0_105 = arith.constant 0 : index
    %234 = vector.load %arg27[%c0_104, %c0_105] : memref<32x128xf32, #tpu.memory_space<vmem>>, vector<32x128xf32>
    %c0_106 = arith.constant 0 : index
    %c0_107 = arith.constant 0 : index
    %235 = vector.load %arg28[%c0_106, %c0_107] : memref<1x128xf32, #tpu.memory_space<vmem>>, vector<1x128xf32>
    %c0_108 = arith.constant 0 : index
    %c0_109 = arith.constant 0 : index
    %236 = vector.load %arg29[%c0_108, %c0_109] : memref<128x32xf32, #tpu.memory_space<vmem>>, vector<128x32xf32>
    %c0_110 = arith.constant 0 : index
    %c0_111 = arith.constant 0 : index
    %237 = vector.load %arg30[%c0_110, %c0_111] : memref<1x32xf32, #tpu.memory_space<vmem>>, vector<1x32xf32>
    %cst_112 = arith.constant dense<0.000000e+00> : vector<17xf32>
    %238 = vector.multi_reduction <add>, %225, %cst_112 [1] : vector<17x32xf32> to vector<17xf32>
    %239 = vector.shape_cast %238 : vector<17xf32> to vector<17x1xf32>
    %cst_113 = arith.constant 3.200000e+01 : f32
    %240 = vector.broadcast %cst_113 : f32 to vector<17x1xf32>
    %241 = arith.divf %239, %240 : vector<17x1xf32>
    %242 = vector.broadcast %241 : vector<17x1xf32> to vector<17x32xf32>
    %243 = arith.subf %225, %242 : vector<17x32xf32>
    %244 = arith.mulf %243, %243 : vector<17x32xf32>
    %cst_114 = arith.constant dense<0.000000e+00> : vector<17xf32>
    %245 = vector.multi_reduction <add>, %244, %cst_114 [1] : vector<17x32xf32> to vector<17xf32>
    %246 = vector.shape_cast %245 : vector<17xf32> to vector<17x1xf32>
    %cst_115 = arith.constant 3.200000e+01 : f32
    %247 = vector.broadcast %cst_115 : f32 to vector<17x1xf32>
    %248 = arith.divf %246, %247 : vector<17x1xf32>
    %cst_116 = arith.constant 9.99999997E-7 : f32
    %249 = vector.broadcast %cst_116 : f32 to vector<17x1xf32>
    %250 = arith.addf %248, %249 : vector<17x1xf32>
    %251 = math.rsqrt %250 : vector<17x1xf32>
    %252 = vector.broadcast %251 : vector<17x1xf32> to vector<17x32xf32>
    %253 = arith.mulf %243, %252 : vector<17x32xf32>
    %254 = vector.broadcast %226 : vector<1x32xf32> to vector<17x32xf32>
    %255 = arith.mulf %253, %254 : vector<17x32xf32>
    %256 = vector.broadcast %227 : vector<1x32xf32> to vector<17x32xf32>
    %257 = arith.addf %255, %256 : vector<17x32xf32>
    %258 = arith.truncf %257 : vector<17x32xf32> to vector<17x32xbf16>
    %259 = arith.truncf %228 : vector<32x96xf32> to vector<32x96xbf16>
    %cst_117 = arith.constant dense<0.000000e+00> : vector<17x96xf32>
    %260 = tpu.matmul %258, %259, %cst_117 {dimension_numbers = #tpu.dot_dimension_numbers<[1], [0], [0], [1], [0, 0, 1, 1], [], []>} : vector<17x32xbf16>, vector<32x96xbf16>, vector<17x96xf32> -> vector<17x96xf32>
    %261 = vector.broadcast %229 : vector<1x96xf32> to vector<17x96xf32>
    %262 = arith.addf %260, %261 : vector<17x96xf32>
    %cst_118 = arith.constant 0.000000e+00 : f32
    %263 = vector.broadcast %cst_118 : f32 to vector<17x32xf32>
    %264 = vector.extract_strided_slice %262 {offsets = [0, 0], sizes = [17, 8], strides = [1, 1]} : vector<17x96xf32> to vector<17x8xf32>
    %265 = vector.extract_strided_slice %262 {offsets = [0, 32], sizes = [17, 8], strides = [1, 1]} : vector<17x96xf32> to vector<17x8xf32>
    %266 = vector.extract_strided_slice %262 {offsets = [0, 64], sizes = [17, 8], strides = [1, 1]} : vector<17x96xf32> to vector<17x8xf32>
    %267 = arith.truncf %264 : vector<17x8xf32> to vector<17x8xbf16>
    %268 = arith.truncf %265 : vector<17x8xf32> to vector<17x8xbf16>
    %cst_119 = arith.constant dense<0.000000e+00> : vector<17x17xf32>
    %269 = tpu.matmul %267, %268, %cst_119 {dimension_numbers = #tpu.dot_dimension_numbers<[1], [1], [0], [0], [0, 0, 1, 0], [], []>} : vector<17x8xbf16>, vector<17x8xbf16>, vector<17x17xf32> -> vector<17x17xf32>
    %cst_120 = arith.constant 0.353553385 : f32
    %270 = vector.broadcast %cst_120 : f32 to vector<17x17xf32>
    %271 = arith.mulf %269, %270 : vector<17x17xf32>
    %cst_121 = arith.constant dense<0xFF800000> : vector<17xf32>
    %272 = vector.multi_reduction <maximumf>, %271, %cst_121 [1] : vector<17x17xf32> to vector<17xf32>
    %273 = vector.shape_cast %272 : vector<17xf32> to vector<17x1xf32>
    %274 = vector.broadcast %273 : vector<17x1xf32> to vector<17x17xf32>
    %275 = arith.subf %271, %274 : vector<17x17xf32>
    %276 = math.exp %275 : vector<17x17xf32>
    %cst_122 = arith.constant dense<0.000000e+00> : vector<17xf32>
    %277 = vector.multi_reduction <add>, %276, %cst_122 [1] : vector<17x17xf32> to vector<17xf32>
    %278 = vector.shape_cast %277 : vector<17xf32> to vector<17x1xf32>
    %279 = vector.broadcast %278 : vector<17x1xf32> to vector<17x17xf32>
    %280 = arith.divf %276, %279 : vector<17x17xf32>
    %281 = arith.truncf %280 : vector<17x17xf32> to vector<17x17xbf16>
    %282 = arith.truncf %266 : vector<17x8xf32> to vector<17x8xbf16>
    %cst_123 = arith.constant dense<0.000000e+00> : vector<17x8xf32>
    %283 = tpu.matmul %281, %282, %cst_123 {dimension_numbers = #tpu.dot_dimension_numbers<[1], [0], [0], [1], [0, 0, 1, 1], [], []>} : vector<17x17xbf16>, vector<17x8xbf16>, vector<17x8xf32> -> vector<17x8xf32>
    %284 = vector.extract_strided_slice %230 {offsets = [0, 0], sizes = [8, 32], strides = [1, 1]} : vector<32x32xf32> to vector<8x32xf32>
    %285 = arith.truncf %283 : vector<17x8xf32> to vector<17x8xbf16>
    %286 = arith.truncf %284 : vector<8x32xf32> to vector<8x32xbf16>
    %cst_124 = arith.constant dense<0.000000e+00> : vector<17x32xf32>
    %287 = tpu.matmul %285, %286, %cst_124 {dimension_numbers = #tpu.dot_dimension_numbers<[1], [0], [0], [1], [0, 0, 1, 1], [], []>} : vector<17x8xbf16>, vector<8x32xbf16>, vector<17x32xf32> -> vector<17x32xf32>
    %288 = arith.addf %263, %287 : vector<17x32xf32>
    %289 = vector.extract_strided_slice %262 {offsets = [0, 8], sizes = [17, 8], strides = [1, 1]} : vector<17x96xf32> to vector<17x8xf32>
    %290 = vector.extract_strided_slice %262 {offsets = [0, 40], sizes = [17, 8], strides = [1, 1]} : vector<17x96xf32> to vector<17x8xf32>
    %291 = vector.extract_strided_slice %262 {offsets = [0, 72], sizes = [17, 8], strides = [1, 1]} : vector<17x96xf32> to vector<17x8xf32>
    %292 = arith.truncf %289 : vector<17x8xf32> to vector<17x8xbf16>
    %293 = arith.truncf %290 : vector<17x8xf32> to vector<17x8xbf16>
    %cst_125 = arith.constant dense<0.000000e+00> : vector<17x17xf32>
    %294 = tpu.matmul %292, %293, %cst_125 {dimension_numbers = #tpu.dot_dimension_numbers<[1], [1], [0], [0], [0, 0, 1, 0], [], []>} : vector<17x8xbf16>, vector<17x8xbf16>, vector<17x17xf32> -> vector<17x17xf32>
    %cst_126 = arith.constant 0.353553385 : f32
    %295 = vector.broadcast %cst_126 : f32 to vector<17x17xf32>
    %296 = arith.mulf %294, %295 : vector<17x17xf32>
    %cst_127 = arith.constant dense<0xFF800000> : vector<17xf32>
    %297 = vector.multi_reduction <maximumf>, %296, %cst_127 [1] : vector<17x17xf32> to vector<17xf32>
    %298 = vector.shape_cast %297 : vector<17xf32> to vector<17x1xf32>
    %299 = vector.broadcast %298 : vector<17x1xf32> to vector<17x17xf32>
    %300 = arith.subf %296, %299 : vector<17x17xf32>
    %301 = math.exp %300 : vector<17x17xf32>
    %cst_128 = arith.constant dense<0.000000e+00> : vector<17xf32>
    %302 = vector.multi_reduction <add>, %301, %cst_128 [1] : vector<17x17xf32> to vector<17xf32>
    %303 = vector.shape_cast %302 : vector<17xf32> to vector<17x1xf32>
    %304 = vector.broadcast %303 : vector<17x1xf32> to vector<17x17xf32>
    %305 = arith.divf %301, %304 : vector<17x17xf32>
    %306 = arith.truncf %305 : vector<17x17xf32> to vector<17x17xbf16>
    %307 = arith.truncf %291 : vector<17x8xf32> to vector<17x8xbf16>
    %cst_129 = arith.constant dense<0.000000e+00> : vector<17x8xf32>
    %308 = tpu.matmul %306, %307, %cst_129 {dimension_numbers = #tpu.dot_dimension_numbers<[1], [0], [0], [1], [0, 0, 1, 1], [], []>} : vector<17x17xbf16>, vector<17x8xbf16>, vector<17x8xf32> -> vector<17x8xf32>
    %309 = vector.extract_strided_slice %230 {offsets = [8, 0], sizes = [8, 32], strides = [1, 1]} : vector<32x32xf32> to vector<8x32xf32>
    %310 = arith.truncf %308 : vector<17x8xf32> to vector<17x8xbf16>
    %311 = arith.truncf %309 : vector<8x32xf32> to vector<8x32xbf16>
    %cst_130 = arith.constant dense<0.000000e+00> : vector<17x32xf32>
    %312 = tpu.matmul %310, %311, %cst_130 {dimension_numbers = #tpu.dot_dimension_numbers<[1], [0], [0], [1], [0, 0, 1, 1], [], []>} : vector<17x8xbf16>, vector<8x32xbf16>, vector<17x32xf32> -> vector<17x32xf32>
    %313 = arith.addf %288, %312 : vector<17x32xf32>
    %314 = vector.extract_strided_slice %262 {offsets = [0, 16], sizes = [17, 8], strides = [1, 1]} : vector<17x96xf32> to vector<17x8xf32>
    %315 = vector.extract_strided_slice %262 {offsets = [0, 48], sizes = [17, 8], strides = [1, 1]} : vector<17x96xf32> to vector<17x8xf32>
    %316 = vector.extract_strided_slice %262 {offsets = [0, 80], sizes = [17, 8], strides = [1, 1]} : vector<17x96xf32> to vector<17x8xf32>
    %317 = arith.truncf %314 : vector<17x8xf32> to vector<17x8xbf16>
    %318 = arith.truncf %315 : vector<17x8xf32> to vector<17x8xbf16>
    %cst_131 = arith.constant dense<0.000000e+00> : vector<17x17xf32>
    %319 = tpu.matmul %317, %318, %cst_131 {dimension_numbers = #tpu.dot_dimension_numbers<[1], [1], [0], [0], [0, 0, 1, 0], [], []>} : vector<17x8xbf16>, vector<17x8xbf16>, vector<17x17xf32> -> vector<17x17xf32>
    %cst_132 = arith.constant 0.353553385 : f32
    %320 = vector.broadcast %cst_132 : f32 to vector<17x17xf32>
    %321 = arith.mulf %319, %320 : vector<17x17xf32>
    %cst_133 = arith.constant dense<0xFF800000> : vector<17xf32>
    %322 = vector.multi_reduction <maximumf>, %321, %cst_133 [1] : vector<17x17xf32> to vector<17xf32>
    %323 = vector.shape_cast %322 : vector<17xf32> to vector<17x1xf32>
    %324 = vector.broadcast %323 : vector<17x1xf32> to vector<17x17xf32>
    %325 = arith.subf %321, %324 : vector<17x17xf32>
    %326 = math.exp %325 : vector<17x17xf32>
    %cst_134 = arith.constant dense<0.000000e+00> : vector<17xf32>
    %327 = vector.multi_reduction <add>, %326, %cst_134 [1] : vector<17x17xf32> to vector<17xf32>
    %328 = vector.shape_cast %327 : vector<17xf32> to vector<17x1xf32>
    %329 = vector.broadcast %328 : vector<17x1xf32> to vector<17x17xf32>
    %330 = arith.divf %326, %329 : vector<17x17xf32>
    %331 = arith.truncf %330 : vector<17x17xf32> to vector<17x17xbf16>
    %332 = arith.truncf %316 : vector<17x8xf32> to vector<17x8xbf16>
    %cst_135 = arith.constant dense<0.000000e+00> : vector<17x8xf32>
    %333 = tpu.matmul %331, %332, %cst_135 {dimension_numbers = #tpu.dot_dimension_numbers<[1], [0], [0], [1], [0, 0, 1, 1], [], []>} : vector<17x17xbf16>, vector<17x8xbf16>, vector<17x8xf32> -> vector<17x8xf32>
    %334 = vector.extract_strided_slice %230 {offsets = [16, 0], sizes = [8, 32], strides = [1, 1]} : vector<32x32xf32> to vector<8x32xf32>
    %335 = arith.truncf %333 : vector<17x8xf32> to vector<17x8xbf16>
    %336 = arith.truncf %334 : vector<8x32xf32> to vector<8x32xbf16>
    %cst_136 = arith.constant dense<0.000000e+00> : vector<17x32xf32>
    %337 = tpu.matmul %335, %336, %cst_136 {dimension_numbers = #tpu.dot_dimension_numbers<[1], [0], [0], [1], [0, 0, 1, 1], [], []>} : vector<17x8xbf16>, vector<8x32xbf16>, vector<17x32xf32> -> vector<17x32xf32>
    %338 = arith.addf %313, %337 : vector<17x32xf32>
    %339 = vector.extract_strided_slice %262 {offsets = [0, 24], sizes = [17, 8], strides = [1, 1]} : vector<17x96xf32> to vector<17x8xf32>
    %340 = vector.extract_strided_slice %262 {offsets = [0, 56], sizes = [17, 8], strides = [1, 1]} : vector<17x96xf32> to vector<17x8xf32>
    %341 = vector.extract_strided_slice %262 {offsets = [0, 88], sizes = [17, 8], strides = [1, 1]} : vector<17x96xf32> to vector<17x8xf32>
    %342 = arith.truncf %339 : vector<17x8xf32> to vector<17x8xbf16>
    %343 = arith.truncf %340 : vector<17x8xf32> to vector<17x8xbf16>
    %cst_137 = arith.constant dense<0.000000e+00> : vector<17x17xf32>
    %344 = tpu.matmul %342, %343, %cst_137 {dimension_numbers = #tpu.dot_dimension_numbers<[1], [1], [0], [0], [0, 0, 1, 0], [], []>} : vector<17x8xbf16>, vector<17x8xbf16>, vector<17x17xf32> -> vector<17x17xf32>
    %cst_138 = arith.constant 0.353553385 : f32
    %345 = vector.broadcast %cst_138 : f32 to vector<17x17xf32>
    %346 = arith.mulf %344, %345 : vector<17x17xf32>
    %cst_139 = arith.constant dense<0xFF800000> : vector<17xf32>
    %347 = vector.multi_reduction <maximumf>, %346, %cst_139 [1] : vector<17x17xf32> to vector<17xf32>
    %348 = vector.shape_cast %347 : vector<17xf32> to vector<17x1xf32>
    %349 = vector.broadcast %348 : vector<17x1xf32> to vector<17x17xf32>
    %350 = arith.subf %346, %349 : vector<17x17xf32>
    %351 = math.exp %350 : vector<17x17xf32>
    %cst_140 = arith.constant dense<0.000000e+00> : vector<17xf32>
    %352 = vector.multi_reduction <add>, %351, %cst_140 [1] : vector<17x17xf32> to vector<17xf32>
    %353 = vector.shape_cast %352 : vector<17xf32> to vector<17x1xf32>
    %354 = vector.broadcast %353 : vector<17x1xf32> to vector<17x17xf32>
    %355 = arith.divf %351, %354 : vector<17x17xf32>
    %356 = arith.truncf %355 : vector<17x17xf32> to vector<17x17xbf16>
    %357 = arith.truncf %341 : vector<17x8xf32> to vector<17x8xbf16>
    %cst_141 = arith.constant dense<0.000000e+00> : vector<17x8xf32>
    %358 = tpu.matmul %356, %357, %cst_141 {dimension_numbers = #tpu.dot_dimension_numbers<[1], [0], [0], [1], [0, 0, 1, 1], [], []>} : vector<17x17xbf16>, vector<17x8xbf16>, vector<17x8xf32> -> vector<17x8xf32>
    %359 = vector.extract_strided_slice %230 {offsets = [24, 0], sizes = [8, 32], strides = [1, 1]} : vector<32x32xf32> to vector<8x32xf32>
    %360 = arith.truncf %358 : vector<17x8xf32> to vector<17x8xbf16>
    %361 = arith.truncf %359 : vector<8x32xf32> to vector<8x32xbf16>
    %cst_142 = arith.constant dense<0.000000e+00> : vector<17x32xf32>
    %362 = tpu.matmul %360, %361, %cst_142 {dimension_numbers = #tpu.dot_dimension_numbers<[1], [0], [0], [1], [0, 0, 1, 1], [], []>} : vector<17x8xbf16>, vector<8x32xbf16>, vector<17x32xf32> -> vector<17x32xf32>
    %363 = arith.addf %338, %362 : vector<17x32xf32>
    %364 = arith.addf %225, %363 : vector<17x32xf32>
    %365 = vector.broadcast %231 : vector<1x32xf32> to vector<17x32xf32>
    %366 = arith.addf %364, %365 : vector<17x32xf32>
    %cst_143 = arith.constant dense<0.000000e+00> : vector<17xf32>
    %367 = vector.multi_reduction <add>, %366, %cst_143 [1] : vector<17x32xf32> to vector<17xf32>
    %368 = vector.shape_cast %367 : vector<17xf32> to vector<17x1xf32>
    %cst_144 = arith.constant 3.200000e+01 : f32
    %369 = vector.broadcast %cst_144 : f32 to vector<17x1xf32>
    %370 = arith.divf %368, %369 : vector<17x1xf32>
    %371 = vector.broadcast %370 : vector<17x1xf32> to vector<17x32xf32>
    %372 = arith.subf %366, %371 : vector<17x32xf32>
    %373 = arith.mulf %372, %372 : vector<17x32xf32>
    %cst_145 = arith.constant dense<0.000000e+00> : vector<17xf32>
    %374 = vector.multi_reduction <add>, %373, %cst_145 [1] : vector<17x32xf32> to vector<17xf32>
    %375 = vector.shape_cast %374 : vector<17xf32> to vector<17x1xf32>
    %cst_146 = arith.constant 3.200000e+01 : f32
    %376 = vector.broadcast %cst_146 : f32 to vector<17x1xf32>
    %377 = arith.divf %375, %376 : vector<17x1xf32>
    %cst_147 = arith.constant 9.99999997E-7 : f32
    %378 = vector.broadcast %cst_147 : f32 to vector<17x1xf32>
    %379 = arith.addf %377, %378 : vector<17x1xf32>
    %380 = math.rsqrt %379 : vector<17x1xf32>
    %381 = vector.broadcast %380 : vector<17x1xf32> to vector<17x32xf32>
    %382 = arith.mulf %372, %381 : vector<17x32xf32>
    %383 = vector.broadcast %232 : vector<1x32xf32> to vector<17x32xf32>
    %384 = arith.mulf %382, %383 : vector<17x32xf32>
    %385 = vector.broadcast %233 : vector<1x32xf32> to vector<17x32xf32>
    %386 = arith.addf %384, %385 : vector<17x32xf32>
    %387 = arith.truncf %386 : vector<17x32xf32> to vector<17x32xbf16>
    %388 = arith.truncf %234 : vector<32x128xf32> to vector<32x128xbf16>
    %cst_148 = arith.constant dense<0.000000e+00> : vector<17x128xf32>
    %389 = tpu.matmul %387, %388, %cst_148 {dimension_numbers = #tpu.dot_dimension_numbers<[1], [0], [0], [1], [0, 0, 1, 1], [], []>} : vector<17x32xbf16>, vector<32x128xbf16>, vector<17x128xf32> -> vector<17x128xf32>
    %390 = vector.broadcast %235 : vector<1x128xf32> to vector<17x128xf32>
    %391 = arith.addf %389, %390 : vector<17x128xf32>
    %cst_149 = arith.constant 5.000000e-01 : f32
    %392 = vector.broadcast %cst_149 : f32 to vector<17x128xf32>
    %393 = arith.mulf %392, %391 : vector<17x128xf32>
    %cst_150 = arith.constant 0.707106769 : f32
    %394 = vector.broadcast %cst_150 : f32 to vector<17x128xf32>
    %395 = arith.mulf %391, %394 : vector<17x128xf32>
    %cst_151 = arith.constant 0.000000e+00 : f32
    %396 = vector.broadcast %cst_151 : f32 to vector<17x128xf32>
    %397 = arith.cmpf oge, %395, %396 : vector<17x128xf32>
    %cst_152 = arith.constant 1.000000e+00 : f32
    %cst_153 = arith.constant -1.000000e+00 : f32
    %398 = vector.broadcast %cst_152 : f32 to vector<17x128xf32>
    %399 = vector.broadcast %cst_153 : f32 to vector<17x128xf32>
    %400 = arith.select %397, %398, %399 : vector<17x128xi1>, vector<17x128xf32>
    %401 = math.absf %395 : vector<17x128xf32>
    %cst_154 = arith.constant 0.327591091 : f32
    %402 = vector.broadcast %cst_154 : f32 to vector<17x128xf32>
    %403 = arith.mulf %402, %401 : vector<17x128xf32>
    %cst_155 = arith.constant 1.000000e+00 : f32
    %404 = vector.broadcast %cst_155 : f32 to vector<17x128xf32>
    %405 = arith.addf %404, %403 : vector<17x128xf32>
    %cst_156 = arith.constant 1.000000e+00 : f32
    %406 = vector.broadcast %cst_156 : f32 to vector<17x128xf32>
    %407 = arith.divf %406, %405 : vector<17x128xf32>
    %cst_157 = arith.constant 1.06140542 : f32
    %408 = vector.broadcast %cst_157 : f32 to vector<17x128xf32>
    %409 = arith.mulf %408, %407 : vector<17x128xf32>
    %cst_158 = arith.constant -1.45315206 : f32
    %410 = vector.broadcast %cst_158 : f32 to vector<17x128xf32>
    %411 = arith.addf %409, %410 : vector<17x128xf32>
    %412 = arith.mulf %411, %407 : vector<17x128xf32>
    %cst_159 = arith.constant 1.42141378 : f32
    %413 = vector.broadcast %cst_159 : f32 to vector<17x128xf32>
    %414 = arith.addf %412, %413 : vector<17x128xf32>
    %415 = arith.mulf %414, %407 : vector<17x128xf32>
    %cst_160 = arith.constant -0.284496725 : f32
    %416 = vector.broadcast %cst_160 : f32 to vector<17x128xf32>
    %417 = arith.addf %415, %416 : vector<17x128xf32>
    %418 = arith.mulf %417, %407 : vector<17x128xf32>
    %cst_161 = arith.constant 0.254829586 : f32
    %419 = vector.broadcast %cst_161 : f32 to vector<17x128xf32>
    %420 = arith.addf %418, %419 : vector<17x128xf32>
    %421 = arith.mulf %420, %407 : vector<17x128xf32>
    %cst_162 = arith.constant 0.000000e+00 : f32
    %422 = vector.broadcast %cst_162 : f32 to vector<17x128xf32>
    %423 = arith.subf %422, %401 : vector<17x128xf32>
    %424 = arith.mulf %423, %401 : vector<17x128xf32>
    %425 = math.exp %424 : vector<17x128xf32>
    %426 = arith.mulf %421, %425 : vector<17x128xf32>
    %cst_163 = arith.constant 1.000000e+00 : f32
    %427 = vector.broadcast %cst_163 : f32 to vector<17x128xf32>
    %428 = arith.subf %427, %426 : vector<17x128xf32>
    %429 = arith.mulf %400, %428 : vector<17x128xf32>
    %cst_164 = arith.constant 1.000000e+00 : f32
    %430 = vector.broadcast %cst_164 : f32 to vector<17x128xf32>
    %431 = arith.addf %430, %429 : vector<17x128xf32>
    %432 = arith.mulf %393, %431 : vector<17x128xf32>
    %433 = arith.truncf %432 : vector<17x128xf32> to vector<17x128xbf16>
    %434 = arith.truncf %236 : vector<128x32xf32> to vector<128x32xbf16>
    %cst_165 = arith.constant dense<0.000000e+00> : vector<17x32xf32>
    %435 = tpu.matmul %433, %434, %cst_165 {dimension_numbers = #tpu.dot_dimension_numbers<[1], [0], [0], [1], [0, 0, 1, 1], [], []>} : vector<17x128xbf16>, vector<128x32xbf16>, vector<17x32xf32> -> vector<17x32xf32>
    %436 = arith.addf %366, %435 : vector<17x32xf32>
    %437 = vector.broadcast %237 : vector<1x32xf32> to vector<17x32xf32>
    %438 = arith.addf %436, %437 : vector<17x32xf32>
    %c0_166 = arith.constant 0 : index
    %c0_167 = arith.constant 0 : index
    %439 = vector.load %arg31[%c0_166, %c0_167] : memref<1x32xf32, #tpu.memory_space<vmem>>, vector<1x32xf32>
    %c0_168 = arith.constant 0 : index
    %c0_169 = arith.constant 0 : index
    %440 = vector.load %arg32[%c0_168, %c0_169] : memref<1x32xf32, #tpu.memory_space<vmem>>, vector<1x32xf32>
    %c0_170 = arith.constant 0 : index
    %c0_171 = arith.constant 0 : index
    %441 = vector.load %arg33[%c0_170, %c0_171] : memref<32x10xf32, #tpu.memory_space<vmem>>, vector<32x10xf32>
    %c0_172 = arith.constant 0 : index
    %c0_173 = arith.constant 0 : index
    %442 = vector.load %arg34[%c0_172, %c0_173] : memref<1x10xf32, #tpu.memory_space<vmem>>, vector<1x10xf32>
    %cst_174 = arith.constant dense<0.000000e+00> : vector<17xf32>
    %443 = vector.multi_reduction <add>, %438, %cst_174 [1] : vector<17x32xf32> to vector<17xf32>
    %444 = vector.shape_cast %443 : vector<17xf32> to vector<17x1xf32>
    %cst_175 = arith.constant 3.200000e+01 : f32
    %445 = vector.broadcast %cst_175 : f32 to vector<17x1xf32>
    %446 = arith.divf %444, %445 : vector<17x1xf32>
    %447 = vector.broadcast %446 : vector<17x1xf32> to vector<17x32xf32>
    %448 = arith.subf %438, %447 : vector<17x32xf32>
    %449 = arith.mulf %448, %448 : vector<17x32xf32>
    %cst_176 = arith.constant dense<0.000000e+00> : vector<17xf32>
    %450 = vector.multi_reduction <add>, %449, %cst_176 [1] : vector<17x32xf32> to vector<17xf32>
    %451 = vector.shape_cast %450 : vector<17xf32> to vector<17x1xf32>
    %cst_177 = arith.constant 3.200000e+01 : f32
    %452 = vector.broadcast %cst_177 : f32 to vector<17x1xf32>
    %453 = arith.divf %451, %452 : vector<17x1xf32>
    %cst_178 = arith.constant 9.99999997E-7 : f32
    %454 = vector.broadcast %cst_178 : f32 to vector<17x1xf32>
    %455 = arith.addf %453, %454 : vector<17x1xf32>
    %456 = math.rsqrt %455 : vector<17x1xf32>
    %457 = vector.broadcast %456 : vector<17x1xf32> to vector<17x32xf32>
    %458 = arith.mulf %448, %457 : vector<17x32xf32>
    %459 = vector.broadcast %439 : vector<1x32xf32> to vector<17x32xf32>
    %460 = arith.mulf %458, %459 : vector<17x32xf32>
    %461 = vector.broadcast %440 : vector<1x32xf32> to vector<17x32xf32>
    %462 = arith.addf %460, %461 : vector<17x32xf32>
    %463 = vector.extract_strided_slice %462 {offsets = [0, 0], sizes = [1, 32], strides = [1, 1]} : vector<17x32xf32> to vector<1x32xf32>
    %464 = arith.truncf %463 : vector<1x32xf32> to vector<1x32xbf16>
    %465 = arith.truncf %441 : vector<32x10xf32> to vector<32x10xbf16>
    %cst_179 = arith.constant dense<0.000000e+00> : vector<1x10xf32>
    %466 = tpu.matmul %464, %465, %cst_179 {dimension_numbers = #tpu.dot_dimension_numbers<[1], [0], [0], [1], [0, 0, 1, 1], [], []>} : vector<1x32xbf16>, vector<32x10xbf16>, vector<1x10xf32> -> vector<1x10xf32>
    %467 = arith.addf %466, %442 : vector<1x10xf32>
    %c0_180 = arith.constant 0 : index
    %c0_181 = arith.constant 0 : index
    %c0_182 = arith.constant 0 : index
    %468 = vector.load %arg2[%c0_180, %c0_181, %c0_182] : memref<1x1x10xf32, #tpu.memory_space<vmem>>, vector<1x1x10xf32>
    %469 = vector.shape_cast %468 : vector<1x1x10xf32> to vector<1x10xf32>
    %470 = arith.mulf %467, %469 : vector<1x10xf32>
    %c0_183 = arith.constant 0 : index
    %c0_184 = arith.constant 0 : index
    %c0_185 = arith.constant 0 : index
    %471 = vector.load %arg35[%c0_183, %c0_184, %c0_185] : memref<1x1x10xf32, #tpu.memory_space<vmem>>, vector<1x1x10xf32>
    %472 = vector.shape_cast %471 : vector<1x1x10xf32> to vector<1x10xf32>
    %473 = vector.shape_cast %470 : vector<1x10xf32> to vector<1x1x10xf32>
    tpu.vector_store %arg35[%c0_183, %c0_184, %c0_185], %473 {strides = array<i32>} : memref<1x1x10xf32, #tpu.memory_space<vmem>>, vector<1x1x10xf32>,
    return
  }
  func.func @transform_0(%arg0: i32) -> (i32, i32, i32) {
    %c0_i32 = arith.constant 0 : i32
    %c0_i32_0 = arith.constant 0 : i32
    %c0_i32_1 = arith.constant 0 : i32
    return %arg0, %c0_i32, %c0_i32_0 : i32, i32, i32
  }
  func.func @transform_1(%arg0: i32) -> (i32, i32, i32) {
    %c0_i32 = arith.constant 0 : i32
    %c0_i32_0 = arith.constant 0 : i32
    %c0_i32_1 = arith.constant 0 : i32
    return %arg0, %c0_i32, %c0_i32_0 : i32, i32, i32
  }
  func.func @transform_2(%arg0: i32) -> (i32, i32) {
    %c0_i32 = arith.constant 0 : i32
    %c0_i32_0 = arith.constant 0 : i32
    %c0_i32_1 = arith.constant 0 : i32
    return %c0_i32, %c0_i32_0 : i32, i32
  }
  func.func @transform_3(%arg0: i32) -> (i32, i32) {
    %c0_i32 = arith.constant 0 : i32
    %c0_i32_0 = arith.constant 0 : i32
    %c0_i32_1 = arith.constant 0 : i32
    return %c0_i32, %c0_i32_0 : i32, i32
  }
  func.func @transform_4(%arg0: i32) -> (i32, i32) {
    %c0_i32 = arith.constant 0 : i32
    %c0_i32_0 = arith.constant 0 : i32
    %c0_i32_1 = arith.constant 0 : i32
    return %c0_i32, %c0_i32_0 : i32, i32
  }
  func.func @transform_5(%arg0: i32) -> (i32, i32) {
    %c0_i32 = arith.constant 0 : i32
    %c0_i32_0 = arith.constant 0 : i32
    %c0_i32_1 = arith.constant 0 : i32
    return %c0_i32, %c0_i32_0 : i32, i32
  }
  func.func @transform_6(%arg0: i32) -> (i32, i32) {
    %c0_i32 = arith.constant 0 : i32
    %c0_i32_0 = arith.constant 0 : i32
    %c0_i32_1 = arith.constant 0 : i32
    return %c0_i32, %c0_i32_0 : i32, i32
  }
  func.func @transform_7(%arg0: i32) -> (i32, i32) {
    %c0_i32 = arith.constant 0 : i32
    %c0_i32_0 = arith.constant 0 : i32
    %c0_i32_1 = arith.constant 0 : i32
    return %c0_i32, %c0_i32_0 : i32, i32
  }
  func.func @transform_8(%arg0: i32) -> (i32, i32) {
    %c0_i32 = arith.constant 0 : i32
    %c0_i32_0 = arith.constant 0 : i32
    %c0_i32_1 = arith.constant 0 : i32
    return %c0_i32, %c0_i32_0 : i32, i32
  }
  func.func @transform_9(%arg0: i32) -> (i32, i32) {
    %c0_i32 = arith.constant 0 : i32
    %c0_i32_0 = arith.constant 0 : i32
    %c0_i32_1 = arith.constant 0 : i32
    return %c0_i32, %c0_i32_0 : i32, i32
  }
  func.func @transform_10(%arg0: i32) -> (i32, i32) {
    %c0_i32 = arith.constant 0 : i32
    %c0_i32_0 = arith.constant 0 : i32
    %c0_i32_1 = arith.constant 0 : i32
    return %c0_i32, %c0_i32_0 : i32, i32
  }
  func.func @transform_11(%arg0: i32) -> (i32, i32) {
    %c0_i32 = arith.constant 0 : i32
    %c0_i32_0 = arith.constant 0 : i32
    %c0_i32_1 = arith.constant 0 : i32
    return %c0_i32, %c0_i32_0 : i32, i32
  }
  func.func @transform_12(%arg0: i32) -> (i32, i32) {
    %c0_i32 = arith.constant 0 : i32
    %c0_i32_0 = arith.constant 0 : i32
    %c0_i32_1 = arith.constant 0 : i32
    return %c0_i32, %c0_i32_0 : i32, i32
  }
  func.func @transform_13(%arg0: i32) -> (i32, i32) {
    %c0_i32 = arith.constant 0 : i32
    %c0_i32_0 = arith.constant 0 : i32
    %c0_i32_1 = arith.constant 0 : i32
    return %c0_i32, %c0_i32_0 : i32, i32
  }
  func.func @transform_14(%arg0: i32) -> (i32, i32) {
    %c0_i32 = arith.constant 0 : i32
    %c0_i32_0 = arith.constant 0 : i32
    %c0_i32_1 = arith.constant 0 : i32
    return %c0_i32, %c0_i32_0 : i32, i32
  }
  func.func @transform_15(%arg0: i32) -> (i32, i32) {
    %c0_i32 = arith.constant 0 : i32
    %c0_i32_0 = arith.constant 0 : i32
    %c0_i32_1 = arith.constant 0 : i32
    return %c0_i32, %c0_i32_0 : i32, i32
  }
  func.func @transform_16(%arg0: i32) -> (i32, i32) {
    %c0_i32 = arith.constant 0 : i32
    %c0_i32_0 = arith.constant 0 : i32
    %c0_i32_1 = arith.constant 0 : i32
    return %c0_i32, %c0_i32_0 : i32, i32
  }
  func.func @transform_17(%arg0: i32) -> (i32, i32) {
    %c0_i32 = arith.constant 0 : i32
    %c0_i32_0 = arith.constant 0 : i32
    %c0_i32_1 = arith.constant 0 : i32
    return %c0_i32, %c0_i32_0 : i32, i32
  }
  func.func @transform_18(%arg0: i32) -> (i32, i32) {
    %c0_i32 = arith.constant 0 : i32
    %c0_i32_0 = arith.constant 0 : i32
    %c0_i32_1 = arith.constant 0 : i32
    return %c0_i32, %c0_i32_0 : i32, i32
  }
  func.func @transform_19(%arg0: i32) -> (i32, i32) {
    %c0_i32 = arith.constant 0 : i32
    %c0_i32_0 = arith.constant 0 : i32
    %c0_i32_1 = arith.constant 0 : i32
    return %c0_i32, %c0_i32_0 : i32, i32
  }
  func.func @transform_20(%arg0: i32) -> (i32, i32) {
    %c0_i32 = arith.constant 0 : i32
    %c0_i32_0 = arith.constant 0 : i32
    %c0_i32_1 = arith.constant 0 : i32
    return %c0_i32, %c0_i32_0 : i32, i32
  }
  func.func @transform_21(%arg0: i32) -> (i32, i32) {
    %c0_i32 = arith.constant 0 : i32
    %c0_i32_0 = arith.constant 0 : i32
    %c0_i32_1 = arith.constant 0 : i32
    return %c0_i32, %c0_i32_0 : i32, i32
  }
  func.func @transform_22(%arg0: i32) -> (i32, i32) {
    %c0_i32 = arith.constant 0 : i32
    %c0_i32_0 = arith.constant 0 : i32
    %c0_i32_1 = arith.constant 0 : i32
    return %c0_i32, %c0_i32_0 : i32, i32
  }
  func.func @transform_23(%arg0: i32) -> (i32, i32) {
    %c0_i32 = arith.constant 0 : i32
    %c0_i32_0 = arith.constant 0 : i32
    %c0_i32_1 = arith.constant 0 : i32
    return %c0_i32, %c0_i32_0 : i32, i32
  }
  func.func @transform_24(%arg0: i32) -> (i32, i32) {
    %c0_i32 = arith.constant 0 : i32
    %c0_i32_0 = arith.constant 0 : i32
    %c0_i32_1 = arith.constant 0 : i32
    return %c0_i32, %c0_i32_0 : i32, i32
  }
  func.func @transform_25(%arg0: i32) -> (i32, i32) {
    %c0_i32 = arith.constant 0 : i32
    %c0_i32_0 = arith.constant 0 : i32
    %c0_i32_1 = arith.constant 0 : i32
    return %c0_i32, %c0_i32_0 : i32, i32
  }
  func.func @transform_26(%arg0: i32) -> (i32, i32) {
    %c0_i32 = arith.constant 0 : i32
    %c0_i32_0 = arith.constant 0 : i32
    %c0_i32_1 = arith.constant 0 : i32
    return %c0_i32, %c0_i32_0 : i32, i32
  }
  func.func @transform_27(%arg0: i32) -> (i32, i32) {
    %c0_i32 = arith.constant 0 : i32
    %c0_i32_0 = arith.constant 0 : i32
    %c0_i32_1 = arith.constant 0 : i32
    return %c0_i32, %c0_i32_0 : i32, i32
  }
  func.func @transform_28(%arg0: i32) -> (i32, i32) {
    %c0_i32 = arith.constant 0 : i32
    %c0_i32_0 = arith.constant 0 : i32
    %c0_i32_1 = arith.constant 0 : i32
    return %c0_i32, %c0_i32_0 : i32, i32
  }
  func.func @transform_29(%arg0: i32) -> (i32, i32) {
    %c0_i32 = arith.constant 0 : i32
    %c0_i32_0 = arith.constant 0 : i32
    %c0_i32_1 = arith.constant 0 : i32
    return %c0_i32, %c0_i32_0 : i32, i32
  }
  func.func @transform_30(%arg0: i32) -> (i32, i32) {
    %c0_i32 = arith.constant 0 : i32
    %c0_i32_0 = arith.constant 0 : i32
    %c0_i32_1 = arith.constant 0 : i32
    return %c0_i32, %c0_i32_0 : i32, i32
  }
  func.func @transform_31(%arg0: i32) -> (i32, i32) {
    %c0_i32 = arith.constant 0 : i32
    %c0_i32_0 = arith.constant 0 : i32
    %c0_i32_1 = arith.constant 0 : i32
    return %c0_i32, %c0_i32_0 : i32, i32
  }
  func.func @transform_32(%arg0: i32) -> (i32, i32) {
    %c0_i32 = arith.constant 0 : i32
    %c0_i32_0 = arith.constant 0 : i32
    %c0_i32_1 = arith.constant 0 : i32
    return %c0_i32, %c0_i32_0 : i32, i32
  }
  func.func @transform_33(%arg0: i32) -> (i32, i32) {
    %c0_i32 = arith.constant 0 : i32
    %c0_i32_0 = arith.constant 0 : i32
    %c0_i32_1 = arith.constant 0 : i32
    return %c0_i32, %c0_i32_0 : i32, i32
  }
  func.func @transform_34(%arg0: i32) -> (i32, i32, i32) {
    %c0_i32 = arith.constant 0 : i32
    %c0_i32_0 = arith.constant 0 : i32
    %c0_i32_1 = arith.constant 0 : i32
    return %arg0, %c0_i32, %c0_i32_0 : i32, i32, i32
  }
}

</mosaic_0001>

<llo_original>
// kernel: tpu_custom_call.1
$region0: #{tpu_custom_call.1}
  #allocation0 [shape = 'u32[]', space=smem, size = 0x4, offset = 0x4, fixed_abs, tag = 'smem constant byte address 0x4 - core index']
  #allocation1 [shape = 'u32[72,128]{1,0:T(1,128)}', space=vmem, size = 0x9000, scoped, tag = 'internal scratch']
  %s0 = inlined_call_operand.smem [shape: u32[35], index: -1, kind: input, shape index: {}]
  %s1 = sld [smem:[%s0]]
  %s2 = scalar_lea.smem %s0, 1
  %s3 = sld [smem:[%s2]]
  %s4 = scalar_lea.smem %s0, 2
  %s5 = sld [smem:[%s4]]
  %s6 = scalar_lea.smem %s0, 3
  %s7 = sld [smem:[%s6]]
  %s8 = scalar_lea.smem %s0, 4
  %s9 = sld [smem:[%s8]]
  %s10 = scalar_lea.smem %s0, 5
  %s11 = sld [smem:[%s10]]
  %s12 = scalar_lea.smem %s0, 6
  %s13 = sld [smem:[%s12]]
  %s14 = scalar_lea.smem %s0, 7
  %s15 = sld [smem:[%s14]]
  %s16 = scalar_lea.smem %s0, 8
  %s17 = sld [smem:[%s16]]
  %s18 = scalar_lea.smem %s0, 9
  %s19 = sld [smem:[%s18]]
  %s20 = scalar_lea.smem %s0, 10
  %s21 = sld [smem:[%s20]]
  %s22 = scalar_lea.smem %s0, 11
  %s23 = sld [smem:[%s22]]
  %s24 = scalar_lea.smem %s0, 12
  %s25 = sld [smem:[%s24]]
  %s26 = scalar_lea.smem %s0, 13
  %s27 = sld [smem:[%s26]]
  %s28 = scalar_lea.smem %s0, 14
  %s29 = sld [smem:[%s28]]
  %s30 = scalar_lea.smem %s0, 15
  %s31 = sld [smem:[%s30]]
  %s32 = scalar_lea.smem %s0, 16
  %s33 = sld [smem:[%s32]]
  %s34 = scalar_lea.smem %s0, 17
  %s35 = sld [smem:[%s34]]
  %s36 = scalar_lea.smem %s0, 18
  %s37 = sld [smem:[%s36]]
  %s38 = scalar_lea.smem %s0, 19
  %s39 = sld [smem:[%s38]]
  %s40 = scalar_lea.smem %s0, 20
  %s41 = sld [smem:[%s40]]
  %s42 = scalar_lea.smem %s0, 21
  %s43 = sld [smem:[%s42]]
  %s44 = scalar_lea.smem %s0, 22
  %s45 = sld [smem:[%s44]]
  %s46 = scalar_lea.smem %s0, 23
  %s47 = sld [smem:[%s46]]
  %s48 = scalar_lea.smem %s0, 24
  %s49 = sld [smem:[%s48]]
  %s50 = scalar_lea.smem %s0, 25
  %s51 = sld [smem:[%s50]]
  %s52 = scalar_lea.smem %s0, 26
  %s53 = sld [smem:[%s52]]
  %s54 = scalar_lea.smem %s0, 27
  %s55 = sld [smem:[%s54]]
  %s56 = scalar_lea.smem %s0, 28
  %s57 = sld [smem:[%s56]]
  %s58 = scalar_lea.smem %s0, 29
  %s59 = sld [smem:[%s58]]
  %s60 = scalar_lea.smem %s0, 30
  %s61 = sld [smem:[%s60]]
  %s62 = scalar_lea.smem %s0, 31
  %s63 = sld [smem:[%s62]]
  %s64 = scalar_lea.smem %s0, 32
  %s65 = sld [smem:[%s64]]
  %s66 = scalar_lea.smem %s0, 33
  %s67 = sld [smem:[%s66]]
  %s68 = scalar_lea.smem %s0, 34
  %s69 = sld [smem:[%s68]]
  %s70 = sld [smem:[#allocation0]]
  $region169: #{tpu_custom_call.1} parent=0
    _
  %s72 = ssub.s32 1, %s70
  %s73 = scalar_select 0, %s72, %s70
  $region1: #{tpu_custom_call.1} parent=0
    #allocation2 [shape = 'u8[1024]{0}', space=vmem, size = 0x400, scoped, tag = 'output window, operand 0']
    #allocation3 [shape = 's32[2]{0}', space=sflag, size = 0x8, scoped, tag = 'scoped memory for tpu_custom_call.1']
    %74 = vsyncpa [#allocation3], 0
    %s75 = scalar_lea.sflag [#allocation3], 1
    %76 = vsyncpa %s75, 0
    loop: start=0, step=1, limit=4
    $region2: #{tpu_custom_call.1} parent=1 // loop_pre_header
      _
    $region3: #{tpu_custom_call.1} parent=1 // loop_header
      %s78 = sphi 0, %s82
      %p79 = scmp.ge.s32.totalorder %s78, 4
      %s88 = sphi 0, %s90
      %s91 = sphi 0, %s88
      %s92 = sphi 0, %s91
      %s108 = sphi 0, %s92
      %s114 = sphi 0, %s116
      %s117 = sphi 0, %s114
      %s118 = sphi 0, %s117
      %s134 = sphi 0, %s118
      %s138 = sphi 0, %s138
      %s140 = sphi 0, %s138
      %s141 = sphi 0, %s140
      %s155 = sphi 0, %s141
      %s159 = sphi 0, %s159
      %s161 = sphi 0, %s159
      %s162 = sphi 0, %s161
      %s176 = sphi 0, %s162
      %s180 = sphi 0, %s180
      %s182 = sphi 0, %s180
      %s183 = sphi 0, %s182
      %s197 = sphi 0, %s183
      %s201 = sphi 0, %s201
      %s203 = sphi 0, %s201
      %s204 = sphi 0, %s203
      %s218 = sphi 0, %s204
      %s222 = sphi 0, %s222
      %s224 = sphi 0, %s222
      %s225 = sphi 0, %s224
      %s239 = sphi 0, %s225
      %s243 = sphi 0, %s243
      %s245 = sphi 0, %s243
      %s246 = sphi 0, %s245
      %s260 = sphi 0, %s246
      %s264 = sphi 0, %s264
      %s266 = sphi 0, %s264
      %s267 = sphi 0, %s266
      %s281 = sphi 0, %s267
      %s285 = sphi 0, %s285
      %s287 = sphi 0, %s285
      %s288 = sphi 0, %s287
      %s302 = sphi 0, %s288
      %s306 = sphi 0, %s306
      %s308 = sphi 0, %s306
      %s309 = sphi 0, %s308
      %s323 = sphi 0, %s309
      %s327 = sphi 0, %s327
      %s329 = sphi 0, %s327
      %s330 = sphi 0, %s329
      %s344 = sphi 0, %s330
      %s348 = sphi 0, %s348
      %s350 = sphi 0, %s348
      %s351 = sphi 0, %s350
      %s365 = sphi 0, %s351
      %s369 = sphi 0, %s369
      %s371 = sphi 0, %s369
      %s372 = sphi 0, %s371
      %s386 = sphi 0, %s372
      %s390 = sphi 0, %s390
      %s392 = sphi 0, %s390
      %s393 = sphi 0, %s392
      %s407 = sphi 0, %s393
      %s411 = sphi 0, %s411
      %s413 = sphi 0, %s411
      %s414 = sphi 0, %s413
      %s428 = sphi 0, %s414
      %s432 = sphi 0, %s432
      %s434 = sphi 0, %s432
      %s435 = sphi 0, %s434
      %s449 = sphi 0, %s435
      %s453 = sphi 0, %s453
      %s455 = sphi 0, %s453
      %s456 = sphi 0, %s455
      %s470 = sphi 0, %s456
      %s474 = sphi 0, %s474
      %s476 = sphi 0, %s474
      %s477 = sphi 0, %s476
      %s491 = sphi 0, %s477
      %s495 = sphi 0, %s495
      %s497 = sphi 0, %s495
      %s498 = sphi 0, %s497
      %s512 = sphi 0, %s498
      %s516 = sphi 0, %s516
      %s518 = sphi 0, %s516
      %s519 = sphi 0, %s518
      %s533 = sphi 0, %s519
      %s537 = sphi 0, %s537
      %s539 = sphi 0, %s537
      %s540 = sphi 0, %s539
      %s554 = sphi 0, %s540
      %s558 = sphi 0, %s558
      %s560 = sphi 0, %s558
      %s561 = sphi 0, %s560
      %s575 = sphi 0, %s561
      %s579 = sphi 0, %s579
      %s581 = sphi 0, %s579
      %s582 = sphi 0, %s581
      %s596 = sphi 0, %s582
      %s600 = sphi 0, %s600
      %s602 = sphi 0, %s600
      %s603 = sphi 0, %s602
      %s617 = sphi 0, %s603
      %s621 = sphi 0, %s621
      %s623 = sphi 0, %s621
      %s624 = sphi 0, %s623
      %s638 = sphi 0, %s624
      %s642 = sphi 0, %s642
      %s644 = sphi 0, %s642
      %s645 = sphi 0, %s644
      %s659 = sphi 0, %s645
      %s663 = sphi 0, %s663
      %s665 = sphi 0, %s663
      %s666 = sphi 0, %s665
      %s680 = sphi 0, %s666
      %s684 = sphi 0, %s684
      %s686 = sphi 0, %s684
      %s687 = sphi 0, %s686
      %s701 = sphi 0, %s687
      %s705 = sphi 0, %s705
      %s707 = sphi 0, %s705
      %s708 = sphi 0, %s707
      %s722 = sphi 0, %s708
      %s726 = sphi 0, %s726
      %s728 = sphi 0, %s726
      %s729 = sphi 0, %s728
      %s743 = sphi 0, %s729
      %s747 = sphi 0, %s747
      %s749 = sphi 0, %s747
      %s750 = sphi 0, %s749
      %s764 = sphi 0, %s750
      %s768 = sphi 0, %s768
      %s770 = sphi 0, %s768
      %s771 = sphi 0, %s770
      %s785 = sphi 0, %s771
      %s789 = sphi 0, %s789
      %s791 = sphi 0, %s789
      %s792 = sphi 0, %s791
      %s806 = sphi 0, %s792
      %s812 = sphi 0, %s814
      %s815 = sphi 0, %s812
      %s816 = sphi 0, %s815
      %s832 = sphi 0, %s816
    $region4: #{tpu_custom_call.1} parent=1 // loop_header_branch
      %81 = sbr.rel (%p79) target = $region8
    $region5: #{tpu_custom_call.1} parent=1 // loop_body
      %s83 = ssub.s32 %s78, 1
      %s84 = ssub.s32 %s78, 2
      %s85 = sadd.s32 %s78, 1
      %s86 = ssub.s32 %s78, %s85
      %p87 = scmp.eq.s32.totalorder %s86, 0
      %s89 = sadd.s32 %s88, 1
      %s90 = scalar_select %p87, %s88, %s89
      %p93 = pneg %p87
      %p94 = scmp.eq.s32.totalorder %s78, 1
      %p95 = por %p93, %p94
      %p96 = scmp.ne.s32.totalorder %s88, %s91
      %p97 = scmp.eq.s32.totalorder %s78, 0
      %p98 = por %p96, %p97
      %p99 = scmp.ne.s32.totalorder %s88, %s91
      %p100 = scmp.eq.s32.totalorder %s83, 1
      %p101 = por %p99, %p100
      %p102 = scmp.ne.s32.totalorder %s91, %s92
      %p103 = scmp.eq.s32.totalorder %s83, 0
      %p104 = por %p102, %p103
      %p105 = scmp.ne.s32.totalorder %s91, %s92
      %p106 = scmp.eq.s32.totalorder %s84, 1
      %p107 = por %p105, %p106
      %p109 = scmp.ne.s32.totalorder %s92, %s108
      %p110 = scmp.eq.s32.totalorder %s84, 0
      %p111 = por %p109, %p110
      %s112 = ssub.s32 %s78, %s85
      %p113 = scmp.eq.s32.totalorder %s112, 0
      %s115 = sadd.s32 %s114, 1
      %s116 = scalar_select %p113, %s114, %s115
      %p119 = pneg %p113
      %p120 = scmp.eq.s32.totalorder %s78, 1
      %p121 = por %p119, %p120
      %p122 = scmp.ne.s32.totalorder %s114, %s117
      %p123 = scmp.eq.s32.totalorder %s78, 0
      %p124 = por %p122, %p123
      %p125 = scmp.ne.s32.totalorder %s114, %s117
      %p126 = scmp.eq.s32.totalorder %s83, 1
      %p127 = por %p125, %p126
      %p128 = scmp.ne.s32.totalorder %s117, %s118
      %p129 = scmp.eq.s32.totalorder %s83, 0
      %p130 = por %p128, %p129
      %p131 = scmp.ne.s32.totalorder %s117, %s118
      %p132 = scmp.eq.s32.totalorder %s84, 1
      %p133 = por %p131, %p132
      %p135 = scmp.ne.s32.totalorder %s118, %s134
      %p136 = scmp.eq.s32.totalorder %s84, 0
      %p137 = por %p135, %p136
      %s139 = sadd.s32 %s138, 1
      %p142 = scmp.eq.s32.totalorder %s78, 1
      %p143 = scmp.ne.s32.totalorder %s138, %s140
      %p144 = scmp.eq.s32.totalorder %s78, 0
      %p145 = por %p143, %p144
      %p146 = scmp.ne.s32.totalorder %s138, %s140
      %p147 = scmp.eq.s32.totalorder %s83, 1
      %p148 = por %p146, %p147
      %p149 = scmp.ne.s32.totalorder %s140, %s141
      %p150 = scmp.eq.s32.totalorder %s83, 0
      %p151 = por %p149, %p150
      %p152 = scmp.ne.s32.totalorder %s140, %s141
      %p153 = scmp.eq.s32.totalorder %s84, 1
      %p154 = por %p152, %p153
      %p156 = scmp.ne.s32.totalorder %s141, %s155
      %p157 = scmp.eq.s32.totalorder %s84, 0
      %p158 = por %p156, %p157
      %s160 = sadd.s32 %s159, 1
      %p163 = scmp.eq.s32.totalorder %s78, 1
      %p164 = scmp.ne.s32.totalorder %s159, %s161
      %p165 = scmp.eq.s32.totalorder %s78, 0
      %p166 = por %p164, %p165
      %p167 = scmp.ne.s32.totalorder %s159, %s161
      %p168 = scmp.eq.s32.totalorder %s83, 1
      %p169 = por %p167, %p168
      %p170 = scmp.ne.s32.totalorder %s161, %s162
      %p171 = scmp.eq.s32.totalorder %s83, 0
      %p172 = por %p170, %p171
      %p173 = scmp.ne.s32.totalorder %s161, %s162
      %p174 = scmp.eq.s32.totalorder %s84, 1
      %p175 = por %p173, %p174
      %p177 = scmp.ne.s32.totalorder %s162, %s176
      %p178 = scmp.eq.s32.totalorder %s84, 0
      %p179 = por %p177, %p178
      %s181 = sadd.s32 %s180, 1
      %p184 = scmp.eq.s32.totalorder %s78, 1
      %p185 = scmp.ne.s32.totalorder %s180, %s182
      %p186 = scmp.eq.s32.totalorder %s78, 0
      %p187 = por %p185, %p186
      %p188 = scmp.ne.s32.totalorder %s180, %s182
      %p189 = scmp.eq.s32.totalorder %s83, 1
      %p190 = por %p188, %p189
      %p191 = scmp.ne.s32.totalorder %s182, %s183
      %p192 = scmp.eq.s32.totalorder %s83, 0
      %p193 = por %p191, %p192
      %p194 = scmp.ne.s32.totalorder %s182, %s183
      %p195 = scmp.eq.s32.totalorder %s84, 1
      %p196 = por %p194, %p195
      %p198 = scmp.ne.s32.totalorder %s183, %s197
      %p199 = scmp.eq.s32.totalorder %s84, 0
      %p200 = por %p198, %p199
      %s202 = sadd.s32 %s201, 1
      %p205 = scmp.eq.s32.totalorder %s78, 1
      %p206 = scmp.ne.s32.totalorder %s201, %s203
      %p207 = scmp.eq.s32.totalorder %s78, 0
      %p208 = por %p206, %p207
      %p209 = scmp.ne.s32.totalorder %s201, %s203
      %p210 = scmp.eq.s32.totalorder %s83, 1
      %p211 = por %p209, %p210
      %p212 = scmp.ne.s32.totalorder %s203, %s204
      %p213 = scmp.eq.s32.totalorder %s83, 0
      %p214 = por %p212, %p213
      %p215 = scmp.ne.s32.totalorder %s203, %s204
      %p216 = scmp.eq.s32.totalorder %s84, 1
      %p217 = por %p215, %p216
      %p219 = scmp.ne.s32.totalorder %s204, %s218
      %p220 = scmp.eq.s32.totalorder %s84, 0
      %p221 = por %p219, %p220
      %s223 = sadd.s32 %s222, 1
      %p226 = scmp.eq.s32.totalorder %s78, 1
      %p227 = scmp.ne.s32.totalorder %s222, %s224
      %p228 = scmp.eq.s32.totalorder %s78, 0
      %p229 = por %p227, %p228
      %p230 = scmp.ne.s32.totalorder %s222, %s224
      %p231 = scmp.eq.s32.totalorder %s83, 1
      %p232 = por %p230, %p231
      %p233 = scmp.ne.s32.totalorder %s224, %s225
      %p234 = scmp.eq.s32.totalorder %s83, 0
      %p235 = por %p233, %p234
      %p236 = scmp.ne.s32.totalorder %s224, %s225
      %p237 = scmp.eq.s32.totalorder %s84, 1
      %p238 = por %p236, %p237
      %p240 = scmp.ne.s32.totalorder %s225, %s239
      %p241 = scmp.eq.s32.totalorder %s84, 0
      %p242 = por %p240, %p241
      %s244 = sadd.s32 %s243, 1
      %p247 = scmp.eq.s32.totalorder %s78, 1
      %p248 = scmp.ne.s32.totalorder %s243, %s245
      %p249 = scmp.eq.s32.totalorder %s78, 0
      %p250 = por %p248, %p249
      %p251 = scmp.ne.s32.totalorder %s243, %s245
      %p252 = scmp.eq.s32.totalorder %s83, 1
      %p253 = por %p251, %p252
      %p254 = scmp.ne.s32.totalorder %s245, %s246
      %p255 = scmp.eq.s32.totalorder %s83, 0
      %p256 = por %p254, %p255
      %p257 = scmp.ne.s32.totalorder %s245, %s246
      %p258 = scmp.eq.s32.totalorder %s84, 1
      %p259 = por %p257, %p258
      %p261 = scmp.ne.s32.totalorder %s246, %s260
      %p262 = scmp.eq.s32.totalorder %s84, 0
      %p263 = por %p261, %p262
      %s265 = sadd.s32 %s264, 1
      %p268 = scmp.eq.s32.totalorder %s78, 1
      %p269 = scmp.ne.s32.totalorder %s264, %s266
      %p270 = scmp.eq.s32.totalorder %s78, 0
      %p271 = por %p269, %p270
      %p272 = scmp.ne.s32.totalorder %s264, %s266
      %p273 = scmp.eq.s32.totalorder %s83, 1
      %p274 = por %p272, %p273
      %p275 = scmp.ne.s32.totalorder %s266, %s267
      %p276 = scmp.eq.s32.totalorder %s83, 0
      %p277 = por %p275, %p276
      %p278 = scmp.ne.s32.totalorder %s266, %s267
      %p279 = scmp.eq.s32.totalorder %s84, 1
      %p280 = por %p278, %p279
      %p282 = scmp.ne.s32.totalorder %s267, %s281
      %p283 = scmp.eq.s32.totalorder %s84, 0
      %p284 = por %p282, %p283
      %s286 = sadd.s32 %s285, 1
      %p289 = scmp.eq.s32.totalorder %s78, 1
      %p290 = scmp.ne.s32.totalorder %s285, %s287
      %p291 = scmp.eq.s32.totalorder %s78, 0
      %p292 = por %p290, %p291
      %p293 = scmp.ne.s32.totalorder %s285, %s287
      %p294 = scmp.eq.s32.totalorder %s83, 1
      %p295 = por %p293, %p294
      %p296 = scmp.ne.s32.totalorder %s287, %s288
      %p297 = scmp.eq.s32.totalorder %s83, 0
      %p298 = por %p296, %p297
      %p299 = scmp.ne.s32.totalorder %s287, %s288
      %p300 = scmp.eq.s32.totalorder %s84, 1
      %p301 = por %p299, %p300
      %p303 = scmp.ne.s32.totalorder %s288, %s302
      %p304 = scmp.eq.s32.totalorder %s84, 0
      %p305 = por %p303, %p304
      %s307 = sadd.s32 %s306, 1
      %p310 = scmp.eq.s32.totalorder %s78, 1
      %p311 = scmp.ne.s32.totalorder %s306, %s308
      %p312 = scmp.eq.s32.totalorder %s78, 0
      %p313 = por %p311, %p312
      %p314 = scmp.ne.s32.totalorder %s306, %s308
      %p315 = scmp.eq.s32.totalorder %s83, 1
      %p316 = por %p314, %p315
      %p317 = scmp.ne.s32.totalorder %s308, %s309
      %p318 = scmp.eq.s32.totalorder %s83, 0
      %p319 = por %p317, %p318
      %p320 = scmp.ne.s32.totalorder %s308, %s309
      %p321 = scmp.eq.s32.totalorder %s84, 1
      %p322 = por %p320, %p321
      %p324 = scmp.ne.s32.totalorder %s309, %s323
      %p325 = scmp.eq.s32.totalorder %s84, 0
      %p326 = por %p324, %p325
      %s328 = sadd.s32 %s327, 1
      %p331 = scmp.eq.s32.totalorder %s78, 1
      %p332 = scmp.ne.s32.totalorder %s327, %s329
      %p333 = scmp.eq.s32.totalorder %s78, 0
      %p334 = por %p332, %p333
      %p335 = scmp.ne.s32.totalorder %s327, %s329
      %p336 = scmp.eq.s32.totalorder %s83, 1
      %p337 = por %p335, %p336
      %p338 = scmp.ne.s32.totalorder %s329, %s330
      %p339 = scmp.eq.s32.totalorder %s83, 0
      %p340 = por %p338, %p339
      %p341 = scmp.ne.s32.totalorder %s329, %s330
      %p342 = scmp.eq.s32.totalorder %s84, 1
      %p343 = por %p341, %p342
      %p345 = scmp.ne.s32.totalorder %s330, %s344
      %p346 = scmp.eq.s32.totalorder %s84, 0
      %p347 = por %p345, %p346
      %s349 = sadd.s32 %s348, 1
      %p352 = scmp.eq.s32.totalorder %s78, 1
      %p353 = scmp.ne.s32.totalorder %s348, %s350
      %p354 = scmp.eq.s32.totalorder %s78, 0
      %p355 = por %p353, %p354
      %p356 = scmp.ne.s32.totalorder %s348, %s350
      %p357 = scmp.eq.s32.totalorder %s83, 1
      %p358 = por %p356, %p357
      %p359 = scmp.ne.s32.totalorder %s350, %s351
      %p360 = scmp.eq.s32.totalorder %s83, 0
      %p361 = por %p359, %p360
      %p362 = scmp.ne.s32.totalorder %s350, %s351
      %p363 = scmp.eq.s32.totalorder %s84, 1
      %p364 = por %p362, %p363
      %p366 = scmp.ne.s32.totalorder %s351, %s365
      %p367 = scmp.eq.s32.totalorder %s84, 0
      %p368 = por %p366, %p367
      %s370 = sadd.s32 %s369, 1
      %p373 = scmp.eq.s32.totalorder %s78, 1
      %p374 = scmp.ne.s32.totalorder %s369, %s371
      %p375 = scmp.eq.s32.totalorder %s78, 0
      %p376 = por %p374, %p375
      %p377 = scmp.ne.s32.totalorder %s369, %s371
      %p378 = scmp.eq.s32.totalorder %s83, 1
      %p379 = por %p377, %p378
      %p380 = scmp.ne.s32.totalorder %s371, %s372
      %p381 = scmp.eq.s32.totalorder %s83, 0
      %p382 = por %p380, %p381
      %p383 = scmp.ne.s32.totalorder %s371, %s372
      %p384 = scmp.eq.s32.totalorder %s84, 1
      %p385 = por %p383, %p384
      %p387 = scmp.ne.s32.totalorder %s372, %s386
      %p388 = scmp.eq.s32.totalorder %s84, 0
      %p389 = por %p387, %p388
      %s391 = sadd.s32 %s390, 1
      %p394 = scmp.eq.s32.totalorder %s78, 1
      %p395 = scmp.ne.s32.totalorder %s390, %s392
      %p396 = scmp.eq.s32.totalorder %s78, 0
      %p397 = por %p395, %p396
      %p398 = scmp.ne.s32.totalorder %s390, %s392
      %p399 = scmp.eq.s32.totalorder %s83, 1
      %p400 = por %p398, %p399
      %p401 = scmp.ne.s32.totalorder %s392, %s393
      %p402 = scmp.eq.s32.totalorder %s83, 0
      %p403 = por %p401, %p402
      %p404 = scmp.ne.s32.totalorder %s392, %s393
      %p405 = scmp.eq.s32.totalorder %s84, 1
      %p406 = por %p404, %p405
      %p408 = scmp.ne.s32.totalorder %s393, %s407
      %p409 = scmp.eq.s32.totalorder %s84, 0
      %p410 = por %p408, %p409
      %s412 = sadd.s32 %s411, 1
      %p415 = scmp.eq.s32.totalorder %s78, 1
      %p416 = scmp.ne.s32.totalorder %s411, %s413
      %p417 = scmp.eq.s32.totalorder %s78, 0
      %p418 = por %p416, %p417
      %p419 = scmp.ne.s32.totalorder %s411, %s413
      %p420 = scmp.eq.s32.totalorder %s83, 1
      %p421 = por %p419, %p420
      %p422 = scmp.ne.s32.totalorder %s413, %s414
      %p423 = scmp.eq.s32.totalorder %s83, 0
      %p424 = por %p422, %p423
      %p425 = scmp.ne.s32.totalorder %s413, %s414
      %p426 = scmp.eq.s32.totalorder %s84, 1
      %p427 = por %p425, %p426
      %p429 = scmp.ne.s32.totalorder %s414, %s428
      %p430 = scmp.eq.s32.totalorder %s84, 0
      %p431 = por %p429, %p430
      %s433 = sadd.s32 %s432, 1
      %p436 = scmp.eq.s32.totalorder %s78, 1
      %p437 = scmp.ne.s32.totalorder %s432, %s434
      %p438 = scmp.eq.s32.totalorder %s78, 0
      %p439 = por %p437, %p438
      %p440 = scmp.ne.s32.totalorder %s432, %s434
      %p441 = scmp.eq.s32.totalorder %s83, 1
      %p442 = por %p440, %p441
      %p443 = scmp.ne.s32.totalorder %s434, %s435
      %p444 = scmp.eq.s32.totalorder %s83, 0
      %p445 = por %p443, %p444
      %p446 = scmp.ne.s32.totalorder %s434, %s435
      %p447 = scmp.eq.s32.totalorder %s84, 1
      %p448 = por %p446, %p447
      %p450 = scmp.ne.s32.totalorder %s435, %s449
      %p451 = scmp.eq.s32.totalorder %s84, 0
      %p452 = por %p450, %p451
      %s454 = sadd.s32 %s453, 1
      %p457 = scmp.eq.s32.totalorder %s78, 1
      %p458 = scmp.ne.s32.totalorder %s453, %s455
      %p459 = scmp.eq.s32.totalorder %s78, 0
      %p460 = por %p458, %p459
      %p461 = scmp.ne.s32.totalorder %s453, %s455
      %p462 = scmp.eq.s32.totalorder %s83, 1
      %p463 = por %p461, %p462
      %p464 = scmp.ne.s32.totalorder %s455, %s456
      %p465 = scmp.eq.s32.totalorder %s83, 0
      %p466 = por %p464, %p465
      %p467 = scmp.ne.s32.totalorder %s455, %s456
      %p468 = scmp.eq.s32.totalorder %s84, 1
      %p469 = por %p467, %p468
      %p471 = scmp.ne.s32.totalorder %s456, %s470
      %p472 = scmp.eq.s32.totalorder %s84, 0
      %p473 = por %p471, %p472
      %s475 = sadd.s32 %s474, 1
      %p478 = scmp.eq.s32.totalorder %s78, 1
      %p479 = scmp.ne.s32.totalorder %s474, %s476
      %p480 = scmp.eq.s32.totalorder %s78, 0
      %p481 = por %p479, %p480
      %p482 = scmp.ne.s32.totalorder %s474, %s476
      %p483 = scmp.eq.s32.totalorder %s83, 1
      %p484 = por %p482, %p483
      %p485 = scmp.ne.s32.totalorder %s476, %s477
      %p486 = scmp.eq.s32.totalorder %s83, 0
      %p487 = por %p485, %p486
      %p488 = scmp.ne.s32.totalorder %s476, %s477
      %p489 = scmp.eq.s32.totalorder %s84, 1
      %p490 = por %p488, %p489
      %p492 = scmp.ne.s32.totalorder %s477, %s491
      %p493 = scmp.eq.s32.totalorder %s84, 0
      %p494 = por %p492, %p493
      %s496 = sadd.s32 %s495, 1
      %p499 = scmp.eq.s32.totalorder %s78, 1
      %p500 = scmp.ne.s32.totalorder %s495, %s497
      %p501 = scmp.eq.s32.totalorder %s78, 0
      %p502 = por %p500, %p501
      %p503 = scmp.ne.s32.totalorder %s495, %s497
      %p504 = scmp.eq.s32.totalorder %s83, 1
      %p505 = por %p503, %p504
      %p506 = scmp.ne.s32.totalorder %s497, %s498
      %p507 = scmp.eq.s32.totalorder %s83, 0
      %p508 = por %p506, %p507
      %p509 = scmp.ne.s32.totalorder %s497, %s498
      %p510 = scmp.eq.s32.totalorder %s84, 1
      %p511 = por %p509, %p510
      %p513 = scmp.ne.s32.totalorder %s498, %s512
      %p514 = scmp.eq.s32.totalorder %s84, 0
      %p515 = por %p513, %p514
      %s517 = sadd.s32 %s516, 1
      %p520 = scmp.eq.s32.totalorder %s78, 1
      %p521 = scmp.ne.s32.totalorder %s516, %s518
      %p522 = scmp.eq.s32.totalorder %s78, 0
      %p523 = por %p521, %p522
      %p524 = scmp.ne.s32.totalorder %s516, %s518
      %p525 = scmp.eq.s32.totalorder %s83, 1
      %p526 = por %p524, %p525
      %p527 = scmp.ne.s32.totalorder %s518, %s519
      %p528 = scmp.eq.s32.totalorder %s83, 0
      %p529 = por %p527, %p528
      %p530 = scmp.ne.s32.totalorder %s518, %s519
      %p531 = scmp.eq.s32.totalorder %s84, 1
      %p532 = por %p530, %p531
      %p534 = scmp.ne.s32.totalorder %s519, %s533
      %p535 = scmp.eq.s32.totalorder %s84, 0
      %p536 = por %p534, %p535
      %s538 = sadd.s32 %s537, 1
      %p541 = scmp.eq.s32.totalorder %s78, 1
      %p542 = scmp.ne.s32.totalorder %s537, %s539
      %p543 = scmp.eq.s32.totalorder %s78, 0
      %p544 = por %p542, %p543
      %p545 = scmp.ne.s32.totalorder %s537, %s539
      %p546 = scmp.eq.s32.totalorder %s83, 1
      %p547 = por %p545, %p546
      %p548 = scmp.ne.s32.totalorder %s539, %s540
      %p549 = scmp.eq.s32.totalorder %s83, 0
      %p550 = por %p548, %p549
      %p551 = scmp.ne.s32.totalorder %s539, %s540
      %p552 = scmp.eq.s32.totalorder %s84, 1
      %p553 = por %p551, %p552
      %p555 = scmp.ne.s32.totalorder %s540, %s554
      %p556 = scmp.eq.s32.totalorder %s84, 0
      %p557 = por %p555, %p556
      %s559 = sadd.s32 %s558, 1
      %p562 = scmp.eq.s32.totalorder %s78, 1
      %p563 = scmp.ne.s32.totalorder %s558, %s560
      %p564 = scmp.eq.s32.totalorder %s78, 0
      %p565 = por %p563, %p564
      %p566 = scmp.ne.s32.totalorder %s558, %s560
      %p567 = scmp.eq.s32.totalorder %s83, 1
      %p568 = por %p566, %p567
      %p569 = scmp.ne.s32.totalorder %s560, %s561
      %p570 = scmp.eq.s32.totalorder %s83, 0
      %p571 = por %p569, %p570
      %p572 = scmp.ne.s32.totalorder %s560, %s561
      %p573 = scmp.eq.s32.totalorder %s84, 1
      %p574 = por %p572, %p573
      %p576 = scmp.ne.s32.totalorder %s561, %s575
      %p577 = scmp.eq.s32.totalorder %s84, 0
      %p578 = por %p576, %p577
      %s580 = sadd.s32 %s579, 1
      %p583 = scmp.eq.s32.totalorder %s78, 1
      %p584 = scmp.ne.s32.totalorder %s579, %s581
      %p585 = scmp.eq.s32.totalorder %s78, 0
      %p586 = por %p584, %p585
      %p587 = scmp.ne.s32.totalorder %s579, %s581
      %p588 = scmp.eq.s32.totalorder %s83, 1
      %p589 = por %p587, %p588
      %p590 = scmp.ne.s32.totalorder %s581, %s582
      %p591 = scmp.eq.s32.totalorder %s83, 0
      %p592 = por %p590, %p591
      %p593 = scmp.ne.s32.totalorder %s581, %s582
      %p594 = scmp.eq.s32.totalorder %s84, 1
      %p595 = por %p593, %p594
      %p597 = scmp.ne.s32.totalorder %s582, %s596
      %p598 = scmp.eq.s32.totalorder %s84, 0
      %p599 = por %p597, %p598
      %s601 = sadd.s32 %s600, 1
      %p604 = scmp.eq.s32.totalorder %s78, 1
      %p605 = scmp.ne.s32.totalorder %s600, %s602
      %p606 = scmp.eq.s32.totalorder %s78, 0
      %p607 = por %p605, %p606
      %p608 = scmp.ne.s32.totalorder %s600, %s602
      %p609 = scmp.eq.s32.totalorder %s83, 1
      %p610 = por %p608, %p609
      %p611 = scmp.ne.s32.totalorder %s602, %s603
      %p612 = scmp.eq.s32.totalorder %s83, 0
      %p613 = por %p611, %p612
      %p614 = scmp.ne.s32.totalorder %s602, %s603
      %p615 = scmp.eq.s32.totalorder %s84, 1
      %p616 = por %p614, %p615
      %p618 = scmp.ne.s32.totalorder %s603, %s617
      %p619 = scmp.eq.s32.totalorder %s84, 0
      %p620 = por %p618, %p619
      %s622 = sadd.s32 %s621, 1
      %p625 = scmp.eq.s32.totalorder %s78, 1
      %p626 = scmp.ne.s32.totalorder %s621, %s623
      %p627 = scmp.eq.s32.totalorder %s78, 0
      %p628 = por %p626, %p627
      %p629 = scmp.ne.s32.totalorder %s621, %s623
      %p630 = scmp.eq.s32.totalorder %s83, 1
      %p631 = por %p629, %p630
      %p632 = scmp.ne.s32.totalorder %s623, %s624
      %p633 = scmp.eq.s32.totalorder %s83, 0
      %p634 = por %p632, %p633
      %p635 = scmp.ne.s32.totalorder %s623, %s624
      %p636 = scmp.eq.s32.totalorder %s84, 1
      %p637 = por %p635, %p636
      %p639 = scmp.ne.s32.totalorder %s624, %s638
      %p640 = scmp.eq.s32.totalorder %s84, 0
      %p641 = por %p639, %p640
      %s643 = sadd.s32 %s642, 1
      %p646 = scmp.eq.s32.totalorder %s78, 1
      %p647 = scmp.ne.s32.totalorder %s642, %s644
      %p648 = scmp.eq.s32.totalorder %s78, 0
      %p649 = por %p647, %p648
      %p650 = scmp.ne.s32.totalorder %s642, %s644
      %p651 = scmp.eq.s32.totalorder %s83, 1
      %p652 = por %p650, %p651
      %p653 = scmp.ne.s32.totalorder %s644, %s645
      %p654 = scmp.eq.s32.totalorder %s83, 0
      %p655 = por %p653, %p654
      %p656 = scmp.ne.s32.totalorder %s644, %s645
      %p657 = scmp.eq.s32.totalorder %s84, 1
      %p658 = por %p656, %p657
      %p660 = scmp.ne.s32.totalorder %s645, %s659
      %p661 = scmp.eq.s32.totalorder %s84, 0
      %p662 = por %p660, %p661
      %s664 = sadd.s32 %s663, 1
      %p667 = scmp.eq.s32.totalorder %s78, 1
      %p668 = scmp.ne.s32.totalorder %s663, %s665
      %p669 = scmp.eq.s32.totalorder %s78, 0
      %p670 = por %p668, %p669
      %p671 = scmp.ne.s32.totalorder %s663, %s665
      %p672 = scmp.eq.s32.totalorder %s83, 1
      %p673 = por %p671, %p672
      %p674 = scmp.ne.s32.totalorder %s665, %s666
      %p675 = scmp.eq.s32.totalorder %s83, 0
      %p676 = por %p674, %p675
      %p677 = scmp.ne.s32.totalorder %s665, %s666
      %p678 = scmp.eq.s32.totalorder %s84, 1
      %p679 = por %p677, %p678
      %p681 = scmp.ne.s32.totalorder %s666, %s680
      %p682 = scmp.eq.s32.totalorder %s84, 0
      %p683 = por %p681, %p682
      %s685 = sadd.s32 %s684, 1
      %p688 = scmp.eq.s32.totalorder %s78, 1
      %p689 = scmp.ne.s32.totalorder %s684, %s686
      %p690 = scmp.eq.s32.totalorder %s78, 0
      %p691 = por %p689, %p690
      %p692 = scmp.ne.s32.totalorder %s684, %s686
      %p693 = scmp.eq.s32.totalorder %s83, 1
      %p694 = por %p692, %p693
      %p695 = scmp.ne.s32.totalorder %s686, %s687
      %p696 = scmp.eq.s32.totalorder %s83, 0
      %p697 = por %p695, %p696
      %p698 = scmp.ne.s32.totalorder %s686, %s687
      %p699 = scmp.eq.s32.totalorder %s84, 1
      %p700 = por %p698, %p699
      %p702 = scmp.ne.s32.totalorder %s687, %s701
      %p703 = scmp.eq.s32.totalorder %s84, 0
      %p704 = por %p702, %p703
      %s706 = sadd.s32 %s705, 1
      %p709 = scmp.eq.s32.totalorder %s78, 1
      %p710 = scmp.ne.s32.totalorder %s705, %s707
      %p711 = scmp.eq.s32.totalorder %s78, 0
      %p712 = por %p710, %p711
      %p713 = scmp.ne.s32.totalorder %s705, %s707
      %p714 = scmp.eq.s32.totalorder %s83, 1
      %p715 = por %p713, %p714
      %p716 = scmp.ne.s32.totalorder %s707, %s708
      %p717 = scmp.eq.s32.totalorder %s83, 0
      %p718 = por %p716, %p717
      %p719 = scmp.ne.s32.totalorder %s707, %s708
      %p720 = scmp.eq.s32.totalorder %s84, 1
      %p721 = por %p719, %p720
      %p723 = scmp.ne.s32.totalorder %s708, %s722
      %p724 = scmp.eq.s32.totalorder %s84, 0
      %p725 = por %p723, %p724
      %s727 = sadd.s32 %s726, 1
      %p730 = scmp.eq.s32.totalorder %s78, 1
      %p731 = scmp.ne.s32.totalorder %s726, %s728
      %p732 = scmp.eq.s32.totalorder %s78, 0
      %p733 = por %p731, %p732
      %p734 = scmp.ne.s32.totalorder %s726, %s728
      %p735 = scmp.eq.s32.totalorder %s83, 1
      %p736 = por %p734, %p735
      %p737 = scmp.ne.s32.totalorder %s728, %s729
      %p738 = scmp.eq.s32.totalorder %s83, 0
      %p739 = por %p737, %p738
      %p740 = scmp.ne.s32.totalorder %s728, %s729
      %p741 = scmp.eq.s32.totalorder %s84, 1
      %p742 = por %p740, %p741
      %p744 = scmp.ne.s32.totalorder %s729, %s743
      %p745 = scmp.eq.s32.totalorder %s84, 0
      %p746 = por %p744, %p745
      %s748 = sadd.s32 %s747, 1
      %p751 = scmp.eq.s32.totalorder %s78, 1
      %p752 = scmp.ne.s32.totalorder %s747, %s749
      %p753 = scmp.eq.s32.totalorder %s78, 0
      %p754 = por %p752, %p753
      %p755 = scmp.ne.s32.totalorder %s747, %s749
      %p756 = scmp.eq.s32.totalorder %s83, 1
      %p757 = por %p755, %p756
      %p758 = scmp.ne.s32.totalorder %s749, %s750
      %p759 = scmp.eq.s32.totalorder %s83, 0
      %p760 = por %p758, %p759
      %p761 = scmp.ne.s32.totalorder %s749, %s750
      %p762 = scmp.eq.s32.totalorder %s84, 1
      %p763 = por %p761, %p762
      %p765 = scmp.ne.s32.totalorder %s750, %s764
      %p766 = scmp.eq.s32.totalorder %s84, 0
      %p767 = por %p765, %p766
      %s769 = sadd.s32 %s768, 1
      %p772 = scmp.eq.s32.totalorder %s78, 1
      %p773 = scmp.ne.s32.totalorder %s768, %s770
      %p774 = scmp.eq.s32.totalorder %s78, 0
      %p775 = por %p773, %p774
      %p776 = scmp.ne.s32.totalorder %s768, %s770
      %p777 = scmp.eq.s32.totalorder %s83, 1
      %p778 = por %p776, %p777
      %p779 = scmp.ne.s32.totalorder %s770, %s771
      %p780 = scmp.eq.s32.totalorder %s83, 0
      %p781 = por %p779, %p780
      %p782 = scmp.ne.s32.totalorder %s770, %s771
      %p783 = scmp.eq.s32.totalorder %s84, 1
      %p784 = por %p782, %p783
      %p786 = scmp.ne.s32.totalorder %s771, %s785
      %p787 = scmp.eq.s32.totalorder %s84, 0
      %p788 = por %p786, %p787
      %s790 = sadd.s32 %s789, 1
      %p793 = scmp.eq.s32.totalorder %s78, 1
      %p794 = scmp.ne.s32.totalorder %s789, %s791
      %p795 = scmp.eq.s32.totalorder %s78, 0
      %p796 = por %p794, %p795
      %p797 = scmp.ne.s32.totalorder %s789, %s791
      %p798 = scmp.eq.s32.totalorder %s83, 1
      %p799 = por %p797, %p798
      %p800 = scmp.ne.s32.totalorder %s791, %s792
      %p801 = scmp.eq.s32.totalorder %s83, 0
      %p802 = por %p800, %p801
      %p803 = scmp.ne.s32.totalorder %s791, %s792
      %p804 = scmp.eq.s32.totalorder %s84, 1
      %p805 = por %p803, %p804
      %p807 = scmp.ne.s32.totalorder %s792, %s806
      %p808 = scmp.eq.s32.totalorder %s84, 0
      %p809 = por %p807, %p808
      %s810 = ssub.s32 %s78, %s85
      %p811 = scmp.eq.s32.totalorder %s810, 0
      %s813 = sadd.s32 %s812, 1
      %s814 = scalar_select %p811, %s812, %s813
      %p817 = pneg %p811
      %p818 = scmp.eq.s32.totalorder %s78, 1
      %p819 = por %p817, %p818
      %p820 = scmp.ne.s32.totalorder %s812, %s815
      %p821 = scmp.eq.s32.totalorder %s78, 0
      %p822 = por %p820, %p821
      %p823 = scmp.ne.s32.totalorder %s812, %s815
      %p824 = scmp.eq.s32.totalorder %s83, 1
      %p825 = por %p823, %p824
      %p826 = scmp.ne.s32.totalorder %s815, %s816
      %p827 = scmp.eq.s32.totalorder %s83, 0
      %p828 = por %p826, %p827
      %p829 = scmp.ne.s32.totalorder %s815, %s816
      %p830 = scmp.eq.s32.totalorder %s84, 1
      %p831 = por %p829, %p830
      %p833 = scmp.ne.s32.totalorder %s816, %s832
      %p834 = scmp.eq.s32.totalorder %s84, 0
      %p835 = por %p833, %p834
      %p836 = scmp.le.s32.totalorder 1, %s78
      %p837 = scmp.lt.s32.totalorder %s78, 3
      %p838 = pnand %p836, %p837
      %p839 = pneg %p838
      // Predicated region
      $region9: #{tpu_custom_call.1} parent=5 // pred_check
        _
      $region10: #{tpu_custom_call.1} parent=5 // pred_check_branch
        %841 = sbr.rel (%p838) target = $region12
      $region11: #{tpu_custom_call.1} parent=5 // pred_region
        %s842 = ssub.s32 %s78, 1
        // Predicated region
        $region13: #{tpu_custom_call.1} parent=11 // pred_check
          %p843 = pneg %p151
        $region14: #{tpu_custom_call.1} parent=11 // pred_check_branch
          %845 = sbr.rel (%p843) target = $region16
        $region15: #{tpu_custom_call.1} parent=11 // pred_region
          _
        $region16: #{tpu_custom_call.1} parent=11 // pred_fallthru
          _
        // Predicated region
        $region17: #{tpu_custom_call.1} parent=11 // pred_check
          %p846 = pneg %p172
        $region18: #{tpu_custom_call.1} parent=11 // pred_check_branch
          %848 = sbr.rel (%p846) target = $region20
        $region19: #{tpu_custom_call.1} parent=11 // pred_region
          _
        $region20: #{tpu_custom_call.1} parent=11 // pred_fallthru
          _
        // Predicated region
        $region21: #{tpu_custom_call.1} parent=11 // pred_check
          %p849 = pneg %p193
        $region22: #{tpu_custom_call.1} parent=11 // pred_check_branch
          %851 = sbr.rel (%p849) target = $region24
        $region23: #{tpu_custom_call.1} parent=11 // pred_region
          _
        $region24: #{tpu_custom_call.1} parent=11 // pred_fallthru
          _
        // Predicated region
        $region25: #{tpu_custom_call.1} parent=11 // pred_check
          %p852 = pneg %p214
        $region26: #{tpu_custom_call.1} parent=11 // pred_check_branch
          %854 = sbr.rel (%p852) target = $region28
        $region27: #{tpu_custom_call.1} parent=11 // pred_region
          _
        $region28: #{tpu_custom_call.1} parent=11 // pred_fallthru
          _
        // Predicated region
        $region29: #{tpu_custom_call.1} parent=11 // pred_check
          %p855 = pneg %p235
        $region30: #{tpu_custom_call.1} parent=11 // pred_check_branch
          %857 = sbr.rel (%p855) target = $region32
        $region31: #{tpu_custom_call.1} parent=11 // pred_region
          _
        $region32: #{tpu_custom_call.1} parent=11 // pred_fallthru
          _
        // Predicated region
        $region33: #{tpu_custom_call.1} parent=11 // pred_check
          %p858 = pneg %p256
        $region34: #{tpu_custom_call.1} parent=11 // pred_check_branch
          %860 = sbr.rel (%p858) target = $region36
        $region35: #{tpu_custom_call.1} parent=11 // pred_region
          _
        $region36: #{tpu_custom_call.1} parent=11 // pred_fallthru
          _
        // Predicated region
        $region37: #{tpu_custom_call.1} parent=11 // pred_check
          %p861 = pneg %p277
        $region38: #{tpu_custom_call.1} parent=11 // pred_check_branch
          %863 = sbr.rel (%p861) target = $region40
        $region39: #{tpu_custom_call.1} parent=11 // pred_region
          _
        $region40: #{tpu_custom_call.1} parent=11 // pred_fallthru
          _
        // Predicated region
        $region41: #{tpu_custom_call.1} parent=11 // pred_check
          %p864 = pneg %p298
        $region42: #{tpu_custom_call.1} parent=11 // pred_check_branch
          %866 = sbr.rel (%p864) target = $region44
        $region43: #{tpu_custom_call.1} parent=11 // pred_region
          _
        $region44: #{tpu_custom_call.1} parent=11 // pred_fallthru
          _
        // Predicated region
        $region45: #{tpu_custom_call.1} parent=11 // pred_check
          %p867 = pneg %p319
        $region46: #{tpu_custom_call.1} parent=11 // pred_check_branch
          %869 = sbr.rel (%p867) target = $region48
        $region47: #{tpu_custom_call.1} parent=11 // pred_region
          _
        $region48: #{tpu_custom_call.1} parent=11 // pred_fallthru
          _
        // Predicated region
        $region49: #{tpu_custom_call.1} parent=11 // pred_check
          %p870 = pneg %p340
        $region50: #{tpu_custom_call.1} parent=11 // pred_check_branch
          %872 = sbr.rel (%p870) target = $region52
        $region51: #{tpu_custom_call.1} parent=11 // pred_region
          _
        $region52: #{tpu_custom_call.1} parent=11 // pred_fallthru
          _
        // Predicated region
        $region53: #{tpu_custom_call.1} parent=11 // pred_check
          %p873 = pneg %p361
        $region54: #{tpu_custom_call.1} parent=11 // pred_check_branch
          %875 = sbr.rel (%p873) target = $region56
        $region55: #{tpu_custom_call.1} parent=11 // pred_region
          _
        $region56: #{tpu_custom_call.1} parent=11 // pred_fallthru
          _
        // Predicated region
        $region57: #{tpu_custom_call.1} parent=11 // pred_check
          %p876 = pneg %p382
        $region58: #{tpu_custom_call.1} parent=11 // pred_check_branch
          %878 = sbr.rel (%p876) target = $region60
        $region59: #{tpu_custom_call.1} parent=11 // pred_region
          _
        $region60: #{tpu_custom_call.1} parent=11 // pred_fallthru
          _
        // Predicated region
        $region61: #{tpu_custom_call.1} parent=11 // pred_check
          %p879 = pneg %p403
        $region62: #{tpu_custom_call.1} parent=11 // pred_check_branch
          %881 = sbr.rel (%p879) target = $region64
        $region63: #{tpu_custom_call.1} parent=11 // pred_region
          _
        $region64: #{tpu_custom_call.1} parent=11 // pred_fallthru
          _
        // Predicated region
        $region65: #{tpu_custom_call.1} parent=11 // pred_check
          %p882 = pneg %p424
        $region66: #{tpu_custom_call.1} parent=11 // pred_check_branch
          %884 = sbr.rel (%p882) target = $region68
        $region67: #{tpu_custom_call.1} parent=11 // pred_region
          _
        $region68: #{tpu_custom_call.1} parent=11 // pred_fallthru
          _
        // Predicated region
        $region69: #{tpu_custom_call.1} parent=11 // pred_check
          %p885 = pneg %p445
        $region70: #{tpu_custom_call.1} parent=11 // pred_check_branch
          %887 = sbr.rel (%p885) target = $region72
        $region71: #{tpu_custom_call.1} parent=11 // pred_region
          _
        $region72: #{tpu_custom_call.1} parent=11 // pred_fallthru
          _
        // Predicated region
        $region73: #{tpu_custom_call.1} parent=11 // pred_check
          %p888 = pneg %p466
        $region74: #{tpu_custom_call.1} parent=11 // pred_check_branch
          %890 = sbr.rel (%p888) target = $region76
        $region75: #{tpu_custom_call.1} parent=11 // pred_region
          _
        $region76: #{tpu_custom_call.1} parent=11 // pred_fallthru
          _
        // Predicated region
        $region77: #{tpu_custom_call.1} parent=11 // pred_check
          %p891 = pneg %p487
        $region78: #{tpu_custom_call.1} parent=11 // pred_check_branch
          %893 = sbr.rel (%p891) target = $region80
        $region79: #{tpu_custom_call.1} parent=11 // pred_region
          _
        $region80: #{tpu_custom_call.1} parent=11 // pred_fallthru
          _
        // Predicated region
        $region81: #{tpu_custom_call.1} parent=11 // pred_check
          %p894 = pneg %p508
        $region82: #{tpu_custom_call.1} parent=11 // pred_check_branch
          %896 = sbr.rel (%p894) target = $region84
        $region83: #{tpu_custom_call.1} parent=11 // pred_region
          _
        $region84: #{tpu_custom_call.1} parent=11 // pred_fallthru
          _
        // Predicated region
        $region85: #{tpu_custom_call.1} parent=11 // pred_check
          %p897 = pneg %p529
        $region86: #{tpu_custom_call.1} parent=11 // pred_check_branch
          %899 = sbr.rel (%p897) target = $region88
        $region87: #{tpu_custom_call.1} parent=11 // pred_region
          _
        $region88: #{tpu_custom_call.1} parent=11 // pred_fallthru
          _
        // Predicated region
        $region89: #{tpu_custom_call.1} parent=11 // pred_check
          %p900 = pneg %p550
        $region90: #{tpu_custom_call.1} parent=11 // pred_check_branch
          %902 = sbr.rel (%p900) target = $region92
        $region91: #{tpu_custom_call.1} parent=11 // pred_region
          _
        $region92: #{tpu_custom_call.1} parent=11 // pred_fallthru
          _
        // Predicated region
        $region93: #{tpu_custom_call.1} parent=11 // pred_check
          %p903 = pneg %p571
        $region94: #{tpu_custom_call.1} parent=11 // pred_check_branch
          %905 = sbr.rel (%p903) target = $region96
        $region95: #{tpu_custom_call.1} parent=11 // pred_region
          _
        $region96: #{tpu_custom_call.1} parent=11 // pred_fallthru
          _
        // Predicated region
        $region97: #{tpu_custom_call.1} parent=11 // pred_check
          %p906 = pneg %p592
        $region98: #{tpu_custom_call.1} parent=11 // pred_check_branch
          %908 = sbr.rel (%p906) target = $region100
        $region99: #{tpu_custom_call.1} parent=11 // pred_region
          _
        $region100: #{tpu_custom_call.1} parent=11 // pred_fallthru
          _
        // Predicated region
        $region101: #{tpu_custom_call.1} parent=11 // pred_check
          %p909 = pneg %p613
        $region102: #{tpu_custom_call.1} parent=11 // pred_check_branch
          %911 = sbr.rel (%p909) target = $region104
        $region103: #{tpu_custom_call.1} parent=11 // pred_region
          _
        $region104: #{tpu_custom_call.1} parent=11 // pred_fallthru
          _
        // Predicated region
        $region105: #{tpu_custom_call.1} parent=11 // pred_check
          %p912 = pneg %p634
        $region106: #{tpu_custom_call.1} parent=11 // pred_check_branch
          %914 = sbr.rel (%p912) target = $region108
        $region107: #{tpu_custom_call.1} parent=11 // pred_region
          _
        $region108: #{tpu_custom_call.1} parent=11 // pred_fallthru
          _
        // Predicated region
        $region109: #{tpu_custom_call.1} parent=11 // pred_check
          %p915 = pneg %p655
        $region110: #{tpu_custom_call.1} parent=11 // pred_check_branch
          %917 = sbr.rel (%p915) target = $region112
        $region111: #{tpu_custom_call.1} parent=11 // pred_region
          _
        $region112: #{tpu_custom_call.1} parent=11 // pred_fallthru
          _
        // Predicated region
        $region113: #{tpu_custom_call.1} parent=11 // pred_check
          %p918 = pneg %p676
        $region114: #{tpu_custom_call.1} parent=11 // pred_check_branch
          %920 = sbr.rel (%p918) target = $region116
        $region115: #{tpu_custom_call.1} parent=11 // pred_region
          _
        $region116: #{tpu_custom_call.1} parent=11 // pred_fallthru
          _
        // Predicated region
        $region117: #{tpu_custom_call.1} parent=11 // pred_check
          %p921 = pneg %p697
        $region118: #{tpu_custom_call.1} parent=11 // pred_check_branch
          %923 = sbr.rel (%p921) target = $region120
        $region119: #{tpu_custom_call.1} parent=11 // pred_region
          _
        $region120: #{tpu_custom_call.1} parent=11 // pred_fallthru
          _
        // Predicated region
        $region121: #{tpu_custom_call.1} parent=11 // pred_check
          %p924 = pneg %p718
        $region122: #{tpu_custom_call.1} parent=11 // pred_check_branch
          %926 = sbr.rel (%p924) target = $region124
        $region123: #{tpu_custom_call.1} parent=11 // pred_region
          _
        $region124: #{tpu_custom_call.1} parent=11 // pred_fallthru
          _
        // Predicated region
        $region125: #{tpu_custom_call.1} parent=11 // pred_check
          %p927 = pneg %p739
        $region126: #{tpu_custom_call.1} parent=11 // pred_check_branch
          %929 = sbr.rel (%p927) target = $region128
        $region127: #{tpu_custom_call.1} parent=11 // pred_region
          _
        $region128: #{tpu_custom_call.1} parent=11 // pred_fallthru
          _
        // Predicated region
        $region129: #{tpu_custom_call.1} parent=11 // pred_check
          %p930 = pneg %p760
        $region130: #{tpu_custom_call.1} parent=11 // pred_check_branch
          %932 = sbr.rel (%p930) target = $region132
        $region131: #{tpu_custom_call.1} parent=11 // pred_region
          _
        $region132: #{tpu_custom_call.1} parent=11 // pred_fallthru
          _
        // Predicated region
        $region133: #{tpu_custom_call.1} parent=11 // pred_check
          %p933 = pneg %p781
        $region134: #{tpu_custom_call.1} parent=11 // pred_check_branch
          %935 = sbr.rel (%p933) target = $region136
        $region135: #{tpu_custom_call.1} parent=11 // pred_region
          _
        $region136: #{tpu_custom_call.1} parent=11 // pred_fallthru
          _
        // Predicated region
        $region137: #{tpu_custom_call.1} parent=11 // pred_check
          %p936 = pneg %p802
        $region138: #{tpu_custom_call.1} parent=11 // pred_check_branch
          %938 = sbr.rel (%p936) target = $region140
        $region139: #{tpu_custom_call.1} parent=11 // pred_region
          _
        $region140: #{tpu_custom_call.1} parent=11 // pred_fallthru
          _
      $region12: #{tpu_custom_call.1} parent=5 // pred_fallthru
        _
      %p939 = scmp.lt.s32.totalorder %s78, 2
      // Predicated region
      $region141: #{tpu_custom_call.1} parent=5 // pred_check
        %p940 = pneg %p939
      $region142: #{tpu_custom_call.1} parent=5 // pred_check_branch
        %942 = sbr.rel (%p940) target = $region144
      $region143: #{tpu_custom_call.1} parent=5 // pred_region
        // Predicated region
        $region145: #{tpu_custom_call.1} parent=143 // pred_check
          %p943 = pneg %p98
        $region146: #{tpu_custom_call.1} parent=143 // pred_check_branch
          %945 = sbr.rel (%p943) target = $region148
        $region147: #{tpu_custom_call.1} parent=143 // pred_region
          %p946 = scmp.lt.s32.totalorder %s78, 1
          %s947 = scalar_select %p946, %s78, 1
          %s948 = smul.addr %s947, 2
          %s949 = smul.addr %s948, 8
          %s950 = scalar_lea.vmem %s1, %s949
        $region148: #{tpu_custom_call.1} parent=143 // pred_fallthru
          _
        // Predicated region
        $region149: #{tpu_custom_call.1} parent=143 // pred_check
          %p951 = pneg %p124
        $region150: #{tpu_custom_call.1} parent=143 // pred_check_branch
          %953 = sbr.rel (%p951) target = $region152
        $region151: #{tpu_custom_call.1} parent=143 // pred_region
          %p954 = scmp.lt.s32.totalorder %s78, 1
          %s955 = scalar_select %p954, %s78, 1
          %s956 = scalar_lea.vmem %s3, %s955
        $region152: #{tpu_custom_call.1} parent=143 // pred_fallthru
          _
      $region144: #{tpu_custom_call.1} parent=5 // pred_fallthru
        _
      %p957 = scmp.le.s32.totalorder 1, %s78
      %p958 = scmp.lt.s32.totalorder %s78, 3
      %p959 = pnand %p957, %p958
      %p960 = pneg %p959
      // Predicated region
      $region153: #{tpu_custom_call.1} parent=5 // pred_check
        _
      $region154: #{tpu_custom_call.1} parent=5 // pred_check_branch
        %962 = sbr.rel (%p959) target = $region156
      $region155: #{tpu_custom_call.1} parent=5 // pred_region
        %s963 = ssub.s32 %s78, 1
        %p964 = scmp.lt.s32.totalorder %s83, 1
        %s965 = scalar_select %p964, %s83, 1
        %s966 = smul.addr %s965, 2
        %s967 = smul.addr %s966, 8
        %s968 = scalar_lea.vmem %s1, %s967
        %p969 = pneg %p104
        %p970 = pneg %p101
        %p971 = scmp.lt.s32.totalorder %s83, 1
        %s972 = scalar_select %p971, %s83, 1
        %s973 = scalar_lea.vmem %s3, %s972
        %p974 = pneg %p130
        %p975 = pneg %p127
        %p976 = pneg %p151
        %p977 = pneg %p148
        %p978 = pneg %p172
        %p979 = pneg %p169
        %p980 = pneg %p193
        %p981 = pneg %p190
        %p982 = pneg %p214
        %p983 = pneg %p211
        %p984 = pneg %p235
        %p985 = pneg %p232
        %p986 = pneg %p256
        %p987 = pneg %p253
        %p988 = pneg %p277
        %p989 = pneg %p274
        %p990 = pneg %p298
        %p991 = pneg %p295
        %p992 = pneg %p319
        %p993 = pneg %p316
        %p994 = pneg %p340
        %p995 = pneg %p337
        %p996 = pneg %p361
        %p997 = pneg %p358
        %p998 = pneg %p382
        %p999 = pneg %p379
        %p1000 = pneg %p403
        %p1001 = pneg %p400
        %p1002 = pneg %p424
        %p1003 = pneg %p421
        %p1004 = pneg %p445
        %p1005 = pneg %p442
        %p1006 = pneg %p466
        %p1007 = pneg %p463
        %p1008 = pneg %p487
        %p1009 = pneg %p484
        %p1010 = pneg %p508
        %p1011 = pneg %p505
        %p1012 = pneg %p529
        %p1013 = pneg %p526
        %p1014 = pneg %p550
        %p1015 = pneg %p547
        %p1016 = pneg %p571
        %p1017 = pneg %p568
        %p1018 = pneg %p592
        %p1019 = pneg %p589
        %p1020 = pneg %p613
        %p1021 = pneg %p610
        %p1022 = pneg %p634
        %p1023 = pneg %p631
        %p1024 = pneg %p655
        %p1025 = pneg %p652
        %p1026 = pneg %p676
        %p1027 = pneg %p673
        %p1028 = pneg %p697
        %p1029 = pneg %p694
        %p1030 = pneg %p718
        %p1031 = pneg %p715
        %p1032 = pneg %p739
        %p1033 = pneg %p736
        %p1034 = pneg %p760
        %p1035 = pneg %p757
        %p1036 = pneg %p781
        %p1037 = pneg %p778
        %p1038 = pneg %p802
        %p1039 = pneg %p799
        %p1040 = pneg %p828
        %p1041 = pneg %p825
        %s1042 = sand.u32 %s815, 1
        %s1043 = scalar_lea.sflag [#allocation3], %s1042
        %s1044 = sand.u32 %s815, 1
        %s1045 = scalar_lea.vmem [#allocation2], %s1044
        %p1046 = scmp.lt.s32.totalorder %s83, 1
        %s1047 = scalar_select %p1046, %s83, 1
        %s1048 = smul.addr %s1047, 2
        %s1049 = smul.addr %s1048, 8
        %s1050 = scalar_lea.vmem %s1, %s1049
        %p1051 = scmp.lt.s32.totalorder %s83, 1
        %s1052 = scalar_select %p1051, %s83, 1
        %s1053 = scalar_lea.vmem %s3, %s1052
        %v1055 = vld [vmem:[%s5] sm:$0xff]
        %v1056 = vld [vmem:[%s5 + $0x8] sm:$0xff]
        %v1057 = vld [vmem:[%s5 + $0x10] sm:$0xff]
        %v1058 = vld [vmem:[%s5 + $0x18] sm:$0xff]
        %v1059 = vld [vmem:[%s5 + $0x20] sm:$0xff]
        %v1060 = vld [vmem:[%s5 + $0x28] sm:$0xff]
        %v1061 = vld [vmem:[%s7] sm:$0x1]
        %v1062 = vld [vmem:[%s9] sm:$0x1]
        %v1063 = vld [vmem:[%s11] sm:$0xff]
        %v1064 = vld [vmem:[%s11 + $0x8] sm:$0xff]
        %v1065 = vld [vmem:[%s11 + $0x10] sm:$0x1]
        %v1066 = vld [vmem:[%s1050] sm:$0xff]
        %v1067 = vld [vmem:[%s1050 + $0x8] sm:$0xff]
        %v1068 = vpack.c.bf16 %v1067, %v1066
        %v1069 = vpack.c.bf16 %v1056, %v1055
        %v1070 = vpack.c.bf16 %v1058, %v1057
        %v1071 = vpack.c.bf16 %v1060, %v1059
        %v1073 = vperm.slane %v1061, 0
        %vm1075 = vcmask 392192
        %v1077 = vsel %vm1075, %v1068, 0
        %1079 = vmatpush.bf16.msra.mxu0 0
        %1080 = vmatpush.bf16.msra.mxu0 0
        %1081 = vmatpush.bf16.msra.mxu0 0
        %1082 = vmatpush.bf16.msra.mxu0 0
        %1083 = vmatpush.bf16.msra.mxu0 0
        %1084 = vmatpush.bf16.msra.mxu0 %v1071
        %1085 = vmatpush.bf16.msra.mxu0 %v1070
        %1086 = vmatpush.bf16.msra.mxu0 %v1069
        %1087 = vmatmul.bf16.gmra.mxu0 %v1077
        %v1088 = vpop.f32.mrf.mxu0
        %v1089 = vadd.f32 %v1073, %v1088
        %v1090 = vpop.f32.mrf.mxu0
        %v1091 = vadd.f32 %v1073, %v1090
        %1092 = vdwg.mxu0
        %vm1095 = vcmask 1040384
        %v1096 = vrot.slane %v1089, 7
        %v1097 = vrot.slane %v1091, 7
        %v1098 = vsel %vm1095, %v1096, %v1097
        %v1102 = vsel %vm1095, %v1062, %v1096
        %v1103 = vadd.f32 %v1102, %v1063
        %v1104 = vadd.f32 %v1098, %v1064
        %v1105 = vadd.f32 %v1097, %v1065
        %v1106 = vld [vmem:[%s13] sm:$0x1]
        %v1107 = vld [vmem:[%s15] sm:$0x1]
        %v1108 = vld [vmem:[%s17] sm:$0xff]
        %v1109 = vld [vmem:[%s17 + $0x8] sm:$0xff]
        %v1110 = vld [vmem:[%s17 + $0x10] sm:$0xff]
        %v1111 = vld [vmem:[%s17 + $0x18] sm:$0xff]
        %v1112 = vld [vmem:[%s19] sm:$0x1]
        %v1113 = vld [vmem:[%s21] sm:$0xff]
        %v1114 = vld [vmem:[%s21 + $0x8] sm:$0xff]
        %v1115 = vld [vmem:[%s21 + $0x10] sm:$0xff]
        %v1116 = vld [vmem:[%s21 + $0x18] sm:$0xff]
        %v1117 = vld [vmem:[%s23] sm:$0x1]
        %v1118 = vld [vmem:[%s25] sm:$0x1]
        %v1119 = vld [vmem:[%s27] sm:$0x1]
        %v1120 = vld [vmem:[%s29] sm:$0xff]
        %v1121 = vld [vmem:[%s29 + $0x8] sm:$0xff]
        %v1122 = vld [vmem:[%s29 + $0x10] sm:$0xff]
        %v1123 = vld [vmem:[%s29 + $0x18] sm:$0xff]
        %v1124 = vld [vmem:[%s31] sm:$0x1]
        %v1125 = vld [vmem:[%s33] sm:$0xff]
        %v1126 = vld [vmem:[%s33 + $0x8] sm:$0xff]
        %v1127 = vld [vmem:[%s33 + $0x10] sm:$0xff]
        %v1128 = vld [vmem:[%s33 + $0x18] sm:$0xff]
        %v1129 = vld [vmem:[%s33 + $0x20] sm:$0xff]
        %v1130 = vld [vmem:[%s33 + $0x28] sm:$0xff]
        %v1131 = vld [vmem:[%s33 + $0x30] sm:$0xff]
        %v1132 = vld [vmem:[%s33 + $0x38] sm:$0xff]
        %v1133 = vld [vmem:[%s33 + $0x40] sm:$0xff]
        %v1134 = vld [vmem:[%s33 + $0x48] sm:$0xff]
        %v1135 = vld [vmem:[%s33 + $0x50] sm:$0xff]
        %v1136 = vld [vmem:[%s33 + $0x58] sm:$0xff]
        %v1137 = vld [vmem:[%s33 + $0x60] sm:$0xff]
        %v1138 = vld [vmem:[%s33 + $0x68] sm:$0xff]
        %v1139 = vld [vmem:[%s33 + $0x70] sm:$0xff]
        %v1140 = vld [vmem:[%s33 + $0x78] sm:$0xff]
        %v1141 = vld [vmem:[%s35] sm:$0x1]
        %vm1142 = vcmask 261120
        %v1143 = vsel %vm1142, %v1103, 0.0
        %1144 = vadd.xlane.f32.xlu0 %v1143
        %v1145 = vpop.xlane.xlu0 %1144
        %v1146 = vsel %vm1142, %v1104, 0.0
        %1147 = vadd.xlane.f32.xlu0 %v1146
        %v1148 = vpop.xlane.xlu0 %1147
        %vm1149 = vcmask 253952
        %v1150 = vsel %vm1149, %v1105, 0.0
        %1151 = vadd.xlane.f32.xlu0 %v1150
        %v1152 = vpop.xlane.xlu0 %1151
        %v1153 = vrcp.pop 32.0
        %v1154 = vmul.f32 32.0, %v1153
        %v1155 = vsub.f32 1.0, %v1154
        %v1156 = vmul.f32 %v1153, %v1155
        %v1157 = vadd.f32 %v1153, %v1156
        %vm1158 = vweird.f32 %v1153
        %v1159 = vsel %vm1158, %v1153, %v1157
        %v1160 = vmul.f32 %v1145, %v1159
        %v1161 = vmul.f32 %v1148, %v1159
        %v1162 = vmul.f32 %v1152, %v1159
        %v1163 = vsub.f32 %v1103, %v1160
        %v1164 = vsub.f32 %v1104, %v1161
        %v1165 = vsub.f32 %v1105, %v1162
        %v1166 = vmul.f32 %v1163, %v1163
        %v1167 = vmul.f32 %v1164, %v1164
        %v1168 = vmul.f32 %v1165, %v1165
        %v1169 = vsel %vm1142, %v1166, 0.0
        %1170 = vadd.xlane.f32.xlu0 %v1169
        %v1171 = vpop.xlane.xlu0 %1170
        %v1172 = vsel %vm1142, %v1167, 0.0
        %1173 = vadd.xlane.f32.xlu0 %v1172
        %v1174 = vpop.xlane.xlu0 %1173
        %v1175 = vsel %vm1149, %v1168, 0.0
        %1176 = vadd.xlane.f32.xlu0 %v1175
        %v1177 = vpop.xlane.xlu0 %1176
        %v1178 = vmul.f32 %v1171, %v1159
        %v1179 = vmul.f32 %v1174, %v1159
        %v1180 = vmul.f32 %v1177, %v1159
        %v1181 = vadd.f32 %v1178, 1e-06
        %v1182 = vadd.f32 %v1179, 1e-06
        %v1183 = vadd.f32 %v1180, 1e-06
        %v1184 = vrsqrt.pop %v1181
        %v1185 = vmul.f32 %v1184, %v1181
        %v1186 = vmul.f32 %v1185, %v1184
        %v1187 = vmul.f32 0.5, %v1186
        %v1188 = vsub.f32 1.5, %v1187
        %v1189 = vmul.f32 %v1184, %v1188
        %vm1190 = vweird.f32 %v1181
        %vm1191 = vweird.f32 %v1184
        %vm1192 = vmor %vm1190, %vm1191
        %v1193 = vsel %vm1192, %v1184, %v1189
        %v1194 = vrsqrt.pop %v1182
        %v1195 = vmul.f32 %v1194, %v1182
        %v1196 = vmul.f32 %v1195, %v1194
        %v1197 = vmul.f32 0.5, %v1196
        %v1198 = vsub.f32 1.5, %v1197
        %v1199 = vmul.f32 %v1194, %v1198
        %vm1200 = vweird.f32 %v1182
        %vm1201 = vweird.f32 %v1194
        %vm1202 = vmor %vm1200, %vm1201
        %v1203 = vsel %vm1202, %v1194, %v1199
        %v1204 = vrsqrt.pop %v1183
        %v1205 = vmul.f32 %v1204, %v1183
        %v1206 = vmul.f32 %v1205, %v1204
        %v1207 = vmul.f32 0.5, %v1206
        %v1208 = vsub.f32 1.5, %v1207
        %v1209 = vmul.f32 %v1204, %v1208
        %vm1210 = vweird.f32 %v1183
        %vm1211 = vweird.f32 %v1204
        %vm1212 = vmor %vm1210, %vm1211
        %v1213 = vsel %vm1212, %v1204, %v1209
        %v1214 = vmul.f32 %v1163, %v1193
        %v1215 = vmul.f32 %v1164, %v1203
        %v1216 = vmul.f32 %v1165, %v1213
        %v1218 = vperm.slane %v1106, 0
        %v1220 = vmul.f32 %v1214, %v1218
        %v1221 = vmul.f32 %v1215, %v1218
        %v1222 = vmul.f32 %v1216, %v1218
        %v1224 = vperm.slane %v1107, 0
        %v1226 = vadd.f32 %v1220, %v1224
        %v1227 = vadd.f32 %v1221, %v1224
        %v1228 = vadd.f32 %v1222, %v1224
        %v1229 = vpack.c.bf16 %v1227, %v1226
        %v1230 = vpack.c.bf16 %v1228, %v1228
        %v1231 = vpack.c.bf16 %v1109, %v1108
        %v1232 = vpack.c.bf16 %v1111, %v1110
        %v1234 = vperm.slane %v1112, 0
        %v1237 = vsel %vm1142, %v1229, 0
        %v1240 = vsel %vm1142, %v1230, 0
        %1242 = vmatpush.bf16.msra.mxu0 0
        %1243 = vmatpush.bf16.msra.mxu0 0
        %1244 = vmatpush.bf16.msra.mxu0 0
        %1245 = vmatpush.bf16.msra.mxu0 0
        %1246 = vmatpush.bf16.msra.mxu0 0
        %1247 = vmatpush.bf16.msra.mxu0 0
        %1248 = vmatpush.bf16.msra.mxu0 %v1232
        %1249 = vmatpush.bf16.msra.mxu0 %v1231
        %1250 = vmatmul.bf16.gmra.mxu0 %v1237
        %v1251 = vpop.f32.mrf.mxu0
        %v1252 = vadd.f32 %v1234, %v1251
        %v1253 = vpop.f32.mrf.mxu0
        %v1254 = vadd.f32 %v1234, %v1253
        %1255 = vmatmul.bf16.gmra.mxu0 %v1240
        %v1256 = vpop.f32.mrf.mxu0
        %v1257 = vadd.f32 %v1234, %v1256
        %v1258 = vpop.f32.mrf.mxu0
        %1259 = vdwg.mxu0
        %v1260 = vpack.c.bf16 %v1254, %v1252
        %v1261 = vpack.c.bf16 %v1257, %v1257
        %1264 = vrot.lane.b32.xlu0 %v1260, 96
        %v1265 = vpop.permute.xlu0 %1264
        %1266 = vrot.lane.b32.xlu0 %v1261, 96
        %v1267 = vpop.permute.xlu0 %1266
        %vm1268 = vcmask 64512
        %v1270 = vsel %vm1268, %v1260, 0
        %v1273 = vsel %vm1268, %v1261, 0
        %v1276 = vsel %vm1268, %v1265, 0
        %v1279 = vsel %vm1268, %v1267, 0
        %1281 = vmatpush.bf16.xpose.msra.mxu0 0
        %1282 = vmatpush.bf16.xpose.msra.mxu0 0
        %1283 = vmatpush.bf16.xpose.msra.mxu0 0
        %1284 = vmatpush.bf16.xpose.msra.mxu0 0
        %1285 = vmatpush.bf16.xpose.msra.mxu0 0
        %1286 = vmatpush.bf16.xpose.msra.mxu0 0
        %1287 = vmatpush.bf16.xpose.msra.mxu0 %v1279
        %1288 = vmatpush.bf16.xpose.msra.mxu0 %v1276
        %1289 = vmatmul.bf16.gmra.mxu0 %v1270
        %v1290 = vpop.f32.mrf.mxu0
        %v1291 = vadd.f32 0.0, %v1290
        %v1292 = vpop.f32.mrf.mxu0
        %v1293 = vadd.f32 0.0, %v1292
        %1294 = vmatmul.bf16.gmra.mxu0 %v1273
        %v1295 = vpop.f32.mrf.mxu0
        %v1296 = vadd.f32 0.0, %v1295
        %v1297 = vpop.f32.mrf.mxu0
        %1298 = vdwg.mxu0
        %v1299 = vmul.f32 %v1291, 0.35355338
        %v1300 = vmul.f32 %v1293, 0.35355338
        %v1301 = vmul.f32 %v1296, 0.35355338
        %vm1302 = vcmask 138240
        %v1303 = vsel %vm1302, %v1299, -inf
        %1304 = vmax.xlane.f32.xlu0 %v1303
        %v1305 = vpop.xlane.xlu0 %1304
        %v1306 = vsel %vm1302, %v1300, -inf
        %1307 = vmax.xlane.f32.xlu0 %v1306
        %v1308 = vpop.xlane.xlu0 %1307
        %vm1309 = vcmask 131072
        %v1310 = vsel %vm1309, %v1301, -inf
        %1311 = vmax.xlane.f32.xlu0 %v1310
        %v1312 = vpop.xlane.xlu0 %1311
        %v1313 = vsub.f32 %v1299, %v1305
        %v1314 = vsub.f32 %v1300, %v1308
        %v1315 = vsub.f32 %v1301, %v1312
        %v1316 = vmul.f32 %v1313, 1.442695
        %v1317 = vpow.pop %v1316
        %v1318 = vmul.f32 %v1314, 1.442695
        %v1319 = vpow.pop %v1318
        %v1320 = vmul.f32 %v1315, 1.442695
        %v1321 = vpow.pop %v1320
        %v1322 = vsel %vm1302, %v1317, 0.0
        %1323 = vadd.xlane.f32.xlu0 %v1322
        %v1324 = vpop.xlane.xlu0 %1323
        %v1325 = vsel %vm1302, %v1319, 0.0
        %1326 = vadd.xlane.f32.xlu0 %v1325
        %v1327 = vpop.xlane.xlu0 %1326
        %v1328 = vsel %vm1309, %v1321, 0.0
        %1329 = vadd.xlane.f32.xlu0 %v1328
        %v1330 = vpop.xlane.xlu0 %1329
        %v1331 = vrcp.pop %v1324
        %v1332 = vmul.f32 %v1324, %v1331
        %v1333 = vsub.f32 1.0, %v1332
        %v1334 = vmul.f32 %v1331, %v1333
        %v1335 = vadd.f32 %v1331, %v1334
        %vm1336 = vweird.f32 %v1324
        %vm1337 = vweird.f32 %v1331
        %vm1338 = vmor %vm1336, %vm1337
        %v1339 = vsel %vm1338, %v1331, %v1335
        %v1340 = vand.u32 2147483647, %v1324
        %vm1341 = vcmp.eq.f32.partialorder %v1340, 8.507059e+37
        %v1342 = vand.u32 %v1324, 2147483648
        %v1343 = vor.u32 1.1754944e-38, %v1342
        %v1344 = vsel %vm1341, %v1343, %v1339
        %v1345 = vmul.f32 %v1317, %v1344
        %v1346 = vrcp.pop %v1327
        %v1347 = vmul.f32 %v1327, %v1346
        %v1348 = vsub.f32 1.0, %v1347
        %v1349 = vmul.f32 %v1346, %v1348
        %v1350 = vadd.f32 %v1346, %v1349
        %vm1351 = vweird.f32 %v1327
        %vm1352 = vweird.f32 %v1346
        %vm1353 = vmor %vm1351, %vm1352
        %v1354 = vsel %vm1353, %v1346, %v1350
        %v1355 = vand.u32 2147483647, %v1327
        %vm1356 = vcmp.eq.f32.partialorder %v1355, 8.507059e+37
        %v1357 = vand.u32 %v1327, 2147483648
        %v1358 = vor.u32 1.1754944e-38, %v1357
        %v1359 = vsel %vm1356, %v1358, %v1354
        %v1360 = vmul.f32 %v1319, %v1359
        %v1361 = vrcp.pop %v1330
        %v1362 = vmul.f32 %v1330, %v1361
        %v1363 = vsub.f32 1.0, %v1362
        %v1364 = vmul.f32 %v1361, %v1363
        %v1365 = vadd.f32 %v1361, %v1364
        %vm1366 = vweird.f32 %v1330
        %vm1367 = vweird.f32 %v1361
        %vm1368 = vmor %vm1366, %vm1367
        %v1369 = vsel %vm1368, %v1361, %v1365
        %v1370 = vand.u32 2147483647, %v1330
        %vm1371 = vcmp.eq.f32.partialorder %v1370, 8.507059e+37
        %v1372 = vand.u32 %v1330, 2147483648
        %v1373 = vor.u32 1.1754944e-38, %v1372
        %v1374 = vsel %vm1371, %v1373, %v1369
        %v1375 = vmul.f32 %v1321, %v1374
        %v1376 = vpack.c.bf16 %v1360, %v1345
        %v1377 = vpack.c.bf16 %v1375, %v1375
        %1378 = vrot.lane.b32.xlu0 %v1260, 64
        %v1379 = vpop.permute.xlu0 %1378
        %1380 = vrot.lane.b32.xlu0 %v1261, 64
        %v1381 = vpop.permute.xlu0 %1380
        %v1384 = vsel %vm1302, %v1376, 0
        %v1387 = vsel %vm1302, %v1377, 0
        %v1389 = vsel 0, 4294967295, 65535
        %v1390 = vsel %vm1095, %v1389, 0
        %v1392 = vand.u32 %v1381, %v1390
        %1394 = vmatpush.bf16.msra.mxu0 0
        %1395 = vmatpush.bf16.msra.mxu0 0
        %1396 = vmatpush.bf16.msra.mxu0 0
        %1397 = vmatpush.bf16.msra.mxu0 0
        %1398 = vmatpush.bf16.msra.mxu0 0
        %1399 = vmatpush.bf16.msra.mxu0 0
        %1400 = vmatpush.bf16.msra.mxu0 %v1392
        %1401 = vmatpush.bf16.msra.mxu0 %v1379
        %1402 = vmatmul.bf16.gmra.mxu0 %v1384
        %v1403 = vpop.f32.mrf.mxu0
        %v1404 = vadd.f32 0.0, %v1403
        %v1405 = vpop.f32.mrf.mxu0
        %v1406 = vadd.f32 0.0, %v1405
        %1407 = vmatmul.bf16.gmra.mxu0 %v1387
        %v1408 = vpop.f32.mrf.mxu0
        %v1409 = vadd.f32 0.0, %v1408
        %v1410 = vpop.f32.mrf.mxu0
        %1411 = vdwg.mxu0
        %v1412 = vpack.c.bf16 %v1406, %v1404
        %v1413 = vpack.c.bf16 %v1409, %v1409
        %v1414 = vpack.c.bf16 %v1113, %v1113
        %1415 = vrot.lane.b32.xlu0 %v1260, 120
        %v1416 = vpop.permute.xlu0 %1415
        %1417 = vrot.lane.b32.xlu0 %v1261, 120
        %v1418 = vpop.permute.xlu0 %1417
        %1419 = vrot.lane.b32.xlu0 %v1260, 88
        %v1420 = vpop.permute.xlu0 %1419
        %1421 = vrot.lane.b32.xlu0 %v1261, 88
        %v1422 = vpop.permute.xlu0 %1421
        %v1424 = vsel %vm1268, %v1416, 0
        %v1427 = vsel %vm1268, %v1418, 0
        %v1430 = vsel %vm1268, %v1420, 0
        %v1433 = vsel %vm1268, %v1422, 0
        %1435 = vmatpush.bf16.xpose.msra.mxu0 0
        %1436 = vmatpush.bf16.xpose.msra.mxu0 0
        %1437 = vmatpush.bf16.xpose.msra.mxu0 0
        %1438 = vmatpush.bf16.xpose.msra.mxu0 0
        %1439 = vmatpush.bf16.xpose.msra.mxu0 0
        %1440 = vmatpush.bf16.xpose.msra.mxu0 0
        %1441 = vmatpush.bf16.xpose.msra.mxu0 %v1433
        %1442 = vmatpush.bf16.xpose.msra.mxu0 %v1430
        %1443 = vmatmul.bf16.gmra.mxu0 %v1424
        %v1444 = vpop.f32.mrf.mxu0
        %v1445 = vadd.f32 0.0, %v1444
        %v1446 = vpop.f32.mrf.mxu0
        %v1447 = vadd.f32 0.0, %v1446
        %1448 = vmatmul.bf16.gmra.mxu0 %v1427
        %v1449 = vpop.f32.mrf.mxu0
        %v1450 = vadd.f32 0.0, %v1449
        %v1451 = vpop.f32.mrf.mxu0
        %1452 = vdwg.mxu0
        %v1453 = vmul.f32 %v1445, 0.35355338
        %v1454 = vmul.f32 %v1447, 0.35355338
        %v1455 = vmul.f32 %v1450, 0.35355338
        %v1456 = vsel %vm1302, %v1453, -inf
        %1457 = vmax.xlane.f32.xlu0 %v1456
        %v1458 = vpop.xlane.xlu0 %1457
        %v1459 = vsel %vm1302, %v1454, -inf
        %1460 = vmax.xlane.f32.xlu0 %v1459
        %v1461 = vpop.xlane.xlu0 %1460
        %v1462 = vsel %vm1309, %v1455, -inf
        %1463 = vmax.xlane.f32.xlu0 %v1462
        %v1464 = vpop.xlane.xlu0 %1463
        %v1465 = vsub.f32 %v1453, %v1458
        %v1466 = vsub.f32 %v1454, %v1461
        %v1467 = vsub.f32 %v1455, %v1464
        %v1468 = vmul.f32 %v1465, 1.442695
        %v1469 = vpow.pop %v1468
        %v1470 = vmul.f32 %v1466, 1.442695
        %v1471 = vpow.pop %v1470
        %v1472 = vmul.f32 %v1467, 1.442695
        %v1473 = vpow.pop %v1472
        %v1474 = vsel %vm1302, %v1469, 0.0
        %1475 = vadd.xlane.f32.xlu0 %v1474
        %v1476 = vpop.xlane.xlu0 %1475
        %v1477 = vsel %vm1302, %v1471, 0.0
        %1478 = vadd.xlane.f32.xlu0 %v1477
        %v1479 = vpop.xlane.xlu0 %1478
        %v1480 = vsel %vm1309, %v1473, 0.0
        %1481 = vadd.xlane.f32.xlu0 %v1480
        %v1482 = vpop.xlane.xlu0 %1481
        %v1483 = vrcp.pop %v1476
        %v1484 = vmul.f32 %v1476, %v1483
        %v1485 = vsub.f32 1.0, %v1484
        %v1486 = vmul.f32 %v1483, %v1485
        %v1487 = vadd.f32 %v1483, %v1486
        %vm1488 = vweird.f32 %v1476
        %vm1489 = vweird.f32 %v1483
        %vm1490 = vmor %vm1488, %vm1489
        %v1491 = vsel %vm1490, %v1483, %v1487
        %v1492 = vand.u32 2147483647, %v1476
        %vm1493 = vcmp.eq.f32.partialorder %v1492, 8.507059e+37
        %v1494 = vand.u32 %v1476, 2147483648
        %v1495 = vor.u32 1.1754944e-38, %v1494
        %v1496 = vsel %vm1493, %v1495, %v1491
        %v1497 = vmul.f32 %v1469, %v1496
        %v1498 = vrcp.pop %v1479
        %v1499 = vmul.f32 %v1479, %v1498
        %v1500 = vsub.f32 1.0, %v1499
        %v1501 = vmul.f32 %v1498, %v1500
        %v1502 = vadd.f32 %v1498, %v1501
        %vm1503 = vweird.f32 %v1479
        %vm1504 = vweird.f32 %v1498
        %vm1505 = vmor %vm1503, %vm1504
        %v1506 = vsel %vm1505, %v1498, %v1502
        %v1507 = vand.u32 2147483647, %v1479
        %vm1508 = vcmp.eq.f32.partialorder %v1507, 8.507059e+37
        %v1509 = vand.u32 %v1479, 2147483648
        %v1510 = vor.u32 1.1754944e-38, %v1509
        %v1511 = vsel %vm1508, %v1510, %v1506
        %v1512 = vmul.f32 %v1471, %v1511
        %v1513 = vrcp.pop %v1482
        %v1514 = vmul.f32 %v1482, %v1513
        %v1515 = vsub.f32 1.0, %v1514
        %v1516 = vmul.f32 %v1513, %v1515
        %v1517 = vadd.f32 %v1513, %v1516
        %vm1518 = vweird.f32 %v1482
        %vm1519 = vweird.f32 %v1513
        %vm1520 = vmor %vm1518, %vm1519
        %v1521 = vsel %vm1520, %v1513, %v1517
        %v1522 = vand.u32 2147483647, %v1482
        %vm1523 = vcmp.eq.f32.partialorder %v1522, 8.507059e+37
        %v1524 = vand.u32 %v1482, 2147483648
        %v1525 = vor.u32 1.1754944e-38, %v1524
        %v1526 = vsel %vm1523, %v1525, %v1521
        %v1527 = vmul.f32 %v1473, %v1526
        %v1528 = vpack.c.bf16 %v1512, %v1497
        %v1529 = vpack.c.bf16 %v1527, %v1527
        %1530 = vrot.lane.b32.xlu0 %v1260, 56
        %v1531 = vpop.permute.xlu0 %1530
        %1532 = vrot.lane.b32.xlu0 %v1261, 56
        %v1533 = vpop.permute.xlu0 %1532
        %v1536 = vsel %vm1302, %v1528, 0
        %v1539 = vsel %vm1302, %v1529, 0
        %v1542 = vand.u32 %v1533, %v1390
        %1544 = vmatpush.bf16.msra.mxu0 0
        %1545 = vmatpush.bf16.msra.mxu0 0
        %1546 = vmatpush.bf16.msra.mxu0 0
        %1547 = vmatpush.bf16.msra.mxu0 0
        %1548 = vmatpush.bf16.msra.mxu0 0
        %1549 = vmatpush.bf16.msra.mxu0 0
        %1550 = vmatpush.bf16.msra.mxu0 %v1542
        %1551 = vmatpush.bf16.msra.mxu0 %v1531
        %1552 = vmatmul.bf16.gmra.mxu0 %v1536
        %v1553 = vpop.f32.mrf.mxu0
        %v1554 = vadd.f32 0.0, %v1553
        %v1555 = vpop.f32.mrf.mxu0
        %v1556 = vadd.f32 0.0, %v1555
        %1557 = vmatmul.bf16.gmra.mxu0 %v1539
        %v1558 = vpop.f32.mrf.mxu0
        %v1559 = vadd.f32 0.0, %v1558
        %v1560 = vpop.f32.mrf.mxu0
        %1561 = vdwg.mxu0
        %v1562 = vpack.c.bf16 %v1556, %v1554
        %v1563 = vpack.c.bf16 %v1559, %v1559
        %v1564 = vpack.c.bf16 %v1114, %v1114
        %v1566 = vsel %vm1268, %v1562, 0
        %v1569 = vsel %vm1268, %v1563, 0
        %vm1571 = vcmask 1043456
        %v1573 = vsel %vm1571, %v1564, 0
        %1575 = vmatpush.bf16.msra.mxu0 0
        %1576 = vmatpush.bf16.msra.mxu0 0
        %1577 = vmatpush.bf16.msra.mxu0 0
        %1578 = vmatpush.bf16.msra.mxu0 0
        %1579 = vmatpush.bf16.msra.mxu0 0
        %1580 = vmatpush.bf16.msra.mxu0 0
        %1581 = vmatpush.bf16.msra.mxu0 0
        %1582 = vmatpush.bf16.msra.mxu0 %v1573
        %1583 = vmatmul.bf16.gmra.mxu0 %v1566
        %v1584 = vpop.f32.mrf.mxu0
        %v1585 = vadd.f32 0.0, %v1584
        %v1586 = vpop.f32.mrf.mxu0
        %v1587 = vadd.f32 0.0, %v1586
        %1588 = vmatmul.bf16.gmra.mxu0 %v1569
        %v1589 = vpop.f32.mrf.mxu0
        %v1590 = vadd.f32 0.0, %v1589
        %v1591 = vpop.f32.mrf.mxu0
        %1592 = vdwg.mxu0
        %v1594 = vsel %vm1268, %v1412, 0
        %v1597 = vsel %vm1268, %v1413, 0
        %v1600 = vsel %vm1571, %v1414, 0
        %1602 = vmatpush.bf16.msra.mxu0 0
        %1603 = vmatpush.bf16.msra.mxu0 0
        %1604 = vmatpush.bf16.msra.mxu0 0
        %1605 = vmatpush.bf16.msra.mxu0 0
        %1606 = vmatpush.bf16.msra.mxu0 0
        %1607 = vmatpush.bf16.msra.mxu0 0
        %1608 = vmatpush.bf16.msra.mxu0 0
        %1609 = vmatpush.bf16.msra.mxu0 %v1600
        %1610 = vmatmul.bf16.gmra.mxu0 %v1594
        %v1611 = vpop.f32.mrf.mxu0
        %v1612 = vadd.f32 %v1585, %v1611
        %v1613 = vpop.f32.mrf.mxu0
        %v1614 = vadd.f32 %v1587, %v1613
        %1615 = vmatmul.bf16.gmra.mxu0 %v1597
        %v1616 = vpop.f32.mrf.mxu0
        %v1617 = vadd.f32 %v1590, %v1616
        %v1618 = vpop.f32.mrf.mxu0
        %1619 = vdwg.mxu0
        %1620 = vrot.lane.b32.xlu0 %v1260, 112
        %v1621 = vpop.permute.xlu0 %1620
        %1622 = vrot.lane.b32.xlu0 %v1261, 112
        %v1623 = vpop.permute.xlu0 %1622
        %1624 = vrot.lane.b32.xlu0 %v1260, 80
        %v1625 = vpop.permute.xlu0 %1624
        %1626 = vrot.lane.b32.xlu0 %v1261, 80
        %v1627 = vpop.permute.xlu0 %1626
        %v1629 = vsel %vm1268, %v1621, 0
        %v1632 = vsel %vm1268, %v1623, 0
        %v1635 = vsel %vm1268, %v1625, 0
        %v1638 = vsel %vm1268, %v1627, 0
        %1640 = vmatpush.bf16.xpose.msra.mxu0 0
        %1641 = vmatpush.bf16.xpose.msra.mxu0 0
        %1642 = vmatpush.bf16.xpose.msra.mxu0 0
        %1643 = vmatpush.bf16.xpose.msra.mxu0 0
        %1644 = vmatpush.bf16.xpose.msra.mxu0 0
        %1645 = vmatpush.bf16.xpose.msra.mxu0 0
        %1646 = vmatpush.bf16.xpose.msra.mxu0 %v1638
        %1647 = vmatpush.bf16.xpose.msra.mxu0 %v1635
        %1648 = vmatmul.bf16.gmra.mxu0 %v1629
        %v1649 = vpop.f32.mrf.mxu0
        %v1650 = vadd.f32 0.0, %v1649
        %v1651 = vpop.f32.mrf.mxu0
        %v1652 = vadd.f32 0.0, %v1651
        %1653 = vmatmul.bf16.gmra.mxu0 %v1632
        %v1654 = vpop.f32.mrf.mxu0
        %v1655 = vadd.f32 0.0, %v1654
        %v1656 = vpop.f32.mrf.mxu0
        %1657 = vdwg.mxu0
        %v1658 = vmul.f32 %v1650, 0.35355338
        %v1659 = vmul.f32 %v1652, 0.35355338
        %v1660 = vmul.f32 %v1655, 0.35355338
        %v1661 = vsel %vm1302, %v1658, -inf
        %1662 = vmax.xlane.f32.xlu0 %v1661
        %v1663 = vpop.xlane.xlu0 %1662
        %v1664 = vsel %vm1302, %v1659, -inf
        %1665 = vmax.xlane.f32.xlu0 %v1664
        %v1666 = vpop.xlane.xlu0 %1665
        %v1667 = vsel %vm1309, %v1660, -inf
        %1668 = vmax.xlane.f32.xlu0 %v1667
        %v1669 = vpop.xlane.xlu0 %1668
        %v1670 = vsub.f32 %v1658, %v1663
        %v1671 = vsub.f32 %v1659, %v1666
        %v1672 = vsub.f32 %v1660, %v1669
        %v1673 = vmul.f32 %v1670, 1.442695
        %v1674 = vpow.pop %v1673
        %v1675 = vmul.f32 %v1671, 1.442695
        %v1676 = vpow.pop %v1675
        %v1677 = vmul.f32 %v1672, 1.442695
        %v1678 = vpow.pop %v1677
        %v1679 = vsel %vm1302, %v1674, 0.0
        %1680 = vadd.xlane.f32.xlu0 %v1679
        %v1681 = vpop.xlane.xlu0 %1680
        %v1682 = vsel %vm1302, %v1676, 0.0
        %1683 = vadd.xlane.f32.xlu0 %v1682
        %v1684 = vpop.xlane.xlu0 %1683
        %v1685 = vsel %vm1309, %v1678, 0.0
        %1686 = vadd.xlane.f32.xlu0 %v1685
        %v1687 = vpop.xlane.xlu0 %1686
        %v1688 = vrcp.pop %v1681
        %v1689 = vmul.f32 %v1681, %v1688
        %v1690 = vsub.f32 1.0, %v1689
        %v1691 = vmul.f32 %v1688, %v1690
        %v1692 = vadd.f32 %v1688, %v1691
        %vm1693 = vweird.f32 %v1681
        %vm1694 = vweird.f32 %v1688
        %vm1695 = vmor %vm1693, %vm1694
        %v1696 = vsel %vm1695, %v1688, %v1692
        %v1697 = vand.u32 2147483647, %v1681
        %vm1698 = vcmp.eq.f32.partialorder %v1697, 8.507059e+37
        %v1699 = vand.u32 %v1681, 2147483648
        %v1700 = vor.u32 1.1754944e-38, %v1699
        %v1701 = vsel %vm1698, %v1700, %v1696
        %v1702 = vmul.f32 %v1674, %v1701
        %v1703 = vrcp.pop %v1684
        %v1704 = vmul.f32 %v1684, %v1703
        %v1705 = vsub.f32 1.0, %v1704
        %v1706 = vmul.f32 %v1703, %v1705
        %v1707 = vadd.f32 %v1703, %v1706
        %vm1708 = vweird.f32 %v1684
        %vm1709 = vweird.f32 %v1703
        %vm1710 = vmor %vm1708, %vm1709
        %v1711 = vsel %vm1710, %v1703, %v1707
        %v1712 = vand.u32 2147483647, %v1684
        %vm1713 = vcmp.eq.f32.partialorder %v1712, 8.507059e+37
        %v1714 = vand.u32 %v1684, 2147483648
        %v1715 = vor.u32 1.1754944e-38, %v1714
        %v1716 = vsel %vm1713, %v1715, %v1711
        %v1717 = vmul.f32 %v1676, %v1716
        %v1718 = vrcp.pop %v1687
        %v1719 = vmul.f32 %v1687, %v1718
        %v1720 = vsub.f32 1.0, %v1719
        %v1721 = vmul.f32 %v1718, %v1720
        %v1722 = vadd.f32 %v1718, %v1721
        %vm1723 = vweird.f32 %v1687
        %vm1724 = vweird.f32 %v1718
        %vm1725 = vmor %vm1723, %vm1724
        %v1726 = vsel %vm1725, %v1718, %v1722
        %v1727 = vand.u32 2147483647, %v1687
        %vm1728 = vcmp.eq.f32.partialorder %v1727, 8.507059e+37
        %v1729 = vand.u32 %v1687, 2147483648
        %v1730 = vor.u32 1.1754944e-38, %v1729
        %v1731 = vsel %vm1728, %v1730, %v1726
        %v1732 = vmul.f32 %v1678, %v1731
        %v1733 = vpack.c.bf16 %v1717, %v1702
        %v1734 = vpack.c.bf16 %v1732, %v1732
        %1735 = vrot.lane.b32.xlu0 %v1260, 48
        %v1736 = vpop.permute.xlu0 %1735
        %1737 = vrot.lane.b32.xlu0 %v1261, 48
        %v1738 = vpop.permute.xlu0 %1737
        %v1741 = vsel %vm1302, %v1733, 0
        %v1744 = vsel %vm1302, %v1734, 0
        %v1747 = vand.u32 %v1738, %v1390
        %1749 = vmatpush.bf16.msra.mxu0 0
        %1750 = vmatpush.bf16.msra.mxu0 0
        %1751 = vmatpush.bf16.msra.mxu0 0
        %1752 = vmatpush.bf16.msra.mxu0 0
        %1753 = vmatpush.bf16.msra.mxu0 0
        %1754 = vmatpush.bf16.msra.mxu0 0
        %1755 = vmatpush.bf16.msra.mxu0 %v1747
        %1756 = vmatpush.bf16.msra.mxu0 %v1736
        %1757 = vmatmul.bf16.gmra.mxu0 %v1741
        %v1758 = vpop.f32.mrf.mxu0
        %v1759 = vadd.f32 0.0, %v1758
        %v1760 = vpop.f32.mrf.mxu0
        %v1761 = vadd.f32 0.0, %v1760
        %1762 = vmatmul.bf16.gmra.mxu0 %v1744
        %v1763 = vpop.f32.mrf.mxu0
        %v1764 = vadd.f32 0.0, %v1763
        %v1765 = vpop.f32.mrf.mxu0
        %1766 = vdwg.mxu0
        %v1767 = vpack.c.bf16 %v1761, %v1759
        %v1768 = vpack.c.bf16 %v1764, %v1764
        %v1769 = vpack.c.bf16 %v1115, %v1115
        %v1771 = vsel %vm1268, %v1767, 0
        %v1774 = vsel %vm1268, %v1768, 0
        %v1777 = vsel %vm1571, %v1769, 0
        %1779 = vmatpush.bf16.msra.mxu0 0
        %1780 = vmatpush.bf16.msra.mxu0 0
        %1781 = vmatpush.bf16.msra.mxu0 0
        %1782 = vmatpush.bf16.msra.mxu0 0
        %1783 = vmatpush.bf16.msra.mxu0 0
        %1784 = vmatpush.bf16.msra.mxu0 0
        %1785 = vmatpush.bf16.msra.mxu0 0
        %1786 = vmatpush.bf16.msra.mxu0 %v1777
        %1787 = vmatmul.bf16.gmra.mxu0 %v1771
        %v1788 = vpop.f32.mrf.mxu0
        %v1789 = vadd.f32 0.0, %v1788
        %v1790 = vpop.f32.mrf.mxu0
        %v1791 = vadd.f32 0.0, %v1790
        %1792 = vmatmul.bf16.gmra.mxu0 %v1774
        %v1793 = vpop.f32.mrf.mxu0
        %v1794 = vadd.f32 0.0, %v1793
        %v1795 = vpop.f32.mrf.mxu0
        %1796 = vdwg.mxu0
        %v1797 = vadd.f32 %v1612, %v1789
        %v1798 = vadd.f32 %v1614, %v1791
        %v1799 = vadd.f32 %v1617, %v1794
        %1800 = vrot.lane.b32.xlu0 %v1260, 104
        %v1801 = vpop.permute.xlu0 %1800
        %1802 = vrot.lane.b32.xlu0 %v1261, 104
        %v1803 = vpop.permute.xlu0 %1802
        %1804 = vrot.lane.b32.xlu0 %v1260, 72
        %v1805 = vpop.permute.xlu0 %1804
        %1806 = vrot.lane.b32.xlu0 %v1261, 72
        %v1807 = vpop.permute.xlu0 %1806
        %v1809 = vsel %vm1268, %v1801, 0
        %v1812 = vsel %vm1268, %v1803, 0
        %v1815 = vsel %vm1268, %v1805, 0
        %v1818 = vsel %vm1268, %v1807, 0
        %1820 = vmatpush.bf16.xpose.msra.mxu0 0
        %1821 = vmatpush.bf16.xpose.msra.mxu0 0
        %1822 = vmatpush.bf16.xpose.msra.mxu0 0
        %1823 = vmatpush.bf16.xpose.msra.mxu0 0
        %1824 = vmatpush.bf16.xpose.msra.mxu0 0
        %1825 = vmatpush.bf16.xpose.msra.mxu0 0
        %1826 = vmatpush.bf16.xpose.msra.mxu0 %v1818
        %1827 = vmatpush.bf16.xpose.msra.mxu0 %v1815
        %1828 = vmatmul.bf16.gmra.mxu0 %v1809
        %v1829 = vpop.f32.mrf.mxu0
        %v1830 = vadd.f32 0.0, %v1829
        %v1831 = vpop.f32.mrf.mxu0
        %v1832 = vadd.f32 0.0, %v1831
        %1833 = vmatmul.bf16.gmra.mxu0 %v1812
        %v1834 = vpop.f32.mrf.mxu0
        %v1835 = vadd.f32 0.0, %v1834
        %v1836 = vpop.f32.mrf.mxu0
        %1837 = vdwg.mxu0
        %v1838 = vmul.f32 %v1830, 0.35355338
        %v1839 = vmul.f32 %v1832, 0.35355338
        %v1840 = vmul.f32 %v1835, 0.35355338
        %v1841 = vsel %vm1302, %v1838, -inf
        %1842 = vmax.xlane.f32.xlu0 %v1841
        %v1843 = vpop.xlane.xlu0 %1842
        %v1844 = vsel %vm1302, %v1839, -inf
        %1845 = vmax.xlane.f32.xlu0 %v1844
        %v1846 = vpop.xlane.xlu0 %1845
        %v1847 = vsel %vm1309, %v1840, -inf
        %1848 = vmax.xlane.f32.xlu0 %v1847
        %v1849 = vpop.xlane.xlu0 %1848
        %v1850 = vsub.f32 %v1838, %v1843
        %v1851 = vsub.f32 %v1839, %v1846
        %v1852 = vsub.f32 %v1840, %v1849
        %v1853 = vmul.f32 %v1850, 1.442695
        %v1854 = vpow.pop %v1853
        %v1855 = vmul.f32 %v1851, 1.442695
        %v1856 = vpow.pop %v1855
        %v1857 = vmul.f32 %v1852, 1.442695
        %v1858 = vpow.pop %v1857
        %v1859 = vsel %vm1302, %v1854, 0.0
        %1860 = vadd.xlane.f32.xlu0 %v1859
        %v1861 = vpop.xlane.xlu0 %1860
        %v1862 = vsel %vm1302, %v1856, 0.0
        %1863 = vadd.xlane.f32.xlu0 %v1862
        %v1864 = vpop.xlane.xlu0 %1863
        %v1865 = vsel %vm1309, %v1858, 0.0
        %1866 = vadd.xlane.f32.xlu0 %v1865
        %v1867 = vpop.xlane.xlu0 %1866
        %v1868 = vrcp.pop %v1861
        %v1869 = vmul.f32 %v1861, %v1868
        %v1870 = vsub.f32 1.0, %v1869
        %v1871 = vmul.f32 %v1868, %v1870
        %v1872 = vadd.f32 %v1868, %v1871
        %vm1873 = vweird.f32 %v1861
        %vm1874 = vweird.f32 %v1868
        %vm1875 = vmor %vm1873, %vm1874
        %v1876 = vsel %vm1875, %v1868, %v1872
        %v1877 = vand.u32 2147483647, %v1861
        %vm1878 = vcmp.eq.f32.partialorder %v1877, 8.507059e+37
        %v1879 = vand.u32 %v1861, 2147483648
        %v1880 = vor.u32 1.1754944e-38, %v1879
        %v1881 = vsel %vm1878, %v1880, %v1876
        %v1882 = vmul.f32 %v1854, %v1881
        %v1883 = vrcp.pop %v1864
        %v1884 = vmul.f32 %v1864, %v1883
        %v1885 = vsub.f32 1.0, %v1884
        %v1886 = vmul.f32 %v1883, %v1885
        %v1887 = vadd.f32 %v1883, %v1886
        %vm1888 = vweird.f32 %v1864
        %vm1889 = vweird.f32 %v1883
        %vm1890 = vmor %vm1888, %vm1889
        %v1891 = vsel %vm1890, %v1883, %v1887
        %v1892 = vand.u32 2147483647, %v1864
        %vm1893 = vcmp.eq.f32.partialorder %v1892, 8.507059e+37
        %v1894 = vand.u32 %v1864, 2147483648
        %v1895 = vor.u32 1.1754944e-38, %v1894
        %v1896 = vsel %vm1893, %v1895, %v1891
        %v1897 = vmul.f32 %v1856, %v1896
        %v1898 = vrcp.pop %v1867
        %v1899 = vmul.f32 %v1867, %v1898
        %v1900 = vsub.f32 1.0, %v1899
        %v1901 = vmul.f32 %v1898, %v1900
        %v1902 = vadd.f32 %v1898, %v1901
        %vm1903 = vweird.f32 %v1867
        %vm1904 = vweird.f32 %v1898
        %vm1905 = vmor %vm1903, %vm1904
        %v1906 = vsel %vm1905, %v1898, %v1902
        %v1907 = vand.u32 2147483647, %v1867
        %vm1908 = vcmp.eq.f32.partialorder %v1907, 8.507059e+37
        %v1909 = vand.u32 %v1867, 2147483648
        %v1910 = vor.u32 1.1754944e-38, %v1909
        %v1911 = vsel %vm1908, %v1910, %v1906
        %v1912 = vmul.f32 %v1858, %v1911
        %v1913 = vpack.c.bf16 %v1897, %v1882
        %v1914 = vpack.c.bf16 %v1912, %v1912
        %1915 = vrot.lane.b32.xlu0 %v1260, 40
        %v1916 = vpop.permute.xlu0 %1915
        %1917 = vrot.lane.b32.xlu0 %v1261, 40
        %v1918 = vpop.permute.xlu0 %1917
        %v1921 = vsel %vm1302, %v1913, 0
        %v1924 = vsel %vm1302, %v1914, 0
        %v1927 = vand.u32 %v1918, %v1390
        %1929 = vmatpush.bf16.msra.mxu0 0
        %1930 = vmatpush.bf16.msra.mxu0 0
        %1931 = vmatpush.bf16.msra.mxu0 0
        %1932 = vmatpush.bf16.msra.mxu0 0
        %1933 = vmatpush.bf16.msra.mxu0 0
        %1934 = vmatpush.bf16.msra.mxu0 0
        %1935 = vmatpush.bf16.msra.mxu0 %v1927
        %1936 = vmatpush.bf16.msra.mxu0 %v1916
        %1937 = vmatmul.bf16.gmra.mxu0 %v1921
        %v1938 = vpop.f32.mrf.mxu0
        %v1939 = vadd.f32 0.0, %v1938
        %v1940 = vpop.f32.mrf.mxu0
        %v1941 = vadd.f32 0.0, %v1940
        %1942 = vmatmul.bf16.gmra.mxu0 %v1924
        %v1943 = vpop.f32.mrf.mxu0
        %v1944 = vadd.f32 0.0, %v1943
        %v1945 = vpop.f32.mrf.mxu0
        %1946 = vdwg.mxu0
        %v1947 = vpack.c.bf16 %v1941, %v1939
        %v1948 = vpack.c.bf16 %v1944, %v1944
        %v1949 = vpack.c.bf16 %v1116, %v1116
        %v1951 = vsel %vm1268, %v1947, 0
        %v1954 = vsel %vm1268, %v1948, 0
        %v1957 = vsel %vm1571, %v1949, 0
        %1959 = vmatpush.bf16.msra.mxu0 0
        %1960 = vmatpush.bf16.msra.mxu0 0
        %1961 = vmatpush.bf16.msra.mxu0 0
        %1962 = vmatpush.bf16.msra.mxu0 0
        %1963 = vmatpush.bf16.msra.mxu0 0
        %1964 = vmatpush.bf16.msra.mxu0 0
        %1965 = vmatpush.bf16.msra.mxu0 0
        %1966 = vmatpush.bf16.msra.mxu0 %v1957
        %1967 = vmatmul.bf16.gmra.mxu0 %v1951
        %v1968 = vpop.f32.mrf.mxu0
        %v1969 = vadd.f32 0.0, %v1968
        %v1970 = vpop.f32.mrf.mxu0
        %v1971 = vadd.f32 0.0, %v1970
        %1972 = vmatmul.bf16.gmra.mxu0 %v1954
        %v1973 = vpop.f32.mrf.mxu0
        %v1974 = vadd.f32 0.0, %v1973
        %v1975 = vpop.f32.mrf.mxu0
        %1976 = vdwg.mxu0
        %v1977 = vadd.f32 %v1797, %v1969
        %v1978 = vadd.f32 %v1798, %v1971
        %v1979 = vadd.f32 %v1799, %v1974
        %v1980 = vadd.f32 %v1103, %v1977
        %v1981 = vadd.f32 %v1104, %v1978
        %v1982 = vadd.f32 %v1105, %v1979
        %v1984 = vperm.slane %v1117, 0
        %v1986 = vadd.f32 %v1980, %v1984
        %v1987 = vadd.f32 %v1981, %v1984
        %v1988 = vadd.f32 %v1982, %v1984
        %v1989 = vsel %vm1142, %v1986, 0.0
        %1990 = vadd.xlane.f32.xlu0 %v1989
        %v1991 = vpop.xlane.xlu0 %1990
        %v1992 = vsel %vm1142, %v1987, 0.0
        %1993 = vadd.xlane.f32.xlu0 %v1992
        %v1994 = vpop.xlane.xlu0 %1993
        %v1995 = vsel %vm1149, %v1988, 0.0
        %1996 = vadd.xlane.f32.xlu0 %v1995
        %v1997 = vpop.xlane.xlu0 %1996
        %v1998 = vmul.f32 %v1991, %v1159
        %v1999 = vmul.f32 %v1994, %v1159
        %v2000 = vmul.f32 %v1997, %v1159
        %v2001 = vsub.f32 %v1986, %v1998
        %v2002 = vsub.f32 %v1987, %v1999
        %v2003 = vsub.f32 %v1988, %v2000
        %v2004 = vmul.f32 %v2001, %v2001
        %v2005 = vmul.f32 %v2002, %v2002
        %v2006 = vmul.f32 %v2003, %v2003
        %v2007 = vsel %vm1142, %v2004, 0.0
        %2008 = vadd.xlane.f32.xlu0 %v2007
        %v2009 = vpop.xlane.xlu0 %2008
        %v2010 = vsel %vm1142, %v2005, 0.0
        %2011 = vadd.xlane.f32.xlu0 %v2010
        %v2012 = vpop.xlane.xlu0 %2011
        %v2013 = vsel %vm1149, %v2006, 0.0
        %2014 = vadd.xlane.f32.xlu0 %v2013
        %v2015 = vpop.xlane.xlu0 %2014
        %v2016 = vmul.f32 %v2009, %v1159
        %v2017 = vmul.f32 %v2012, %v1159
        %v2018 = vmul.f32 %v2015, %v1159
        %v2019 = vadd.f32 %v2016, 1e-06
        %v2020 = vadd.f32 %v2017, 1e-06
        %v2021 = vadd.f32 %v2018, 1e-06
        %v2022 = vrsqrt.pop %v2019
        %v2023 = vmul.f32 %v2022, %v2019
        %v2024 = vmul.f32 %v2023, %v2022
        %v2025 = vmul.f32 0.5, %v2024
        %v2026 = vsub.f32 1.5, %v2025
        %v2027 = vmul.f32 %v2022, %v2026
        %vm2028 = vweird.f32 %v2019
        %vm2029 = vweird.f32 %v2022
        %vm2030 = vmor %vm2028, %vm2029
        %v2031 = vsel %vm2030, %v2022, %v2027
        %v2032 = vrsqrt.pop %v2020
        %v2033 = vmul.f32 %v2032, %v2020
        %v2034 = vmul.f32 %v2033, %v2032
        %v2035 = vmul.f32 0.5, %v2034
        %v2036 = vsub.f32 1.5, %v2035
        %v2037 = vmul.f32 %v2032, %v2036
        %vm2038 = vweird.f32 %v2020
        %vm2039 = vweird.f32 %v2032
        %vm2040 = vmor %vm2038, %vm2039
        %v2041 = vsel %vm2040, %v2032, %v2037
        %v2042 = vrsqrt.pop %v2021
        %v2043 = vmul.f32 %v2042, %v2021
        %v2044 = vmul.f32 %v2043, %v2042
        %v2045 = vmul.f32 0.5, %v2044
        %v2046 = vsub.f32 1.5, %v2045
        %v2047 = vmul.f32 %v2042, %v2046
        %vm2048 = vweird.f32 %v2021
        %vm2049 = vweird.f32 %v2042
        %vm2050 = vmor %vm2048, %vm2049
        %v2051 = vsel %vm2050, %v2042, %v2047
        %v2052 = vmul.f32 %v2001, %v2031
        %v2053 = vmul.f32 %v2002, %v2041
        %v2054 = vmul.f32 %v2003, %v2051
        %v2056 = vperm.slane %v1118, 0
        %v2058 = vmul.f32 %v2052, %v2056
        %v2059 = vmul.f32 %v2053, %v2056
        %v2060 = vmul.f32 %v2054, %v2056
        %v2062 = vperm.slane %v1119, 0
        %v2064 = vadd.f32 %v2058, %v2062
        %v2065 = vadd.f32 %v2059, %v2062
        %v2066 = vadd.f32 %v2060, %v2062
        %v2067 = vpack.c.bf16 %v2065, %v2064
        %v2068 = vpack.c.bf16 %v2066, %v2066
        %v2069 = vpack.c.bf16 %v1121, %v1120
        %v2070 = vpack.c.bf16 %v1123, %v1122
        %v2072 = vperm.slane %v1124, 0
        %v2075 = vsel %vm1142, %v2067, 0
        %v2078 = vsel %vm1142, %v2068, 0
        %2080 = vmatpush.bf16.msra.mxu0 0
        %2081 = vmatpush.bf16.msra.mxu0 0
        %2082 = vmatpush.bf16.msra.mxu0 0
        %2083 = vmatpush.bf16.msra.mxu0 0
        %2084 = vmatpush.bf16.msra.mxu0 0
        %2085 = vmatpush.bf16.msra.mxu0 0
        %2086 = vmatpush.bf16.msra.mxu0 %v2070
        %2087 = vmatpush.bf16.msra.mxu0 %v2069
        %2088 = vmatmul.bf16.gmra.mxu0 %v2075
        %v2089 = vpop.f32.mrf.mxu0
        %v2090 = vadd.f32 %v2072, %v2089
        %v2091 = vpop.f32.mrf.mxu0
        %v2092 = vadd.f32 %v2072, %v2091
        %2093 = vmatmul.bf16.gmra.mxu0 %v2078
        %v2094 = vpop.f32.mrf.mxu0
        %v2095 = vadd.f32 %v2072, %v2094
        %v2096 = vpop.f32.mrf.mxu0
        %2097 = vdwg.mxu0
        %v2098 = vmul.f32 %v2090, 0.5
        %v2099 = vmul.f32 %v2092, 0.5
        %v2100 = vmul.f32 %v2095, 0.5
        %v2101 = vmul.f32 %v2090, 0.70710677
        %v2102 = vmul.f32 %v2092, 0.70710677
        %v2103 = vmul.f32 %v2095, 0.70710677
        %vm2104 = vcmp.ge.f32.partialorder %v2101, 0.0
        %vm2105 = vcmp.ge.f32.partialorder %v2102, 0.0
        %vm2106 = vcmp.ge.f32.partialorder %v2103, 0.0
        %v2107 = vsel %vm2104, 1.0, -1.0
        %v2108 = vsel %vm2105, 1.0, -1.0
        %v2109 = vsel %vm2106, 1.0, -1.0
        %v2110 = vand.u32 2147483647, %v2101
        %v2111 = vand.u32 2147483647, %v2102
        %v2112 = vand.u32 2147483647, %v2103
        %v2113 = vmul.f32 %v2110, 0.3275911
        %v2114 = vmul.f32 %v2111, 0.3275911
        %v2115 = vmul.f32 %v2112, 0.3275911
        %v2116 = vadd.f32 %v2113, 1.0
        %v2117 = vadd.f32 %v2114, 1.0
        %v2118 = vadd.f32 %v2115, 1.0
        %v2119 = vrcp.pop %v2116
        %v2120 = vmul.f32 %v2116, %v2119
        %v2121 = vsub.f32 1.0, %v2120
        %v2122 = vmul.f32 %v2119, %v2121
        %v2123 = vadd.f32 %v2119, %v2122
        %vm2124 = vweird.f32 %v2116
        %vm2125 = vweird.f32 %v2119
        %vm2126 = vmor %vm2124, %vm2125
        %v2127 = vsel %vm2126, %v2119, %v2123
        %v2128 = vand.u32 2147483647, %v2116
        %vm2129 = vcmp.eq.f32.partialorder %v2128, 8.507059e+37
        %v2130 = vand.u32 %v2116, 2147483648
        %v2131 = vor.u32 1.1754944e-38, %v2130
        %v2132 = vsel %vm2129, %v2131, %v2127
        %v2133 = vmul.f32 1.0, %v2132
        %v2134 = vrcp.pop %v2117
        %v2135 = vmul.f32 %v2117, %v2134
        %v2136 = vsub.f32 1.0, %v2135
        %v2137 = vmul.f32 %v2134, %v2136
        %v2138 = vadd.f32 %v2134, %v2137
        %vm2139 = vweird.f32 %v2117
        %vm2140 = vweird.f32 %v2134
        %vm2141 = vmor %vm2139, %vm2140
        %v2142 = vsel %vm2141, %v2134, %v2138
        %v2143 = vand.u32 2147483647, %v2117
        %vm2144 = vcmp.eq.f32.partialorder %v2143, 8.507059e+37
        %v2145 = vand.u32 %v2117, 2147483648
        %v2146 = vor.u32 1.1754944e-38, %v2145
        %v2147 = vsel %vm2144, %v2146, %v2142
        %v2148 = vmul.f32 1.0, %v2147
        %v2149 = vrcp.pop %v2118
        %v2150 = vmul.f32 %v2118, %v2149
        %v2151 = vsub.f32 1.0, %v2150
        %v2152 = vmul.f32 %v2149, %v2151
        %v2153 = vadd.f32 %v2149, %v2152
        %vm2154 = vweird.f32 %v2118
        %vm2155 = vweird.f32 %v2149
        %vm2156 = vmor %vm2154, %vm2155
        %v2157 = vsel %vm2156, %v2149, %v2153
        %v2158 = vand.u32 2147483647, %v2118
        %vm2159 = vcmp.eq.f32.partialorder %v2158, 8.507059e+37
        %v2160 = vand.u32 %v2118, 2147483648
        %v2161 = vor.u32 1.1754944e-38, %v2160
        %v2162 = vsel %vm2159, %v2161, %v2157
        %v2163 = vmul.f32 1.0, %v2162
        %v2164 = vmul.f32 %v2133, 1.0614054
        %v2165 = vmul.f32 %v2148, 1.0614054
        %v2166 = vmul.f32 %v2163, 1.0614054
        %v2167 = vadd.f32 %v2164, -1.4531521
        %v2168 = vadd.f32 %v2165, -1.4531521
        %v2169 = vadd.f32 %v2166, -1.4531521
        %v2170 = vmul.f32 %v2167, %v2133
        %v2171 = vmul.f32 %v2168, %v2148
        %v2172 = vmul.f32 %v2169, %v2163
        %v2173 = vadd.f32 %v2170, 1.4214138
        %v2174 = vadd.f32 %v2171, 1.4214138
        %v2175 = vadd.f32 %v2172, 1.4214138
        %v2176 = vmul.f32 %v2173, %v2133
        %v2177 = vmul.f32 %v2174, %v2148
        %v2178 = vmul.f32 %v2175, %v2163
        %v2179 = vadd.f32 %v2176, -0.28449672
        %v2180 = vadd.f32 %v2177, -0.28449672
        %v2181 = vadd.f32 %v2178, -0.28449672
        %v2182 = vmul.f32 %v2179, %v2133
        %v2183 = vmul.f32 %v2180, %v2148
        %v2184 = vmul.f32 %v2181, %v2163
        %v2185 = vadd.f32 %v2182, 0.2548296
        %v2186 = vadd.f32 %v2183, 0.2548296
        %v2187 = vadd.f32 %v2184, 0.2548296
        %v2188 = vmul.f32 %v2185, %v2133
        %v2189 = vmul.f32 %v2186, %v2148
        %v2190 = vmul.f32 %v2187, %v2163
        %v2191 = vsub.f32 0.0, %v2110
        %v2192 = vsub.f32 0.0, %v2111
        %v2193 = vsub.f32 0.0, %v2112
        %v2194 = vmul.f32 %v2191, %v2110
        %v2195 = vmul.f32 %v2192, %v2111
        %v2196 = vmul.f32 %v2193, %v2112
        %v2197 = vmul.f32 %v2194, 1.442695
        %v2198 = vpow.pop %v2197
        %v2199 = vmul.f32 %v2195, 1.442695
        %v2200 = vpow.pop %v2199
        %v2201 = vmul.f32 %v2196, 1.442695
        %v2202 = vpow.pop %v2201
        %v2203 = vmul.f32 %v2188, %v2198
        %v2204 = vmul.f32 %v2189, %v2200
        %v2205 = vmul.f32 %v2190, %v2202
        %v2206 = vsub.f32 1.0, %v2203
        %v2207 = vsub.f32 1.0, %v2204
        %v2208 = vsub.f32 1.0, %v2205
        %v2209 = vmul.f32 %v2107, %v2206
        %v2210 = vmul.f32 %v2108, %v2207
        %v2211 = vmul.f32 %v2109, %v2208
        %v2212 = vadd.f32 %v2209, 1.0
        %v2213 = vadd.f32 %v2210, 1.0
        %v2214 = vadd.f32 %v2211, 1.0
        %v2215 = vmul.f32 %v2098, %v2212
        %v2216 = vmul.f32 %v2099, %v2213
        %v2217 = vmul.f32 %v2100, %v2214
        %v2218 = vpack.c.bf16 %v2216, %v2215
        %v2219 = vpack.c.bf16 %v2217, %v2217
        %v2220 = vpack.c.bf16 %v1126, %v1125
        %v2221 = vpack.c.bf16 %v1128, %v1127
        %v2222 = vpack.c.bf16 %v1130, %v1129
        %v2223 = vpack.c.bf16 %v1132, %v1131
        %v2224 = vpack.c.bf16 %v1134, %v1133
        %v2225 = vpack.c.bf16 %v1136, %v1135
        %v2226 = vpack.c.bf16 %v1138, %v1137
        %v2227 = vpack.c.bf16 %v1140, %v1139
        %2228 = vmatpush.bf16.msra.mxu0 %v2227
        %2229 = vmatpush.bf16.msra.mxu0 %v2226
        %2230 = vmatpush.bf16.msra.mxu0 %v2225
        %2231 = vmatpush.bf16.msra.mxu0 %v2224
        %2232 = vmatpush.bf16.msra.mxu0 %v2223
        %2233 = vmatpush.bf16.msra.mxu0 %v2222
        %2234 = vmatpush.bf16.msra.mxu0 %v2221
        %2235 = vmatpush.bf16.msra.mxu0 %v2220
        %2236 = vmatmul.bf16.gmra.mxu0 %v2218
        %v2237 = vpop.f32.mrf.mxu0
        %v2238 = vadd.f32 0.0, %v2237
        %v2239 = vpop.f32.mrf.mxu0
        %v2240 = vadd.f32 0.0, %v2239
        %2241 = vmatmul.bf16.gmra.mxu0 %v2219
        %v2242 = vpop.f32.mrf.mxu0
        %v2243 = vadd.f32 0.0, %v2242
        %v2244 = vpop.f32.mrf.mxu0
        %2245 = vdwg.mxu0
        %v2246 = vadd.f32 %v1986, %v2238
        %v2247 = vadd.f32 %v1987, %v2240
        %v2248 = vadd.f32 %v1988, %v2243
        %v2250 = vperm.slane %v1141, 0
        %v2252 = vadd.f32 %v2246, %v2250
        %v2253 = vadd.f32 %v2247, %v2250
        %v2254 = vadd.f32 %v2248, %v2250
        %v2255 = vld [vmem:[%s37] sm:$0x1]
        %v2256 = vld [vmem:[%s39] sm:$0x1]
        %v2257 = vld [vmem:[%s41] sm:$0xff]
        %v2258 = vld [vmem:[%s41 + $0x8] sm:$0xff]
        %v2259 = vld [vmem:[%s41 + $0x10] sm:$0xff]
        %v2260 = vld [vmem:[%s41 + $0x18] sm:$0xff]
        %v2261 = vld [vmem:[%s43] sm:$0x1]
        %v2262 = vld [vmem:[%s45] sm:$0xff]
        %v2263 = vld [vmem:[%s45 + $0x8] sm:$0xff]
        %v2264 = vld [vmem:[%s45 + $0x10] sm:$0xff]
        %v2265 = vld [vmem:[%s45 + $0x18] sm:$0xff]
        %v2266 = vld [vmem:[%s47] sm:$0x1]
        %v2267 = vld [vmem:[%s49] sm:$0x1]
        %v2268 = vld [vmem:[%s51] sm:$0x1]
        %v2269 = vld [vmem:[%s53] sm:$0xff]
        %v2270 = vld [vmem:[%s53 + $0x8] sm:$0xff]
        %v2271 = vld [vmem:[%s53 + $0x10] sm:$0xff]
        %v2272 = vld [vmem:[%s53 + $0x18] sm:$0xff]
        %v2273 = vld [vmem:[%s55] sm:$0x1]
        %v2274 = vld [vmem:[%s57] sm:$0xff]
        %v2275 = vld [vmem:[%s57 + $0x8] sm:$0xff]
        %v2276 = vld [vmem:[%s57 + $0x10] sm:$0xff]
        %v2277 = vld [vmem:[%s57 + $0x18] sm:$0xff]
        %v2278 = vld [vmem:[%s57 + $0x20] sm:$0xff]
        %v2279 = vld [vmem:[%s57 + $0x28] sm:$0xff]
        %v2280 = vld [vmem:[%s57 + $0x30] sm:$0xff]
        %v2281 = vld [vmem:[%s57 + $0x38] sm:$0xff]
        %v2282 = vld [vmem:[%s57 + $0x40] sm:$0xff]
        %v2283 = vld [vmem:[%s57 + $0x48] sm:$0xff]
        %v2284 = vld [vmem:[%s57 + $0x50] sm:$0xff]
        %v2285 = vld [vmem:[%s57 + $0x58] sm:$0xff]
        %v2286 = vld [vmem:[%s57 + $0x60] sm:$0xff]
        %v2287 = vld [vmem:[%s57 + $0x68] sm:$0xff]
        %v2288 = vld [vmem:[%s57 + $0x70] sm:$0xff]
        %v2289 = vld [vmem:[%s57 + $0x78] sm:$0xff]
        %v2290 = vld [vmem:[%s59] sm:$0x1]
        %v2291 = vsel %vm1142, %v2252, 0.0
        %2292 = vadd.xlane.f32.xlu0 %v2291
        %v2293 = vpop.xlane.xlu0 %2292
        %v2294 = vsel %vm1142, %v2253, 0.0
        %2295 = vadd.xlane.f32.xlu0 %v2294
        %v2296 = vpop.xlane.xlu0 %2295
        %v2297 = vsel %vm1149, %v2254, 0.0
        %2298 = vadd.xlane.f32.xlu0 %v2297
        %v2299 = vpop.xlane.xlu0 %2298
        %v2300 = vmul.f32 %v2293, %v1159
        %v2301 = vmul.f32 %v2296, %v1159
        %v2302 = vmul.f32 %v2299, %v1159
        %v2303 = vsub.f32 %v2252, %v2300
        %v2304 = vsub.f32 %v2253, %v2301
        %v2305 = vsub.f32 %v2254, %v2302
        %v2306 = vmul.f32 %v2303, %v2303
        %v2307 = vmul.f32 %v2304, %v2304
        %v2308 = vmul.f32 %v2305, %v2305
        %v2309 = vsel %vm1142, %v2306, 0.0
        %2310 = vadd.xlane.f32.xlu0 %v2309
        %v2311 = vpop.xlane.xlu0 %2310
        %v2312 = vsel %vm1142, %v2307, 0.0
        %2313 = vadd.xlane.f32.xlu0 %v2312
        %v2314 = vpop.xlane.xlu0 %2313
        %v2315 = vsel %vm1149, %v2308, 0.0
        %2316 = vadd.xlane.f32.xlu0 %v2315
        %v2317 = vpop.xlane.xlu0 %2316
        %v2318 = vmul.f32 %v2311, %v1159
        %v2319 = vmul.f32 %v2314, %v1159
        %v2320 = vmul.f32 %v2317, %v1159
        %v2321 = vadd.f32 %v2318, 1e-06
        %v2322 = vadd.f32 %v2319, 1e-06
        %v2323 = vadd.f32 %v2320, 1e-06
        %v2324 = vrsqrt.pop %v2321
        %v2325 = vmul.f32 %v2324, %v2321
        %v2326 = vmul.f32 %v2325, %v2324
        %v2327 = vmul.f32 0.5, %v2326
        %v2328 = vsub.f32 1.5, %v2327
        %v2329 = vmul.f32 %v2324, %v2328
        %vm2330 = vweird.f32 %v2321
        %vm2331 = vweird.f32 %v2324
        %vm2332 = vmor %vm2330, %vm2331
        %v2333 = vsel %vm2332, %v2324, %v2329
        %v2334 = vrsqrt.pop %v2322
        %v2335 = vmul.f32 %v2334, %v2322
        %v2336 = vmul.f32 %v2335, %v2334
        %v2337 = vmul.f32 0.5, %v2336
        %v2338 = vsub.f32 1.5, %v2337
        %v2339 = vmul.f32 %v2334, %v2338
        %vm2340 = vweird.f32 %v2322
        %vm2341 = vweird.f32 %v2334
        %vm2342 = vmor %vm2340, %vm2341
        %v2343 = vsel %vm2342, %v2334, %v2339
        %v2344 = vrsqrt.pop %v2323
        %v2345 = vmul.f32 %v2344, %v2323
        %v2346 = vmul.f32 %v2345, %v2344
        %v2347 = vmul.f32 0.5, %v2346
        %v2348 = vsub.f32 1.5, %v2347
        %v2349 = vmul.f32 %v2344, %v2348
        %vm2350 = vweird.f32 %v2323
        %vm2351 = vweird.f32 %v2344
        %vm2352 = vmor %vm2350, %vm2351
        %v2353 = vsel %vm2352, %v2344, %v2349
        %v2354 = vmul.f32 %v2303, %v2333
        %v2355 = vmul.f32 %v2304, %v2343
        %v2356 = vmul.f32 %v2305, %v2353
        %v2358 = vperm.slane %v2255, 0
        %v2360 = vmul.f32 %v2354, %v2358
        %v2361 = vmul.f32 %v2355, %v2358
        %v2362 = vmul.f32 %v2356, %v2358
        %v2364 = vperm.slane %v2256, 0
        %v2366 = vadd.f32 %v2360, %v2364
        %v2367 = vadd.f32 %v2361, %v2364
        %v2368 = vadd.f32 %v2362, %v2364
        %v2369 = vpack.c.bf16 %v2367, %v2366
        %v2370 = vpack.c.bf16 %v2368, %v2368
        %v2371 = vpack.c.bf16 %v2258, %v2257
        %v2372 = vpack.c.bf16 %v2260, %v2259
        %v2374 = vperm.slane %v2261, 0
        %v2377 = vsel %vm1142, %v2369, 0
        %v2380 = vsel %vm1142, %v2370, 0
        %2382 = vmatpush.bf16.msra.mxu0 0
        %2383 = vmatpush.bf16.msra.mxu0 0
        %2384 = vmatpush.bf16.msra.mxu0 0
        %2385 = vmatpush.bf16.msra.mxu0 0
        %2386 = vmatpush.bf16.msra.mxu0 0
        %2387 = vmatpush.bf16.msra.mxu0 0
        %2388 = vmatpush.bf16.msra.mxu0 %v2372
        %2389 = vmatpush.bf16.msra.mxu0 %v2371
        %2390 = vmatmul.bf16.gmra.mxu0 %v2377
        %v2391 = vpop.f32.mrf.mxu0
        %v2392 = vadd.f32 %v2374, %v2391
        %v2393 = vpop.f32.mrf.mxu0
        %v2394 = vadd.f32 %v2374, %v2393
        %2395 = vmatmul.bf16.gmra.mxu0 %v2380
        %v2396 = vpop.f32.mrf.mxu0
        %v2397 = vadd.f32 %v2374, %v2396
        %v2398 = vpop.f32.mrf.mxu0
        %2399 = vdwg.mxu0
        %v2400 = vpack.c.bf16 %v2394, %v2392
        %v2401 = vpack.c.bf16 %v2397, %v2397
        %2404 = vrot.lane.b32.xlu0 %v2400, 96
        %v2405 = vpop.permute.xlu0 %2404
        %2406 = vrot.lane.b32.xlu0 %v2401, 96
        %v2407 = vpop.permute.xlu0 %2406
        %v2409 = vsel %vm1268, %v2400, 0
        %v2412 = vsel %vm1268, %v2401, 0
        %v2415 = vsel %vm1268, %v2405, 0
        %v2418 = vsel %vm1268, %v2407, 0
        %2420 = vmatpush.bf16.xpose.msra.mxu0 0
        %2421 = vmatpush.bf16.xpose.msra.mxu0 0
        %2422 = vmatpush.bf16.xpose.msra.mxu0 0
        %2423 = vmatpush.bf16.xpose.msra.mxu0 0
        %2424 = vmatpush.bf16.xpose.msra.mxu0 0
        %2425 = vmatpush.bf16.xpose.msra.mxu0 0
        %2426 = vmatpush.bf16.xpose.msra.mxu0 %v2418
        %2427 = vmatpush.bf16.xpose.msra.mxu0 %v2415
        %2428 = vmatmul.bf16.gmra.mxu0 %v2409
        %v2429 = vpop.f32.mrf.mxu0
        %v2430 = vadd.f32 0.0, %v2429
        %v2431 = vpop.f32.mrf.mxu0
        %v2432 = vadd.f32 0.0, %v2431
        %2433 = vmatmul.bf16.gmra.mxu0 %v2412
        %v2434 = vpop.f32.mrf.mxu0
        %v2435 = vadd.f32 0.0, %v2434
        %v2436 = vpop.f32.mrf.mxu0
        %2437 = vdwg.mxu0
        %v2438 = vmul.f32 %v2430, 0.35355338
        %v2439 = vmul.f32 %v2432, 0.35355338
        %v2440 = vmul.f32 %v2435, 0.35355338
        %v2441 = vsel %vm1302, %v2438, -inf
        %2442 = vmax.xlane.f32.xlu0 %v2441
        %v2443 = vpop.xlane.xlu0 %2442
        %v2444 = vsel %vm1302, %v2439, -inf
        %2445 = vmax.xlane.f32.xlu0 %v2444
        %v2446 = vpop.xlane.xlu0 %2445
        %v2447 = vsel %vm1309, %v2440, -inf
        %2448 = vmax.xlane.f32.xlu0 %v2447
        %v2449 = vpop.xlane.xlu0 %2448
        %v2450 = vsub.f32 %v2438, %v2443
        %v2451 = vsub.f32 %v2439, %v2446
        %v2452 = vsub.f32 %v2440, %v2449
        %v2453 = vmul.f32 %v2450, 1.442695
        %v2454 = vpow.pop %v2453
        %v2455 = vmul.f32 %v2451, 1.442695
        %v2456 = vpow.pop %v2455
        %v2457 = vmul.f32 %v2452, 1.442695
        %v2458 = vpow.pop %v2457
        %v2459 = vsel %vm1302, %v2454, 0.0
        %2460 = vadd.xlane.f32.xlu0 %v2459
        %v2461 = vpop.xlane.xlu0 %2460
        %v2462 = vsel %vm1302, %v2456, 0.0
        %2463 = vadd.xlane.f32.xlu0 %v2462
        %v2464 = vpop.xlane.xlu0 %2463
        %v2465 = vsel %vm1309, %v2458, 0.0
        %2466 = vadd.xlane.f32.xlu0 %v2465
        %v2467 = vpop.xlane.xlu0 %2466
        %v2468 = vrcp.pop %v2461
        %v2469 = vmul.f32 %v2461, %v2468
        %v2470 = vsub.f32 1.0, %v2469
        %v2471 = vmul.f32 %v2468, %v2470
        %v2472 = vadd.f32 %v2468, %v2471
        %vm2473 = vweird.f32 %v2461
        %vm2474 = vweird.f32 %v2468
        %vm2475 = vmor %vm2473, %vm2474
        %v2476 = vsel %vm2475, %v2468, %v2472
        %v2477 = vand.u32 2147483647, %v2461
        %vm2478 = vcmp.eq.f32.partialorder %v2477, 8.507059e+37
        %v2479 = vand.u32 %v2461, 2147483648
        %v2480 = vor.u32 1.1754944e-38, %v2479
        %v2481 = vsel %vm2478, %v2480, %v2476
        %v2482 = vmul.f32 %v2454, %v2481
        %v2483 = vrcp.pop %v2464
        %v2484 = vmul.f32 %v2464, %v2483
        %v2485 = vsub.f32 1.0, %v2484
        %v2486 = vmul.f32 %v2483, %v2485
        %v2487 = vadd.f32 %v2483, %v2486
        %vm2488 = vweird.f32 %v2464
        %vm2489 = vweird.f32 %v2483
        %vm2490 = vmor %vm2488, %vm2489
        %v2491 = vsel %vm2490, %v2483, %v2487
        %v2492 = vand.u32 2147483647, %v2464
        %vm2493 = vcmp.eq.f32.partialorder %v2492, 8.507059e+37
        %v2494 = vand.u32 %v2464, 2147483648
        %v2495 = vor.u32 1.1754944e-38, %v2494
        %v2496 = vsel %vm2493, %v2495, %v2491
        %v2497 = vmul.f32 %v2456, %v2496
        %v2498 = vrcp.pop %v2467
        %v2499 = vmul.f32 %v2467, %v2498
        %v2500 = vsub.f32 1.0, %v2499
        %v2501 = vmul.f32 %v2498, %v2500
        %v2502 = vadd.f32 %v2498, %v2501
        %vm2503 = vweird.f32 %v2467
        %vm2504 = vweird.f32 %v2498
        %vm2505 = vmor %vm2503, %vm2504
        %v2506 = vsel %vm2505, %v2498, %v2502
        %v2507 = vand.u32 2147483647, %v2467
        %vm2508 = vcmp.eq.f32.partialorder %v2507, 8.507059e+37
        %v2509 = vand.u32 %v2467, 2147483648
        %v2510 = vor.u32 1.1754944e-38, %v2509
        %v2511 = vsel %vm2508, %v2510, %v2506
        %v2512 = vmul.f32 %v2458, %v2511
        %v2513 = vpack.c.bf16 %v2497, %v2482
        %v2514 = vpack.c.bf16 %v2512, %v2512
        %2515 = vrot.lane.b32.xlu0 %v2400, 64
        %v2516 = vpop.permute.xlu0 %2515
        %2517 = vrot.lane.b32.xlu0 %v2401, 64
        %v2518 = vpop.permute.xlu0 %2517
        %v2521 = vsel %vm1302, %v2513, 0
        %v2524 = vsel %vm1302, %v2514, 0
        %v2527 = vand.u32 %v2518, %v1390
        %2529 = vmatpush.bf16.msra.mxu0 0
        %2530 = vmatpush.bf16.msra.mxu0 0
        %2531 = vmatpush.bf16.msra.mxu0 0
        %2532 = vmatpush.bf16.msra.mxu0 0
        %2533 = vmatpush.bf16.msra.mxu0 0
        %2534 = vmatpush.bf16.msra.mxu0 0
        %2535 = vmatpush.bf16.msra.mxu0 %v2527
        %2536 = vmatpush.bf16.msra.mxu0 %v2516
        %2537 = vmatmul.bf16.gmra.mxu0 %v2521
        %v2538 = vpop.f32.mrf.mxu0
        %v2539 = vadd.f32 0.0, %v2538
        %v2540 = vpop.f32.mrf.mxu0
        %v2541 = vadd.f32 0.0, %v2540
        %2542 = vmatmul.bf16.gmra.mxu0 %v2524
        %v2543 = vpop.f32.mrf.mxu0
        %v2544 = vadd.f32 0.0, %v2543
        %v2545 = vpop.f32.mrf.mxu0
        %2546 = vdwg.mxu0
        %v2547 = vpack.c.bf16 %v2541, %v2539
        %v2548 = vpack.c.bf16 %v2544, %v2544
        %v2549 = vpack.c.bf16 %v2262, %v2262
        %2550 = vrot.lane.b32.xlu0 %v2400, 120
        %v2551 = vpop.permute.xlu0 %2550
        %2552 = vrot.lane.b32.xlu0 %v2401, 120
        %v2553 = vpop.permute.xlu0 %2552
        %2554 = vrot.lane.b32.xlu0 %v2400, 88
        %v2555 = vpop.permute.xlu0 %2554
        %2556 = vrot.lane.b32.xlu0 %v2401, 88
        %v2557 = vpop.permute.xlu0 %2556
        %v2559 = vsel %vm1268, %v2551, 0
        %v2562 = vsel %vm1268, %v2553, 0
        %v2565 = vsel %vm1268, %v2555, 0
        %v2568 = vsel %vm1268, %v2557, 0
        %2570 = vmatpush.bf16.xpose.msra.mxu0 0
        %2571 = vmatpush.bf16.xpose.msra.mxu0 0
        %2572 = vmatpush.bf16.xpose.msra.mxu0 0
        %2573 = vmatpush.bf16.xpose.msra.mxu0 0
        %2574 = vmatpush.bf16.xpose.msra.mxu0 0
        %2575 = vmatpush.bf16.xpose.msra.mxu0 0
        %2576 = vmatpush.bf16.xpose.msra.mxu0 %v2568
        %2577 = vmatpush.bf16.xpose.msra.mxu0 %v2565
        %2578 = vmatmul.bf16.gmra.mxu0 %v2559
        %v2579 = vpop.f32.mrf.mxu0
        %v2580 = vadd.f32 0.0, %v2579
        %v2581 = vpop.f32.mrf.mxu0
        %v2582 = vadd.f32 0.0, %v2581
        %2583 = vmatmul.bf16.gmra.mxu0 %v2562
        %v2584 = vpop.f32.mrf.mxu0
        %v2585 = vadd.f32 0.0, %v2584
        %v2586 = vpop.f32.mrf.mxu0
        %2587 = vdwg.mxu0
        %v2588 = vmul.f32 %v2580, 0.35355338
        %v2589 = vmul.f32 %v2582, 0.35355338
        %v2590 = vmul.f32 %v2585, 0.35355338
        %v2591 = vsel %vm1302, %v2588, -inf
        %2592 = vmax.xlane.f32.xlu0 %v2591
        %v2593 = vpop.xlane.xlu0 %2592
        %v2594 = vsel %vm1302, %v2589, -inf
        %2595 = vmax.xlane.f32.xlu0 %v2594
        %v2596 = vpop.xlane.xlu0 %2595
        %v2597 = vsel %vm1309, %v2590, -inf
        %2598 = vmax.xlane.f32.xlu0 %v2597
        %v2599 = vpop.xlane.xlu0 %2598
        %v2600 = vsub.f32 %v2588, %v2593
        %v2601 = vsub.f32 %v2589, %v2596
        %v2602 = vsub.f32 %v2590, %v2599
        %v2603 = vmul.f32 %v2600, 1.442695
        %v2604 = vpow.pop %v2603
        %v2605 = vmul.f32 %v2601, 1.442695
        %v2606 = vpow.pop %v2605
        %v2607 = vmul.f32 %v2602, 1.442695
        %v2608 = vpow.pop %v2607
        %v2609 = vsel %vm1302, %v2604, 0.0
        %2610 = vadd.xlane.f32.xlu0 %v2609
        %v2611 = vpop.xlane.xlu0 %2610
        %v2612 = vsel %vm1302, %v2606, 0.0
        %2613 = vadd.xlane.f32.xlu0 %v2612
        %v2614 = vpop.xlane.xlu0 %2613
        %v2615 = vsel %vm1309, %v2608, 0.0
        %2616 = vadd.xlane.f32.xlu0 %v2615
        %v2617 = vpop.xlane.xlu0 %2616
        %v2618 = vrcp.pop %v2611
        %v2619 = vmul.f32 %v2611, %v2618
        %v2620 = vsub.f32 1.0, %v2619
        %v2621 = vmul.f32 %v2618, %v2620
        %v2622 = vadd.f32 %v2618, %v2621
        %vm2623 = vweird.f32 %v2611
        %vm2624 = vweird.f32 %v2618
        %vm2625 = vmor %vm2623, %vm2624
        %v2626 = vsel %vm2625, %v2618, %v2622
        %v2627 = vand.u32 2147483647, %v2611
        %vm2628 = vcmp.eq.f32.partialorder %v2627, 8.507059e+37
        %v2629 = vand.u32 %v2611, 2147483648
        %v2630 = vor.u32 1.1754944e-38, %v2629
        %v2631 = vsel %vm2628, %v2630, %v2626
        %v2632 = vmul.f32 %v2604, %v2631
        %v2633 = vrcp.pop %v2614
        %v2634 = vmul.f32 %v2614, %v2633
        %v2635 = vsub.f32 1.0, %v2634
        %v2636 = vmul.f32 %v2633, %v2635
        %v2637 = vadd.f32 %v2633, %v2636
        %vm2638 = vweird.f32 %v2614
        %vm2639 = vweird.f32 %v2633
        %vm2640 = vmor %vm2638, %vm2639
        %v2641 = vsel %vm2640, %v2633, %v2637
        %v2642 = vand.u32 2147483647, %v2614
        %vm2643 = vcmp.eq.f32.partialorder %v2642, 8.507059e+37
        %v2644 = vand.u32 %v2614, 2147483648
        %v2645 = vor.u32 1.1754944e-38, %v2644
        %v2646 = vsel %vm2643, %v2645, %v2641
        %v2647 = vmul.f32 %v2606, %v2646
        %v2648 = vrcp.pop %v2617
        %v2649 = vmul.f32 %v2617, %v2648
        %v2650 = vsub.f32 1.0, %v2649
        %v2651 = vmul.f32 %v2648, %v2650
        %v2652 = vadd.f32 %v2648, %v2651
        %vm2653 = vweird.f32 %v2617
        %vm2654 = vweird.f32 %v2648
        %vm2655 = vmor %vm2653, %vm2654
        %v2656 = vsel %vm2655, %v2648, %v2652
        %v2657 = vand.u32 2147483647, %v2617
        %vm2658 = vcmp.eq.f32.partialorder %v2657, 8.507059e+37
        %v2659 = vand.u32 %v2617, 2147483648
        %v2660 = vor.u32 1.1754944e-38, %v2659
        %v2661 = vsel %vm2658, %v2660, %v2656
        %v2662 = vmul.f32 %v2608, %v2661
        %v2663 = vpack.c.bf16 %v2647, %v2632
        %v2664 = vpack.c.bf16 %v2662, %v2662
        %2665 = vrot.lane.b32.xlu0 %v2400, 56
        %v2666 = vpop.permute.xlu0 %2665
        %2667 = vrot.lane.b32.xlu0 %v2401, 56
        %v2668 = vpop.permute.xlu0 %2667
        %v2671 = vsel %vm1302, %v2663, 0
        %v2674 = vsel %vm1302, %v2664, 0
        %v2677 = vand.u32 %v2668, %v1390
        %2679 = vmatpush.bf16.msra.mxu0 0
        %2680 = vmatpush.bf16.msra.mxu0 0
        %2681 = vmatpush.bf16.msra.mxu0 0
        %2682 = vmatpush.bf16.msra.mxu0 0
        %2683 = vmatpush.bf16.msra.mxu0 0
        %2684 = vmatpush.bf16.msra.mxu0 0
        %2685 = vmatpush.bf16.msra.mxu0 %v2677
        %2686 = vmatpush.bf16.msra.mxu0 %v2666
        %2687 = vmatmul.bf16.gmra.mxu0 %v2671
        %v2688 = vpop.f32.mrf.mxu0
        %v2689 = vadd.f32 0.0, %v2688
        %v2690 = vpop.f32.mrf.mxu0
        %v2691 = vadd.f32 0.0, %v2690
        %2692 = vmatmul.bf16.gmra.mxu0 %v2674
        %v2693 = vpop.f32.mrf.mxu0
        %v2694 = vadd.f32 0.0, %v2693
        %v2695 = vpop.f32.mrf.mxu0
        %2696 = vdwg.mxu0
        %v2697 = vpack.c.bf16 %v2691, %v2689
        %v2698 = vpack.c.bf16 %v2694, %v2694
        %v2699 = vpack.c.bf16 %v2263, %v2263
        %v2701 = vsel %vm1268, %v2697, 0
        %v2704 = vsel %vm1268, %v2698, 0
        %v2707 = vsel %vm1571, %v2699, 0
        %2709 = vmatpush.bf16.msra.mxu0 0
        %2710 = vmatpush.bf16.msra.mxu0 0
        %2711 = vmatpush.bf16.msra.mxu0 0
        %2712 = vmatpush.bf16.msra.mxu0 0
        %2713 = vmatpush.bf16.msra.mxu0 0
        %2714 = vmatpush.bf16.msra.mxu0 0
        %2715 = vmatpush.bf16.msra.mxu0 0
        %2716 = vmatpush.bf16.msra.mxu0 %v2707
        %2717 = vmatmul.bf16.gmra.mxu0 %v2701
        %v2718 = vpop.f32.mrf.mxu0
        %v2719 = vadd.f32 0.0, %v2718
        %v2720 = vpop.f32.mrf.mxu0
        %v2721 = vadd.f32 0.0, %v2720
        %2722 = vmatmul.bf16.gmra.mxu0 %v2704
        %v2723 = vpop.f32.mrf.mxu0
        %v2724 = vadd.f32 0.0, %v2723
        %v2725 = vpop.f32.mrf.mxu0
        %2726 = vdwg.mxu0
        %v2728 = vsel %vm1268, %v2547, 0
        %v2731 = vsel %vm1268, %v2548, 0
        %v2734 = vsel %vm1571, %v2549, 0
        %2736 = vmatpush.bf16.msra.mxu0 0
        %2737 = vmatpush.bf16.msra.mxu0 0
        %2738 = vmatpush.bf16.msra.mxu0 0
        %2739 = vmatpush.bf16.msra.mxu0 0
        %2740 = vmatpush.bf16.msra.mxu0 0
        %2741 = vmatpush.bf16.msra.mxu0 0
        %2742 = vmatpush.bf16.msra.mxu0 0
        %2743 = vmatpush.bf16.msra.mxu0 %v2734
        %2744 = vmatmul.bf16.gmra.mxu0 %v2728
        %v2745 = vpop.f32.mrf.mxu0
        %v2746 = vadd.f32 %v2719, %v2745
        %v2747 = vpop.f32.mrf.mxu0
        %v2748 = vadd.f32 %v2721, %v2747
        %2749 = vmatmul.bf16.gmra.mxu0 %v2731
        %v2750 = vpop.f32.mrf.mxu0
        %v2751 = vadd.f32 %v2724, %v2750
        %v2752 = vpop.f32.mrf.mxu0
        %2753 = vdwg.mxu0
        %2754 = vrot.lane.b32.xlu0 %v2400, 112
        %v2755 = vpop.permute.xlu0 %2754
        %2756 = vrot.lane.b32.xlu0 %v2401, 112
        %v2757 = vpop.permute.xlu0 %2756
        %2758 = vrot.lane.b32.xlu0 %v2400, 80
        %v2759 = vpop.permute.xlu0 %2758
        %2760 = vrot.lane.b32.xlu0 %v2401, 80
        %v2761 = vpop.permute.xlu0 %2760
        %v2763 = vsel %vm1268, %v2755, 0
        %v2766 = vsel %vm1268, %v2757, 0
        %v2769 = vsel %vm1268, %v2759, 0
        %v2772 = vsel %vm1268, %v2761, 0
        %2774 = vmatpush.bf16.xpose.msra.mxu0 0
        %2775 = vmatpush.bf16.xpose.msra.mxu0 0
        %2776 = vmatpush.bf16.xpose.msra.mxu0 0
        %2777 = vmatpush.bf16.xpose.msra.mxu0 0
        %2778 = vmatpush.bf16.xpose.msra.mxu0 0
        %2779 = vmatpush.bf16.xpose.msra.mxu0 0
        %2780 = vmatpush.bf16.xpose.msra.mxu0 %v2772
        %2781 = vmatpush.bf16.xpose.msra.mxu0 %v2769
        %2782 = vmatmul.bf16.gmra.mxu0 %v2763
        %v2783 = vpop.f32.mrf.mxu0
        %v2784 = vadd.f32 0.0, %v2783
        %v2785 = vpop.f32.mrf.mxu0
        %v2786 = vadd.f32 0.0, %v2785
        %2787 = vmatmul.bf16.gmra.mxu0 %v2766
        %v2788 = vpop.f32.mrf.mxu0
        %v2789 = vadd.f32 0.0, %v2788
        %v2790 = vpop.f32.mrf.mxu0
        %2791 = vdwg.mxu0
        %v2792 = vmul.f32 %v2784, 0.35355338
        %v2793 = vmul.f32 %v2786, 0.35355338
        %v2794 = vmul.f32 %v2789, 0.35355338
        %v2795 = vsel %vm1302, %v2792, -inf
        %2796 = vmax.xlane.f32.xlu0 %v2795
        %v2797 = vpop.xlane.xlu0 %2796
        %v2798 = vsel %vm1302, %v2793, -inf
        %2799 = vmax.xlane.f32.xlu0 %v2798
        %v2800 = vpop.xlane.xlu0 %2799
        %v2801 = vsel %vm1309, %v2794, -inf
        %2802 = vmax.xlane.f32.xlu0 %v2801
        %v2803 = vpop.xlane.xlu0 %2802
        %v2804 = vsub.f32 %v2792, %v2797
        %v2805 = vsub.f32 %v2793, %v2800
        %v2806 = vsub.f32 %v2794, %v2803
        %v2807 = vmul.f32 %v2804, 1.442695
        %v2808 = vpow.pop %v2807
        %v2809 = vmul.f32 %v2805, 1.442695
        %v2810 = vpow.pop %v2809
        %v2811 = vmul.f32 %v2806, 1.442695
        %v2812 = vpow.pop %v2811
        %v2813 = vsel %vm1302, %v2808, 0.0
        %2814 = vadd.xlane.f32.xlu0 %v2813
        %v2815 = vpop.xlane.xlu0 %2814
        %v2816 = vsel %vm1302, %v2810, 0.0
        %2817 = vadd.xlane.f32.xlu0 %v2816
        %v2818 = vpop.xlane.xlu0 %2817
        %v2819 = vsel %vm1309, %v2812, 0.0
        %2820 = vadd.xlane.f32.xlu0 %v2819
        %v2821 = vpop.xlane.xlu0 %2820
        %v2822 = vrcp.pop %v2815
        %v2823 = vmul.f32 %v2815, %v2822
        %v2824 = vsub.f32 1.0, %v2823
        %v2825 = vmul.f32 %v2822, %v2824
        %v2826 = vadd.f32 %v2822, %v2825
        %vm2827 = vweird.f32 %v2815
        %vm2828 = vweird.f32 %v2822
        %vm2829 = vmor %vm2827, %vm2828
        %v2830 = vsel %vm2829, %v2822, %v2826
        %v2831 = vand.u32 2147483647, %v2815
        %vm2832 = vcmp.eq.f32.partialorder %v2831, 8.507059e+37
        %v2833 = vand.u32 %v2815, 2147483648
        %v2834 = vor.u32 1.1754944e-38, %v2833
        %v2835 = vsel %vm2832, %v2834, %v2830
        %v2836 = vmul.f32 %v2808, %v2835
        %v2837 = vrcp.pop %v2818
        %v2838 = vmul.f32 %v2818, %v2837
        %v2839 = vsub.f32 1.0, %v2838
        %v2840 = vmul.f32 %v2837, %v2839
        %v2841 = vadd.f32 %v2837, %v2840
        %vm2842 = vweird.f32 %v2818
        %vm2843 = vweird.f32 %v2837
        %vm2844 = vmor %vm2842, %vm2843
        %v2845 = vsel %vm2844, %v2837, %v2841
        %v2846 = vand.u32 2147483647, %v2818
        %vm2847 = vcmp.eq.f32.partialorder %v2846, 8.507059e+37
        %v2848 = vand.u32 %v2818, 2147483648
        %v2849 = vor.u32 1.1754944e-38, %v2848
        %v2850 = vsel %vm2847, %v2849, %v2845
        %v2851 = vmul.f32 %v2810, %v2850
        %v2852 = vrcp.pop %v2821
        %v2853 = vmul.f32 %v2821, %v2852
        %v2854 = vsub.f32 1.0, %v2853
        %v2855 = vmul.f32 %v2852, %v2854
        %v2856 = vadd.f32 %v2852, %v2855
        %vm2857 = vweird.f32 %v2821
        %vm2858 = vweird.f32 %v2852
        %vm2859 = vmor %vm2857, %vm2858
        %v2860 = vsel %vm2859, %v2852, %v2856
        %v2861 = vand.u32 2147483647, %v2821
        %vm2862 = vcmp.eq.f32.partialorder %v2861, 8.507059e+37
        %v2863 = vand.u32 %v2821, 2147483648
        %v2864 = vor.u32 1.1754944e-38, %v2863
        %v2865 = vsel %vm2862, %v2864, %v2860
        %v2866 = vmul.f32 %v2812, %v2865
        %v2867 = vpack.c.bf16 %v2851, %v2836
        %v2868 = vpack.c.bf16 %v2866, %v2866
        %2869 = vrot.lane.b32.xlu0 %v2400, 48
        %v2870 = vpop.permute.xlu0 %2869
        %2871 = vrot.lane.b32.xlu0 %v2401, 48
        %v2872 = vpop.permute.xlu0 %2871
        %v2875 = vsel %vm1302, %v2867, 0
        %v2878 = vsel %vm1302, %v2868, 0
        %v2881 = vand.u32 %v2872, %v1390
        %2883 = vmatpush.bf16.msra.mxu0 0
        %2884 = vmatpush.bf16.msra.mxu0 0
        %2885 = vmatpush.bf16.msra.mxu0 0
        %2886 = vmatpush.bf16.msra.mxu0 0
        %2887 = vmatpush.bf16.msra.mxu0 0
        %2888 = vmatpush.bf16.msra.mxu0 0
        %2889 = vmatpush.bf16.msra.mxu0 %v2881
        %2890 = vmatpush.bf16.msra.mxu0 %v2870
        %2891 = vmatmul.bf16.gmra.mxu0 %v2875
        %v2892 = vpop.f32.mrf.mxu0
        %v2893 = vadd.f32 0.0, %v2892
        %v2894 = vpop.f32.mrf.mxu0
        %v2895 = vadd.f32 0.0, %v2894
        %2896 = vmatmul.bf16.gmra.mxu0 %v2878
        %v2897 = vpop.f32.mrf.mxu0
        %v2898 = vadd.f32 0.0, %v2897
        %v2899 = vpop.f32.mrf.mxu0
        %2900 = vdwg.mxu0
        %v2901 = vpack.c.bf16 %v2895, %v2893
        %v2902 = vpack.c.bf16 %v2898, %v2898
        %v2903 = vpack.c.bf16 %v2264, %v2264
        %v2905 = vsel %vm1268, %v2901, 0
        %v2908 = vsel %vm1268, %v2902, 0
        %v2911 = vsel %vm1571, %v2903, 0
        %2913 = vmatpush.bf16.msra.mxu0 0
        %2914 = vmatpush.bf16.msra.mxu0 0
        %2915 = vmatpush.bf16.msra.mxu0 0
        %2916 = vmatpush.bf16.msra.mxu0 0
        %2917 = vmatpush.bf16.msra.mxu0 0
        %2918 = vmatpush.bf16.msra.mxu0 0
        %2919 = vmatpush.bf16.msra.mxu0 0
        %2920 = vmatpush.bf16.msra.mxu0 %v2911
        %2921 = vmatmul.bf16.gmra.mxu0 %v2905
        %v2922 = vpop.f32.mrf.mxu0
        %v2923 = vadd.f32 0.0, %v2922
        %v2924 = vpop.f32.mrf.mxu0
        %v2925 = vadd.f32 0.0, %v2924
        %2926 = vmatmul.bf16.gmra.mxu0 %v2908
        %v2927 = vpop.f32.mrf.mxu0
        %v2928 = vadd.f32 0.0, %v2927
        %v2929 = vpop.f32.mrf.mxu0
        %2930 = vdwg.mxu0
        %v2931 = vadd.f32 %v2746, %v2923
        %v2932 = vadd.f32 %v2748, %v2925
        %v2933 = vadd.f32 %v2751, %v2928
        %2934 = vrot.lane.b32.xlu0 %v2400, 104
        %v2935 = vpop.permute.xlu0 %2934
        %2936 = vrot.lane.b32.xlu0 %v2401, 104
        %v2937 = vpop.permute.xlu0 %2936
        %2938 = vrot.lane.b32.xlu0 %v2400, 72
        %v2939 = vpop.permute.xlu0 %2938
        %2940 = vrot.lane.b32.xlu0 %v2401, 72
        %v2941 = vpop.permute.xlu0 %2940
        %v2943 = vsel %vm1268, %v2935, 0
        %v2946 = vsel %vm1268, %v2937, 0
        %v2949 = vsel %vm1268, %v2939, 0
        %v2952 = vsel %vm1268, %v2941, 0
        %2954 = vmatpush.bf16.xpose.msra.mxu0 0
        %2955 = vmatpush.bf16.xpose.msra.mxu0 0
        %2956 = vmatpush.bf16.xpose.msra.mxu0 0
        %2957 = vmatpush.bf16.xpose.msra.mxu0 0
        %2958 = vmatpush.bf16.xpose.msra.mxu0 0
        %2959 = vmatpush.bf16.xpose.msra.mxu0 0
        %2960 = vmatpush.bf16.xpose.msra.mxu0 %v2952
        %2961 = vmatpush.bf16.xpose.msra.mxu0 %v2949
        %2962 = vmatmul.bf16.gmra.mxu0 %v2943
        %v2963 = vpop.f32.mrf.mxu0
        %v2964 = vadd.f32 0.0, %v2963
        %v2965 = vpop.f32.mrf.mxu0
        %v2966 = vadd.f32 0.0, %v2965
        %2967 = vmatmul.bf16.gmra.mxu0 %v2946
        %v2968 = vpop.f32.mrf.mxu0
        %v2969 = vadd.f32 0.0, %v2968
        %v2970 = vpop.f32.mrf.mxu0
        %2971 = vdwg.mxu0
        %v2972 = vmul.f32 %v2964, 0.35355338
        %v2973 = vmul.f32 %v2966, 0.35355338
        %v2974 = vmul.f32 %v2969, 0.35355338
        %v2975 = vsel %vm1302, %v2972, -inf
        %2976 = vmax.xlane.f32.xlu0 %v2975
        %v2977 = vpop.xlane.xlu0 %2976
        %v2978 = vsel %vm1302, %v2973, -inf
        %2979 = vmax.xlane.f32.xlu0 %v2978
        %v2980 = vpop.xlane.xlu0 %2979
        %v2981 = vsel %vm1309, %v2974, -inf
        %2982 = vmax.xlane.f32.xlu0 %v2981
        %v2983 = vpop.xlane.xlu0 %2982
        %v2984 = vsub.f32 %v2972, %v2977
        %v2985 = vsub.f32 %v2973, %v2980
        %v2986 = vsub.f32 %v2974, %v2983
        %v2987 = vmul.f32 %v2984, 1.442695
        %v2988 = vpow.pop %v2987
        %v2989 = vmul.f32 %v2985, 1.442695
        %v2990 = vpow.pop %v2989
        %v2991 = vmul.f32 %v2986, 1.442695
        %v2992 = vpow.pop %v2991
        %v2993 = vsel %vm1302, %v2988, 0.0
        %2994 = vadd.xlane.f32.xlu0 %v2993
        %v2995 = vpop.xlane.xlu0 %2994
        %v2996 = vsel %vm1302, %v2990, 0.0
        %2997 = vadd.xlane.f32.xlu0 %v2996
        %v2998 = vpop.xlane.xlu0 %2997
        %v2999 = vsel %vm1309, %v2992, 0.0
        %3000 = vadd.xlane.f32.xlu0 %v2999
        %v3001 = vpop.xlane.xlu0 %3000
        %v3002 = vrcp.pop %v2995
        %v3003 = vmul.f32 %v2995, %v3002
        %v3004 = vsub.f32 1.0, %v3003
        %v3005 = vmul.f32 %v3002, %v3004
        %v3006 = vadd.f32 %v3002, %v3005
        %vm3007 = vweird.f32 %v2995
        %vm3008 = vweird.f32 %v3002
        %vm3009 = vmor %vm3007, %vm3008
        %v3010 = vsel %vm3009, %v3002, %v3006
        %v3011 = vand.u32 2147483647, %v2995
        %vm3012 = vcmp.eq.f32.partialorder %v3011, 8.507059e+37
        %v3013 = vand.u32 %v2995, 2147483648
        %v3014 = vor.u32 1.1754944e-38, %v3013
        %v3015 = vsel %vm3012, %v3014, %v3010
        %v3016 = vmul.f32 %v2988, %v3015
        %v3017 = vrcp.pop %v2998
        %v3018 = vmul.f32 %v2998, %v3017
        %v3019 = vsub.f32 1.0, %v3018
        %v3020 = vmul.f32 %v3017, %v3019
        %v3021 = vadd.f32 %v3017, %v3020
        %vm3022 = vweird.f32 %v2998
        %vm3023 = vweird.f32 %v3017
        %vm3024 = vmor %vm3022, %vm3023
        %v3025 = vsel %vm3024, %v3017, %v3021
        %v3026 = vand.u32 2147483647, %v2998
        %vm3027 = vcmp.eq.f32.partialorder %v3026, 8.507059e+37
        %v3028 = vand.u32 %v2998, 2147483648
        %v3029 = vor.u32 1.1754944e-38, %v3028
        %v3030 = vsel %vm3027, %v3029, %v3025
        %v3031 = vmul.f32 %v2990, %v3030
        %v3032 = vrcp.pop %v3001
        %v3033 = vmul.f32 %v3001, %v3032
        %v3034 = vsub.f32 1.0, %v3033
        %v3035 = vmul.f32 %v3032, %v3034
        %v3036 = vadd.f32 %v3032, %v3035
        %vm3037 = vweird.f32 %v3001
        %vm3038 = vweird.f32 %v3032
        %vm3039 = vmor %vm3037, %vm3038
        %v3040 = vsel %vm3039, %v3032, %v3036
        %v3041 = vand.u32 2147483647, %v3001
        %vm3042 = vcmp.eq.f32.partialorder %v3041, 8.507059e+37
        %v3043 = vand.u32 %v3001, 2147483648
        %v3044 = vor.u32 1.1754944e-38, %v3043
        %v3045 = vsel %vm3042, %v3044, %v3040
        %v3046 = vmul.f32 %v2992, %v3045
        %v3047 = vpack.c.bf16 %v3031, %v3016
        %v3048 = vpack.c.bf16 %v3046, %v3046
        %3049 = vrot.lane.b32.xlu0 %v2400, 40
        %v3050 = vpop.permute.xlu0 %3049
        %3051 = vrot.lane.b32.xlu0 %v2401, 40
        %v3052 = vpop.permute.xlu0 %3051
        %v3055 = vsel %vm1302, %v3047, 0
        %v3058 = vsel %vm1302, %v3048, 0
        %v3061 = vand.u32 %v3052, %v1390
        %3063 = vmatpush.bf16.msra.mxu0 0
        %3064 = vmatpush.bf16.msra.mxu0 0
        %3065 = vmatpush.bf16.msra.mxu0 0
        %3066 = vmatpush.bf16.msra.mxu0 0
        %3067 = vmatpush.bf16.msra.mxu0 0
        %3068 = vmatpush.bf16.msra.mxu0 0
        %3069 = vmatpush.bf16.msra.mxu0 %v3061
        %3070 = vmatpush.bf16.msra.mxu0 %v3050
        %3071 = vmatmul.bf16.gmra.mxu0 %v3055
        %v3072 = vpop.f32.mrf.mxu0
        %v3073 = vadd.f32 0.0, %v3072
        %v3074 = vpop.f32.mrf.mxu0
        %v3075 = vadd.f32 0.0, %v3074
        %3076 = vmatmul.bf16.gmra.mxu0 %v3058
        %v3077 = vpop.f32.mrf.mxu0
        %v3078 = vadd.f32 0.0, %v3077
        %v3079 = vpop.f32.mrf.mxu0
        %3080 = vdwg.mxu0
        %v3081 = vpack.c.bf16 %v3075, %v3073
        %v3082 = vpack.c.bf16 %v3078, %v3078
        %v3083 = vpack.c.bf16 %v2265, %v2265
        %v3085 = vsel %vm1268, %v3081, 0
        %v3088 = vsel %vm1268, %v3082, 0
        %v3091 = vsel %vm1571, %v3083, 0
        %3093 = vmatpush.bf16.msra.mxu0 0
        %3094 = vmatpush.bf16.msra.mxu0 0
        %3095 = vmatpush.bf16.msra.mxu0 0
        %3096 = vmatpush.bf16.msra.mxu0 0
        %3097 = vmatpush.bf16.msra.mxu0 0
        %3098 = vmatpush.bf16.msra.mxu0 0
        %3099 = vmatpush.bf16.msra.mxu0 0
        %3100 = vmatpush.bf16.msra.mxu0 %v3091
        %3101 = vmatmul.bf16.gmra.mxu0 %v3085
        %v3102 = vpop.f32.mrf.mxu0
        %v3103 = vadd.f32 0.0, %v3102
        %v3104 = vpop.f32.mrf.mxu0
        %v3105 = vadd.f32 0.0, %v3104
        %3106 = vmatmul.bf16.gmra.mxu0 %v3088
        %v3107 = vpop.f32.mrf.mxu0
        %v3108 = vadd.f32 0.0, %v3107
        %v3109 = vpop.f32.mrf.mxu0
        %3110 = vdwg.mxu0
        %v3111 = vadd.f32 %v2931, %v3103
        %v3112 = vadd.f32 %v2932, %v3105
        %v3113 = vadd.f32 %v2933, %v3108
        %v3114 = vadd.f32 %v2252, %v3111
        %v3115 = vadd.f32 %v2253, %v3112
        %v3116 = vadd.f32 %v2254, %v3113
        %v3118 = vperm.slane %v2266, 0
        %v3120 = vadd.f32 %v3114, %v3118
        %v3121 = vadd.f32 %v3115, %v3118
        %v3122 = vadd.f32 %v3116, %v3118
        %v3123 = vsel %vm1142, %v3120, 0.0
        %3124 = vadd.xlane.f32.xlu0 %v3123
        %v3125 = vpop.xlane.xlu0 %3124
        %v3126 = vsel %vm1142, %v3121, 0.0
        %3127 = vadd.xlane.f32.xlu0 %v3126
        %v3128 = vpop.xlane.xlu0 %3127
        %v3129 = vsel %vm1149, %v3122, 0.0
        %3130 = vadd.xlane.f32.xlu0 %v3129
        %v3131 = vpop.xlane.xlu0 %3130
        %v3132 = vmul.f32 %v3125, %v1159
        %v3133 = vmul.f32 %v3128, %v1159
        %v3134 = vmul.f32 %v3131, %v1159
        %v3135 = vsub.f32 %v3120, %v3132
        %v3136 = vsub.f32 %v3121, %v3133
        %v3137 = vsub.f32 %v3122, %v3134
        %v3138 = vmul.f32 %v3135, %v3135
        %v3139 = vmul.f32 %v3136, %v3136
        %v3140 = vmul.f32 %v3137, %v3137
        %v3141 = vsel %vm1142, %v3138, 0.0
        %3142 = vadd.xlane.f32.xlu0 %v3141
        %v3143 = vpop.xlane.xlu0 %3142
        %v3144 = vsel %vm1142, %v3139, 0.0
        %3145 = vadd.xlane.f32.xlu0 %v3144
        %v3146 = vpop.xlane.xlu0 %3145
        %v3147 = vsel %vm1149, %v3140, 0.0
        %3148 = vadd.xlane.f32.xlu0 %v3147
        %v3149 = vpop.xlane.xlu0 %3148
        %v3150 = vmul.f32 %v3143, %v1159
        %v3151 = vmul.f32 %v3146, %v1159
        %v3152 = vmul.f32 %v3149, %v1159
        %v3153 = vadd.f32 %v3150, 1e-06
        %v3154 = vadd.f32 %v3151, 1e-06
        %v3155 = vadd.f32 %v3152, 1e-06
        %v3156 = vrsqrt.pop %v3153
        %v3157 = vmul.f32 %v3156, %v3153
        %v3158 = vmul.f32 %v3157, %v3156
        %v3159 = vmul.f32 0.5, %v3158
        %v3160 = vsub.f32 1.5, %v3159
        %v3161 = vmul.f32 %v3156, %v3160
        %vm3162 = vweird.f32 %v3153
        %vm3163 = vweird.f32 %v3156
        %vm3164 = vmor %vm3162, %vm3163
        %v3165 = vsel %vm3164, %v3156, %v3161
        %v3166 = vrsqrt.pop %v3154
        %v3167 = vmul.f32 %v3166, %v3154
        %v3168 = vmul.f32 %v3167, %v3166
        %v3169 = vmul.f32 0.5, %v3168
        %v3170 = vsub.f32 1.5, %v3169
        %v3171 = vmul.f32 %v3166, %v3170
        %vm3172 = vweird.f32 %v3154
        %vm3173 = vweird.f32 %v3166
        %vm3174 = vmor %vm3172, %vm3173
        %v3175 = vsel %vm3174, %v3166, %v3171
        %v3176 = vrsqrt.pop %v3155
        %v3177 = vmul.f32 %v3176, %v3155
        %v3178 = vmul.f32 %v3177, %v3176
        %v3179 = vmul.f32 0.5, %v3178
        %v3180 = vsub.f32 1.5, %v3179
        %v3181 = vmul.f32 %v3176, %v3180
        %vm3182 = vweird.f32 %v3155
        %vm3183 = vweird.f32 %v3176
        %vm3184 = vmor %vm3182, %vm3183
        %v3185 = vsel %vm3184, %v3176, %v3181
        %v3186 = vmul.f32 %v3135, %v3165
        %v3187 = vmul.f32 %v3136, %v3175
        %v3188 = vmul.f32 %v3137, %v3185
        %v3190 = vperm.slane %v2267, 0
        %v3192 = vmul.f32 %v3186, %v3190
        %v3193 = vmul.f32 %v3187, %v3190
        %v3194 = vmul.f32 %v3188, %v3190
        %v3196 = vperm.slane %v2268, 0
        %v3198 = vadd.f32 %v3192, %v3196
        %v3199 = vadd.f32 %v3193, %v3196
        %v3200 = vadd.f32 %v3194, %v3196
        %v3201 = vpack.c.bf16 %v3199, %v3198
        %v3202 = vpack.c.bf16 %v3200, %v3200
        %v3203 = vpack.c.bf16 %v2270, %v2269
        %v3204 = vpack.c.bf16 %v2272, %v2271
        %v3206 = vperm.slane %v2273, 0
        %v3209 = vsel %vm1142, %v3201, 0
        %v3212 = vsel %vm1142, %v3202, 0
        %3214 = vmatpush.bf16.msra.mxu0 0
        %3215 = vmatpush.bf16.msra.mxu0 0
        %3216 = vmatpush.bf16.msra.mxu0 0
        %3217 = vmatpush.bf16.msra.mxu0 0
        %3218 = vmatpush.bf16.msra.mxu0 0
        %3219 = vmatpush.bf16.msra.mxu0 0
        %3220 = vmatpush.bf16.msra.mxu0 %v3204
        %3221 = vmatpush.bf16.msra.mxu0 %v3203
        %3222 = vmatmul.bf16.gmra.mxu0 %v3209
        %v3223 = vpop.f32.mrf.mxu0
        %v3224 = vadd.f32 %v3206, %v3223
        %v3225 = vpop.f32.mrf.mxu0
        %v3226 = vadd.f32 %v3206, %v3225
        %3227 = vmatmul.bf16.gmra.mxu0 %v3212
        %v3228 = vpop.f32.mrf.mxu0
        %v3229 = vadd.f32 %v3206, %v3228
        %v3230 = vpop.f32.mrf.mxu0
        %3231 = vdwg.mxu0
        %v3232 = vmul.f32 %v3224, 0.5
        %v3233 = vmul.f32 %v3226, 0.5
        %v3234 = vmul.f32 %v3229, 0.5
        %v3235 = vmul.f32 %v3224, 0.70710677
        %v3236 = vmul.f32 %v3226, 0.70710677
        %v3237 = vmul.f32 %v3229, 0.70710677
        %vm3238 = vcmp.ge.f32.partialorder %v3235, 0.0
        %vm3239 = vcmp.ge.f32.partialorder %v3236, 0.0
        %vm3240 = vcmp.ge.f32.partialorder %v3237, 0.0
        %v3241 = vsel %vm3238, 1.0, -1.0
        %v3242 = vsel %vm3239, 1.0, -1.0
        %v3243 = vsel %vm3240, 1.0, -1.0
        %v3244 = vand.u32 2147483647, %v3235
        %v3245 = vand.u32 2147483647, %v3236
        %v3246 = vand.u32 2147483647, %v3237
        %v3247 = vmul.f32 %v3244, 0.3275911
        %v3248 = vmul.f32 %v3245, 0.3275911
        %v3249 = vmul.f32 %v3246, 0.3275911
        %v3250 = vadd.f32 %v3247, 1.0
        %v3251 = vadd.f32 %v3248, 1.0
        %v3252 = vadd.f32 %v3249, 1.0
        %v3253 = vrcp.pop %v3250
        %v3254 = vmul.f32 %v3250, %v3253
        %v3255 = vsub.f32 1.0, %v3254
        %v3256 = vmul.f32 %v3253, %v3255
        %v3257 = vadd.f32 %v3253, %v3256
        %vm3258 = vweird.f32 %v3250
        %vm3259 = vweird.f32 %v3253
        %vm3260 = vmor %vm3258, %vm3259
        %v3261 = vsel %vm3260, %v3253, %v3257
        %v3262 = vand.u32 2147483647, %v3250
        %vm3263 = vcmp.eq.f32.partialorder %v3262, 8.507059e+37
        %v3264 = vand.u32 %v3250, 2147483648
        %v3265 = vor.u32 1.1754944e-38, %v3264
        %v3266 = vsel %vm3263, %v3265, %v3261
        %v3267 = vmul.f32 1.0, %v3266
        %v3268 = vrcp.pop %v3251
        %v3269 = vmul.f32 %v3251, %v3268
        %v3270 = vsub.f32 1.0, %v3269
        %v3271 = vmul.f32 %v3268, %v3270
        %v3272 = vadd.f32 %v3268, %v3271
        %vm3273 = vweird.f32 %v3251
        %vm3274 = vweird.f32 %v3268
        %vm3275 = vmor %vm3273, %vm3274
        %v3276 = vsel %vm3275, %v3268, %v3272
        %v3277 = vand.u32 2147483647, %v3251
        %vm3278 = vcmp.eq.f32.partialorder %v3277, 8.507059e+37
        %v3279 = vand.u32 %v3251, 2147483648
        %v3280 = vor.u32 1.1754944e-38, %v3279
        %v3281 = vsel %vm3278, %v3280, %v3276
        %v3282 = vmul.f32 1.0, %v3281
        %v3283 = vrcp.pop %v3252
        %v3284 = vmul.f32 %v3252, %v3283
        %v3285 = vsub.f32 1.0, %v3284
        %v3286 = vmul.f32 %v3283, %v3285
        %v3287 = vadd.f32 %v3283, %v3286
        %vm3288 = vweird.f32 %v3252
        %vm3289 = vweird.f32 %v3283
        %vm3290 = vmor %vm3288, %vm3289
        %v3291 = vsel %vm3290, %v3283, %v3287
        %v3292 = vand.u32 2147483647, %v3252
        %vm3293 = vcmp.eq.f32.partialorder %v3292, 8.507059e+37
        %v3294 = vand.u32 %v3252, 2147483648
        %v3295 = vor.u32 1.1754944e-38, %v3294
        %v3296 = vsel %vm3293, %v3295, %v3291
        %v3297 = vmul.f32 1.0, %v3296
        %v3298 = vmul.f32 %v3267, 1.0614054
        %v3299 = vmul.f32 %v3282, 1.0614054
        %v3300 = vmul.f32 %v3297, 1.0614054
        %v3301 = vadd.f32 %v3298, -1.4531521
        %v3302 = vadd.f32 %v3299, -1.4531521
        %v3303 = vadd.f32 %v3300, -1.4531521
        %v3304 = vmul.f32 %v3301, %v3267
        %v3305 = vmul.f32 %v3302, %v3282
        %v3306 = vmul.f32 %v3303, %v3297
        %v3307 = vadd.f32 %v3304, 1.4214138
        %v3308 = vadd.f32 %v3305, 1.4214138
        %v3309 = vadd.f32 %v3306, 1.4214138
        %v3310 = vmul.f32 %v3307, %v3267
        %v3311 = vmul.f32 %v3308, %v3282
        %v3312 = vmul.f32 %v3309, %v3297
        %v3313 = vadd.f32 %v3310, -0.28449672
        %v3314 = vadd.f32 %v3311, -0.28449672
        %v3315 = vadd.f32 %v3312, -0.28449672
        %v3316 = vmul.f32 %v3313, %v3267
        %v3317 = vmul.f32 %v3314, %v3282
        %v3318 = vmul.f32 %v3315, %v3297
        %v3319 = vadd.f32 %v3316, 0.2548296
        %v3320 = vadd.f32 %v3317, 0.2548296
        %v3321 = vadd.f32 %v3318, 0.2548296
        %v3322 = vmul.f32 %v3319, %v3267
        %v3323 = vmul.f32 %v3320, %v3282
        %v3324 = vmul.f32 %v3321, %v3297
        %v3325 = vsub.f32 0.0, %v3244
        %v3326 = vsub.f32 0.0, %v3245
        %v3327 = vsub.f32 0.0, %v3246
        %v3328 = vmul.f32 %v3325, %v3244
        %v3329 = vmul.f32 %v3326, %v3245
        %v3330 = vmul.f32 %v3327, %v3246
        %v3331 = vmul.f32 %v3328, 1.442695
        %v3332 = vpow.pop %v3331
        %v3333 = vmul.f32 %v3329, 1.442695
        %v3334 = vpow.pop %v3333
        %v3335 = vmul.f32 %v3330, 1.442695
        %v3336 = vpow.pop %v3335
        %v3337 = vmul.f32 %v3322, %v3332
        %v3338 = vmul.f32 %v3323, %v3334
        %v3339 = vmul.f32 %v3324, %v3336
        %v3340 = vsub.f32 1.0, %v3337
        %v3341 = vsub.f32 1.0, %v3338
        %v3342 = vsub.f32 1.0, %v3339
        %v3343 = vmul.f32 %v3241, %v3340
        %v3344 = vmul.f32 %v3242, %v3341
        %v3345 = vmul.f32 %v3243, %v3342
        %v3346 = vadd.f32 %v3343, 1.0
        %v3347 = vadd.f32 %v3344, 1.0
        %v3348 = vadd.f32 %v3345, 1.0
        %v3349 = vmul.f32 %v3232, %v3346
        %v3350 = vmul.f32 %v3233, %v3347
        %v3351 = vmul.f32 %v3234, %v3348
        %v3352 = vpack.c.bf16 %v3350, %v3349
        %v3353 = vpack.c.bf16 %v3351, %v3351
        %v3354 = vpack.c.bf16 %v2275, %v2274
        %v3355 = vpack.c.bf16 %v2277, %v2276
        %v3356 = vpack.c.bf16 %v2279, %v2278
        %v3357 = vpack.c.bf16 %v2281, %v2280
        %v3358 = vpack.c.bf16 %v2283, %v2282
        %v3359 = vpack.c.bf16 %v2285, %v2284
        %v3360 = vpack.c.bf16 %v2287, %v2286
        %v3361 = vpack.c.bf16 %v2289, %v2288
        %3362 = vmatpush.bf16.msra.mxu0 %v3361
        %3363 = vmatpush.bf16.msra.mxu0 %v3360
        %3364 = vmatpush.bf16.msra.mxu0 %v3359
        %3365 = vmatpush.bf16.msra.mxu0 %v3358
        %3366 = vmatpush.bf16.msra.mxu0 %v3357
        %3367 = vmatpush.bf16.msra.mxu0 %v3356
        %3368 = vmatpush.bf16.msra.mxu0 %v3355
        %3369 = vmatpush.bf16.msra.mxu0 %v3354
        %3370 = vmatmul.bf16.gmra.mxu0 %v3352
        %v3371 = vpop.f32.mrf.mxu0
        %v3372 = vadd.f32 0.0, %v3371
        %v3373 = vpop.f32.mrf.mxu0
        %3374 = vmatmul.bf16.gmra.mxu0 %v3353
        %v3375 = vpop.f32.mrf.mxu0
        %v3376 = vpop.f32.mrf.mxu0
        %3377 = vdwg.mxu0
        %v3378 = vadd.f32 %v3120, %v3372
        %v3380 = vperm.slane %v2290, 0
        %v3382 = vadd.f32 %v3378, %v3380
        %v3383 = vld [vmem:[%s61] sm:$0x1]
        %v3384 = vld [vmem:[%s63] sm:$0x1]
        %v3385 = vld [vmem:[%s65] sm:$0xff]
        %v3386 = vld [vmem:[%s65 + $0x8] sm:$0xff]
        %v3387 = vld [vmem:[%s65 + $0x10] sm:$0xff]
        %v3388 = vld [vmem:[%s65 + $0x18] sm:$0xff]
        %v3389 = vld [vmem:[%s67] sm:$0x1]
        %v3390 = vsel %vm1142, %v3382, 0.0
        %3391 = vadd.xlane.f32.xlu0 %v3390
        %v3392 = vpop.xlane.xlu0 %3391
        %v3393 = vmul.f32 %v3392, %v1159
        %v3394 = vsub.f32 %v3382, %v3393
        %v3395 = vmul.f32 %v3394, %v3394
        %v3396 = vsel %vm1142, %v3395, 0.0
        %3397 = vadd.xlane.f32.xlu0 %v3396
        %v3398 = vpop.xlane.xlu0 %3397
        %v3399 = vmul.f32 %v3398, %v1159
        %v3400 = vadd.f32 %v3399, 1e-06
        %v3401 = vrsqrt.pop %v3400
        %v3402 = vmul.f32 %v3401, %v3400
        %v3403 = vmul.f32 %v3402, %v3401
        %v3404 = vmul.f32 0.5, %v3403
        %v3405 = vsub.f32 1.5, %v3404
        %v3406 = vmul.f32 %v3401, %v3405
        %vm3407 = vweird.f32 %v3400
        %vm3408 = vweird.f32 %v3401
        %vm3409 = vmor %vm3407, %vm3408
        %v3410 = vsel %vm3409, %v3401, %v3406
        %v3411 = vmul.f32 %v3394, %v3410
        %v3413 = vperm.slane %v3383, 0
        %v3415 = vmul.f32 %v3411, %v3413
        %v3417 = vperm.slane %v3384, 0
        %v3419 = vadd.f32 %v3415, %v3417
        %v3420 = vpack.c.bf16 %v3419, %v3419
        %v3421 = vpack.c.bf16 %v3386, %v3385
        %v3422 = vpack.c.bf16 %v3388, %v3387
        %v3424 = vsel %vm1142, %v3420, 0
        %3426 = vmatpush.bf16.msra.mxu0 0
        %3427 = vmatpush.bf16.msra.mxu0 0
        %3428 = vmatpush.bf16.msra.mxu0 0
        %3429 = vmatpush.bf16.msra.mxu0 0
        %3430 = vmatpush.bf16.msra.mxu0 0
        %3431 = vmatpush.bf16.msra.mxu0 0
        %3432 = vmatpush.bf16.msra.mxu0 %v3422
        %3433 = vmatpush.bf16.msra.mxu0 %v3421
        %3434 = vmatmul.bf16.gmra.mxu0 %v3424
        %v3435 = vpop.f32.mrf.mxu0
        %v3436 = vadd.f32 %v3389, %v3435
        %v3437 = vpop.f32.mrf.mxu0
        %3438 = vdwg.mxu0
        %v3439 = vld [vmem:[%s1053] sm:$0x1]
        %v3440 = vmul.f32 %v3436, %v3439
        %vm3441 = vcmask 73728
        %3442 = vst.msk [vmem:[%s1045] sm:$0x1] %vm3441, %v3440
        %s3443 = sand.u32 %s815, 1
        %s3444 = scalar_lea.sflag [#allocation3], %s3443
        %s3445 = sand.u32 %s815, 1
        %s3446 = scalar_lea.vmem [#allocation2], %s3445
        // Predicated region
        $region157: #{tpu_custom_call.1} parent=155 // pred_check
          %p3447 = pneg %p825
        $region158: #{tpu_custom_call.1} parent=155 // pred_check_branch
          %3449 = sbr.rel (%p3447) target = $region160
        $region159: #{tpu_custom_call.1} parent=155 // pred_region
          %3451 = vsyncadd %s3444, 0
          %s3452 = scalar_lea.hbm %s69, %s83
          %s3454 = sshll.u32 %s3446, 4
          %s3455 = int_to_ptr.vmem [resolvable:$true] %s3454
          %s3456 = sshll.u32 %s3452, 4
          %s3457 = int_to_ptr.hbm [resolvable:$true] %s3456
          %3459 = dma.vmem_to_hbm [thread:$0]  %s3455, 16, %s3457, %s3444
        $region160: #{tpu_custom_call.1} parent=155 // pred_fallthru
          _
      $region156: #{tpu_custom_call.1} parent=5 // pred_fallthru
        _
      %p3460 = scmp.le.s32.totalorder 2, %s78
      // Predicated region
      $region161: #{tpu_custom_call.1} parent=5 // pred_check
        %p3461 = pneg %p3460
      $region162: #{tpu_custom_call.1} parent=5 // pred_check_branch
        %3463 = sbr.rel (%p3461) target = $region164
      $region163: #{tpu_custom_call.1} parent=5 // pred_region
        %s3464 = ssub.s32 %s78, 2
        // Predicated region
        $region165: #{tpu_custom_call.1} parent=163 // pred_check
          %p3465 = pneg %p831
        $region166: #{tpu_custom_call.1} parent=163 // pred_check_branch
          %3467 = sbr.rel (%p3465) target = $region168
        $region167: #{tpu_custom_call.1} parent=163 // pred_region
          %s3468 = sand.u32 %s816, 1
          %s3469 = scalar_lea.sflag [#allocation3], %s3468
          %s3470 = sand.u32 %s816, 1
          %s3471 = scalar_lea.vmem [#allocation2], %s3470
          %3473 = dma.done %s3469, 16
        $region168: #{tpu_custom_call.1} parent=163 // pred_fallthru
          _
      $region164: #{tpu_custom_call.1} parent=5 // pred_fallthru
        _
    $region6: #{tpu_custom_call.1} parent=1 // loop_footer
      %s82 = sadd.s32 1, %s78
    $region7: #{tpu_custom_call.1} parent=1 // loop_footer_branch
      %77 = sbr.rel target = $region3
    $region8: #{tpu_custom_call.1} parent=1 // loop_exit
      _
    %3474 = vsyncpa [#allocation3], 1
    %s3475 = scalar_lea.sflag [#allocation3], 1
    %3476 = vsyncpa %s3475, 1

</llo_original>
